<compile_context>
chip_gen: v6e
topology: v6e:2x2x1
jax: 0.10.0
libtpu: 0.0.40
codegen_flags: <defaults>
</compile_context>

<pallas_src>
import jax
import jax.numpy as jnp
from jax.experimental import pallas as pl
from jax.experimental.pallas import tpu as pltpu

# (in_features, out_features) for fc1..fc10 of the original torch module.
TORCH_LAYER_DIMS = [
    (4, 512), (512, 256), (256, 128), (128, 64), (64, 32),
    (32, 16), (16, 8), (8, 4), (4, 2), (2, 1),
]
NUM_TORCH_LAYERS = len(TORCH_LAYER_DIMS)
NUM_BN = 8          # fc1..fc8 are followed by BatchNorm1d + ReLU
BN_EPS = 1e-5       # torch.nn.BatchNorm1d default

# Padded feature widths for the FUSED chain (fc9+fc10 folded into one layer):
# input, after fc1, ..., after fc8, after (fc9·fc10).
# Sublane dims are multiples of 8 (f32) / 16 (bf16 activations); lane dim is
# always the batch tile TM (multiple of 128), so layouts stay clean everywhere.
PAD_DIMS = [16, 512, 256, 128, 64, 32, 32, 32, 32, 8]
N_FUSED_LAYERS = len(PAD_DIMS) - 1      # = 9


def mlp_kernel(x_ref, *refs):
    """refs = (w0, b0, ..., w8, b8, out_ref).

    Activations are laid out (features, TM): features on sublanes, batch on
    lanes, so every matmul is w(out_p, in_p) @ y(in_p, TM) on the MXU and the
    final store is lane-dense.
    """
    out_ref = refs[-1]
    params = refs[:-1]

    y = x_ref[...]                                          # (16, TM) bf16
    z = None
    for i in range(N_FUSED_LAYERS):
        w = params[2 * i][...]                              # (out_p, in_p) bf16
        b = params[2 * i + 1][...]                          # (out_p, 1)   f32
        z = jnp.dot(w, y, preferred_element_type=jnp.float32) + b
        if i < NUM_BN:                                      # BN folded into w/b; ReLU here
            z = jnp.maximum(z, 0.0)
        if i < N_FUSED_LAYERS - 1:
            y = z.astype(jnp.bfloat16)                      # bf16 feed for next MXU matmul
    # Real logit lives in padded row 0; rows 1..7 are exact zeros.
    out_ref[...] = z                                        # (8, TM) f32, unmasked vst


@jax.jit
def softmax_classifier_forward(x, packed):
    """x: (B, 4) float32.  packed: flat list [w0_p, b0_p, ..., w8_p, b8_p]
    (BN folded, fc9/fc10 fused, zero padded, weights bf16 / biases f32).
    Returns (B, 1) f32 logits."""
    B, F = x.shape

    # Batch tile: multiple of 128, at most 512; pad B so the grid step count is
    # EVEN (feeds both TensorCores on v7x; harmless elsewhere).
    TM = max(128, min(512, pl.next_power_of_2(pl.cdiv(B, 2))))
    B_pad = pl.cdiv(B, 2 * TM) * (2 * TM)
    grid = (B_pad // TM,)

    # features -> sublanes (4 padded to 16), batch -> lanes; built directly in bf16.
    x_t = jnp.zeros((PAD_DIMS[0], B_pad), jnp.bfloat16)
    x_t = x_t.at[:F, :B].set(x.T.astype(jnp.bfloat16))

    in_specs = [pl.BlockSpec((PAD_DIMS[0], TM), lambda i: (0, i))]
    for p in packed:
        # Full-extent blocks with a constant index_map: fetched once, VMEM-resident.
        in_specs.append(pl.BlockSpec(p.shape, lambda i: (0, 0)))
    out_spec = pl.BlockSpec((8, TM), lambda i: (0, i))

    flops = 2 * B_pad * sum(PAD_DIMS[i] * PAD_DIMS[i + 1]
                            for i in range(N_FUSED_LAYERS))
    bytes_accessed = (x_t.size * x_t.dtype.itemsize
                      + sum(p.size * p.dtype.itemsize for p in packed)
                      + 8 * B_pad * 4)

    out = pl.pallas_call(
        mlp_kernel,
        out_shape=jax.ShapeDtypeStruct((8, B_pad), jnp.float32),
        grid=grid,
        in_specs=in_specs,
        out_specs=out_spec,
        compiler_params=pltpu.CompilerParams(
            dimension_semantics=("parallel",),
            vmem_limit_bytes=16 << 20,
        ),
        cost_estimate=pl.CostEstimate(
            flops=flops, transcendentals=0, bytes_accessed=bytes_accessed),
    )(x_t, *packed)

    return out[0, :B][:, None]                              # (B, 1)


def init_params(key):
    """Deterministic torch-style params: Linear U(-1/sqrt(fan_in), +) and BN stats."""
    raw = []
    for i, (fan_in, fan_out) in enumerate(TORCH_LAYER_DIMS):
        k = jax.random.fold_in(key, i)
        kw, kb, kg, kbe, km, kv = jax.random.split(k, 6)
        bound = 1.0 / (fan_in ** 0.5)
        p = dict(
            w=jax.random.uniform(kw, (fan_out, fan_in), jnp.float32, -bound, bound),
            b=jax.random.uniform(kb, (fan_out,), jnp.float32, -bound, bound),
        )
        if i < NUM_BN:
            p["gamma"] = jax.random.uniform(kg, (fan_out,), jnp.float32, 0.5, 1.5)
            p["beta"] = 0.1 * jax.random.normal(kbe, (fan_out,), jnp.float32)
            p["mean"] = 0.1 * jax.random.normal(km, (fan_out,), jnp.float32)
            p["var"] = jax.random.uniform(kv, (fan_out,), jnp.float32, 0.5, 1.5)
        raw.append(p)
    return raw


def pack_params(raw):
    """Fold eval-mode BN into fc1..fc8, fuse fc9/fc10 into one linear layer,
    zero-pad everything to PAD_DIMS, cast weights to bf16 (biases stay f32)."""
    folded = []
    # fc1..fc8: BN(running stats) folded into the preceding Linear.
    for i in range(NUM_BN):
        p = raw[i]
        s = p["gamma"] / jnp.sqrt(p["var"] + BN_EPS)
        w = p["w"] * s[:, None]
        b = (p["b"] - p["mean"]) * s + p["beta"]
        folded.append((w, b))
    # fc9 + fc10 (both pure Linear, no nonlinearity between): single linear layer.
    w9, b9 = raw[8]["w"], raw[8]["b"]
    w10, b10 = raw[9]["w"], raw[9]["b"]
    folded.append((w10 @ w9, w10 @ b9 + b10))

    packed = []
    for i, (w, b) in enumerate(folded):
        out_dim, in_dim = w.shape
        in_p, out_p = PAD_DIMS[i], PAD_DIMS[i + 1]
        w_p = jnp.zeros((out_p, in_p), jnp.float32).at[:out_dim, :in_dim].set(w)
        b_p = jnp.zeros((out_p, 1), jnp.float32).at[:out_dim, 0].set(b)
        packed.extend([w_p.astype(jnp.bfloat16), b_p])
    return packed


def reference_forward(x, raw):
    """Pure-JAX f32 reference with exact torch forward semantics (eval-mode BN)."""
    y = x
    for i in range(NUM_TORCH_LAYERS):
        p = raw[i]
        y = y @ p["w"].T + p["b"]
        if i < NUM_BN:
            y = (y - p["mean"]) / jnp.sqrt(p["var"] + BN_EPS) * p["gamma"] + p["beta"]
            y = jnp.maximum(y, 0.0)
    return y                                                # (B, 1) logits


if __name__ == "__main__":
    key = jax.random.PRNGKey(0)
    raw = init_params(key)
    packed = pack_params(raw)

    # Small input: (B=300, features=4); B_pad=512 -> even 2-step grid with TM=256.
    x = jax.random.normal(jax.random.fold_in(key, 1000), (300, 4), jnp.float32)

    out = softmax_classifier_forward(x, packed)
    out = jax.block_until_ready(out)

    ref = reference_forward(x, raw)
    assert out.shape == (300, 1), out.shape
    err = float(jnp.max(jnp.abs(out - ref)))
    scale = float(jnp.max(jnp.abs(ref))) + 1e-6
    # bf16 matmuls vs f32 reference: allow a few percent relative error.
    assert err <= 0.05 * scale + 0.05, (err, scale)

    print("KERNEL_OK")
</pallas_src>

<mosaic_0001>
module attributes {stable_mosaic.version = 11 : i64} {
  func.func @mlp_kernel(%arg0: i32, %arg1: memref<16x256xbf16, #tpu.memory_space<vmem>>, %arg2: memref<512x16xbf16, #tpu.memory_space<vmem>>, %arg3: memref<512x1xf32, #tpu.memory_space<vmem>>, %arg4: memref<256x512xbf16, #tpu.memory_space<vmem>>, %arg5: memref<256x1xf32, #tpu.memory_space<vmem>>, %arg6: memref<128x256xbf16, #tpu.memory_space<vmem>>, %arg7: memref<128x1xf32, #tpu.memory_space<vmem>>, %arg8: memref<64x128xbf16, #tpu.memory_space<vmem>>, %arg9: memref<64x1xf32, #tpu.memory_space<vmem>>, %arg10: memref<32x64xbf16, #tpu.memory_space<vmem>>, %arg11: memref<32x1xf32, #tpu.memory_space<vmem>>, %arg12: memref<32x32xbf16, #tpu.memory_space<vmem>>, %arg13: memref<32x1xf32, #tpu.memory_space<vmem>>, %arg14: memref<32x32xbf16, #tpu.memory_space<vmem>>, %arg15: memref<32x1xf32, #tpu.memory_space<vmem>>, %arg16: memref<32x32xbf16, #tpu.memory_space<vmem>>, %arg17: memref<32x1xf32, #tpu.memory_space<vmem>>, %arg18: memref<8x32xbf16, #tpu.memory_space<vmem>>, %arg19: memref<8x1xf32, #tpu.memory_space<vmem>>, %arg20: memref<8x256xf32, #tpu.memory_space<vmem>>) attributes {dimension_semantics = [#tpu.dimension_semantics<parallel>], iteration_bounds = array<i64: 2>, scalar_prefetch = 0 : i64, scratch_operands = 0 : i64, tpu.core_type = #tpu.core_type<tc>, window_params = [{transform_indices = @transform_0, window_bounds = array<i64: 16, 256>}, {pipeline_mode = #tpu.pipeline_mode<synchronous>, transform_indices = @transform_1, window_bounds = array<i64: 512, 16>}, {pipeline_mode = #tpu.pipeline_mode<synchronous>, transform_indices = @transform_2, window_bounds = array<i64: 512, 1>}, {pipeline_mode = #tpu.pipeline_mode<synchronous>, transform_indices = @transform_3, window_bounds = array<i64: 256, 512>}, {pipeline_mode = #tpu.pipeline_mode<synchronous>, transform_indices = @transform_4, window_bounds = array<i64: 256, 1>}, {pipeline_mode = #tpu.pipeline_mode<synchronous>, transform_indices = @transform_5, window_bounds = array<i64: 128, 256>}, {pipeline_mode = #tpu.pipeline_mode<synchronous>, transform_indices = @transform_6, window_bounds = array<i64: 128, 1>}, {pipeline_mode = #tpu.pipeline_mode<synchronous>, transform_indices = @transform_7, window_bounds = array<i64: 64, 128>}, {pipeline_mode = #tpu.pipeline_mode<synchronous>, transform_indices = @transform_8, window_bounds = array<i64: 64, 1>}, {pipeline_mode = #tpu.pipeline_mode<synchronous>, transform_indices = @transform_9, window_bounds = array<i64: 32, 64>}, {pipeline_mode = #tpu.pipeline_mode<synchronous>, transform_indices = @transform_10, window_bounds = array<i64: 32, 1>}, {pipeline_mode = #tpu.pipeline_mode<synchronous>, transform_indices = @transform_11, window_bounds = array<i64: 32, 32>}, {pipeline_mode = #tpu.pipeline_mode<synchronous>, transform_indices = @transform_12, window_bounds = array<i64: 32, 1>}, {pipeline_mode = #tpu.pipeline_mode<synchronous>, transform_indices = @transform_13, window_bounds = array<i64: 32, 32>}, {pipeline_mode = #tpu.pipeline_mode<synchronous>, transform_indices = @transform_14, window_bounds = array<i64: 32, 1>}, {pipeline_mode = #tpu.pipeline_mode<synchronous>, transform_indices = @transform_15, window_bounds = array<i64: 32, 32>}, {pipeline_mode = #tpu.pipeline_mode<synchronous>, transform_indices = @transform_16, window_bounds = array<i64: 32, 1>}, {pipeline_mode = #tpu.pipeline_mode<synchronous>, transform_indices = @transform_17, window_bounds = array<i64: 8, 32>}, {pipeline_mode = #tpu.pipeline_mode<synchronous>, transform_indices = @transform_18, window_bounds = array<i64: 8, 1>}, {transform_indices = @transform_19, window_bounds = array<i64: 8, 256>}]} {
    %c0 = arith.constant 0 : index
    %c0_0 = arith.constant 0 : index
    %0 = vector.load %arg1[%c0, %c0_0] : memref<16x256xbf16, #tpu.memory_space<vmem>>, vector<16x256xbf16>
    %c0_1 = arith.constant 0 : index
    %c0_2 = arith.constant 0 : index
    %1 = vector.load %arg2[%c0_1, %c0_2] : memref<512x16xbf16, #tpu.memory_space<vmem>>, vector<512x16xbf16>
    %c0_3 = arith.constant 0 : index
    %c0_4 = arith.constant 0 : index
    %2 = vector.load %arg3[%c0_3, %c0_4] : memref<512x1xf32, #tpu.memory_space<vmem>>, vector<512x1xf32>
    %cst = arith.constant dense<0.000000e+00> : vector<512x256xf32>
    %3 = tpu.matmul %1, %0, %cst {dimension_numbers = #tpu.dot_dimension_numbers<[1], [0], [0], [1], [0, 0, 1, 1], [], []>} : vector<512x16xbf16>, vector<16x256xbf16>, vector<512x256xf32> -> vector<512x256xf32>
    %4 = vector.broadcast %2 : vector<512x1xf32> to vector<512x256xf32>
    %5 = arith.addf %3, %4 : vector<512x256xf32>
    %cst_5 = arith.constant 0.000000e+00 : f32
    %6 = vector.broadcast %cst_5 : f32 to vector<512x256xf32>
    %7 = arith.maximumf %5, %6 : vector<512x256xf32>
    %8 = arith.truncf %7 : vector<512x256xf32> to vector<512x256xbf16>
    %c0_6 = arith.constant 0 : index
    %c0_7 = arith.constant 0 : index
    %9 = vector.load %arg4[%c0_6, %c0_7] : memref<256x512xbf16, #tpu.memory_space<vmem>>, vector<256x512xbf16>
    %c0_8 = arith.constant 0 : index
    %c0_9 = arith.constant 0 : index
    %10 = vector.load %arg5[%c0_8, %c0_9] : memref<256x1xf32, #tpu.memory_space<vmem>>, vector<256x1xf32>
    %cst_10 = arith.constant dense<0.000000e+00> : vector<256x256xf32>
    %11 = tpu.matmul %9, %8, %cst_10 {dimension_numbers = #tpu.dot_dimension_numbers<[1], [0], [0], [1], [0, 0, 1, 1], [], []>} : vector<256x512xbf16>, vector<512x256xbf16>, vector<256x256xf32> -> vector<256x256xf32>
    %12 = vector.broadcast %10 : vector<256x1xf32> to vector<256x256xf32>
    %13 = arith.addf %11, %12 : vector<256x256xf32>
    %cst_11 = arith.constant 0.000000e+00 : f32
    %14 = vector.broadcast %cst_11 : f32 to vector<256x256xf32>
    %15 = arith.maximumf %13, %14 : vector<256x256xf32>
    %16 = arith.truncf %15 : vector<256x256xf32> to vector<256x256xbf16>
    %c0_12 = arith.constant 0 : index
    %c0_13 = arith.constant 0 : index
    %17 = vector.load %arg6[%c0_12, %c0_13] : memref<128x256xbf16, #tpu.memory_space<vmem>>, vector<128x256xbf16>
    %c0_14 = arith.constant 0 : index
    %c0_15 = arith.constant 0 : index
    %18 = vector.load %arg7[%c0_14, %c0_15] : memref<128x1xf32, #tpu.memory_space<vmem>>, vector<128x1xf32>
    %cst_16 = arith.constant dense<0.000000e+00> : vector<128x256xf32>
    %19 = tpu.matmul %17, %16, %cst_16 {dimension_numbers = #tpu.dot_dimension_numbers<[1], [0], [0], [1], [0, 0, 1, 1], [], []>} : vector<128x256xbf16>, vector<256x256xbf16>, vector<128x256xf32> -> vector<128x256xf32>
    %20 = vector.broadcast %18 : vector<128x1xf32> to vector<128x256xf32>
    %21 = arith.addf %19, %20 : vector<128x256xf32>
    %cst_17 = arith.constant 0.000000e+00 : f32
    %22 = vector.broadcast %cst_17 : f32 to vector<128x256xf32>
    %23 = arith.maximumf %21, %22 : vector<128x256xf32>
    %24 = arith.truncf %23 : vector<128x256xf32> to vector<128x256xbf16>
    %c0_18 = arith.constant 0 : index
    %c0_19 = arith.constant 0 : index
    %25 = vector.load %arg8[%c0_18, %c0_19] : memref<64x128xbf16, #tpu.memory_space<vmem>>, vector<64x128xbf16>
    %c0_20 = arith.constant 0 : index
    %c0_21 = arith.constant 0 : index
    %26 = vector.load %arg9[%c0_20, %c0_21] : memref<64x1xf32, #tpu.memory_space<vmem>>, vector<64x1xf32>
    %cst_22 = arith.constant dense<0.000000e+00> : vector<64x256xf32>
    %27 = tpu.matmul %25, %24, %cst_22 {dimension_numbers = #tpu.dot_dimension_numbers<[1], [0], [0], [1], [0, 0, 1, 1], [], []>} : vector<64x128xbf16>, vector<128x256xbf16>, vector<64x256xf32> -> vector<64x256xf32>
    %28 = vector.broadcast %26 : vector<64x1xf32> to vector<64x256xf32>
    %29 = arith.addf %27, %28 : vector<64x256xf32>
    %cst_23 = arith.constant 0.000000e+00 : f32
    %30 = vector.broadcast %cst_23 : f32 to vector<64x256xf32>
    %31 = arith.maximumf %29, %30 : vector<64x256xf32>
    %32 = arith.truncf %31 : vector<64x256xf32> to vector<64x256xbf16>
    %c0_24 = arith.constant 0 : index
    %c0_25 = arith.constant 0 : index
    %33 = vector.load %arg10[%c0_24, %c0_25] : memref<32x64xbf16, #tpu.memory_space<vmem>>, vector<32x64xbf16>
    %c0_26 = arith.constant 0 : index
    %c0_27 = arith.constant 0 : index
    %34 = vector.load %arg11[%c0_26, %c0_27] : memref<32x1xf32, #tpu.memory_space<vmem>>, vector<32x1xf32>
    %cst_28 = arith.constant dense<0.000000e+00> : vector<32x256xf32>
    %35 = tpu.matmul %33, %32, %cst_28 {dimension_numbers = #tpu.dot_dimension_numbers<[1], [0], [0], [1], [0, 0, 1, 1], [], []>} : vector<32x64xbf16>, vector<64x256xbf16>, vector<32x256xf32> -> vector<32x256xf32>
    %36 = vector.broadcast %34 : vector<32x1xf32> to vector<32x256xf32>
    %37 = arith.addf %35, %36 : vector<32x256xf32>
    %cst_29 = arith.constant 0.000000e+00 : f32
    %38 = vector.broadcast %cst_29 : f32 to vector<32x256xf32>
    %39 = arith.maximumf %37, %38 : vector<32x256xf32>
    %40 = arith.truncf %39 : vector<32x256xf32> to vector<32x256xbf16>
    %c0_30 = arith.constant 0 : index
    %c0_31 = arith.constant 0 : index
    %41 = vector.load %arg12[%c0_30, %c0_31] : memref<32x32xbf16, #tpu.memory_space<vmem>>, vector<32x32xbf16>
    %c0_32 = arith.constant 0 : index
    %c0_33 = arith.constant 0 : index
    %42 = vector.load %arg13[%c0_32, %c0_33] : memref<32x1xf32, #tpu.memory_space<vmem>>, vector<32x1xf32>
    %cst_34 = arith.constant dense<0.000000e+00> : vector<32x256xf32>
    %43 = tpu.matmul %41, %40, %cst_34 {dimension_numbers = #tpu.dot_dimension_numbers<[1], [0], [0], [1], [0, 0, 1, 1], [], []>} : vector<32x32xbf16>, vector<32x256xbf16>, vector<32x256xf32> -> vector<32x256xf32>
    %44 = vector.broadcast %42 : vector<32x1xf32> to vector<32x256xf32>
    %45 = arith.addf %43, %44 : vector<32x256xf32>
    %cst_35 = arith.constant 0.000000e+00 : f32
    %46 = vector.broadcast %cst_35 : f32 to vector<32x256xf32>
    %47 = arith.maximumf %45, %46 : vector<32x256xf32>
    %48 = arith.truncf %47 : vector<32x256xf32> to vector<32x256xbf16>
    %c0_36 = arith.constant 0 : index
    %c0_37 = arith.constant 0 : index
    %49 = vector.load %arg14[%c0_36, %c0_37] : memref<32x32xbf16, #tpu.memory_space<vmem>>, vector<32x32xbf16>
    %c0_38 = arith.constant 0 : index
    %c0_39 = arith.constant 0 : index
    %50 = vector.load %arg15[%c0_38, %c0_39] : memref<32x1xf32, #tpu.memory_space<vmem>>, vector<32x1xf32>
    %cst_40 = arith.constant dense<0.000000e+00> : vector<32x256xf32>
    %51 = tpu.matmul %49, %48, %cst_40 {dimension_numbers = #tpu.dot_dimension_numbers<[1], [0], [0], [1], [0, 0, 1, 1], [], []>} : vector<32x32xbf16>, vector<32x256xbf16>, vector<32x256xf32> -> vector<32x256xf32>
    %52 = vector.broadcast %50 : vector<32x1xf32> to vector<32x256xf32>
    %53 = arith.addf %51, %52 : vector<32x256xf32>
    %cst_41 = arith.constant 0.000000e+00 : f32
    %54 = vector.broadcast %cst_41 : f32 to vector<32x256xf32>
    %55 = arith.maximumf %53, %54 : vector<32x256xf32>
    %56 = arith.truncf %55 : vector<32x256xf32> to vector<32x256xbf16>
    %c0_42 = arith.constant 0 : index
    %c0_43 = arith.constant 0 : index
    %57 = vector.load %arg16[%c0_42, %c0_43] : memref<32x32xbf16, #tpu.memory_space<vmem>>, vector<32x32xbf16>
    %c0_44 = arith.constant 0 : index
    %c0_45 = arith.constant 0 : index
    %58 = vector.load %arg17[%c0_44, %c0_45] : memref<32x1xf32, #tpu.memory_space<vmem>>, vector<32x1xf32>
    %cst_46 = arith.constant dense<0.000000e+00> : vector<32x256xf32>
    %59 = tpu.matmul %57, %56, %cst_46 {dimension_numbers = #tpu.dot_dimension_numbers<[1], [0], [0], [1], [0, 0, 1, 1], [], []>} : vector<32x32xbf16>, vector<32x256xbf16>, vector<32x256xf32> -> vector<32x256xf32>
    %60 = vector.broadcast %58 : vector<32x1xf32> to vector<32x256xf32>
    %61 = arith.addf %59, %60 : vector<32x256xf32>
    %cst_47 = arith.constant 0.000000e+00 : f32
    %62 = vector.broadcast %cst_47 : f32 to vector<32x256xf32>
    %63 = arith.maximumf %61, %62 : vector<32x256xf32>
    %64 = arith.truncf %63 : vector<32x256xf32> to vector<32x256xbf16>
    %c0_48 = arith.constant 0 : index
    %c0_49 = arith.constant 0 : index
    %65 = vector.load %arg18[%c0_48, %c0_49] : memref<8x32xbf16, #tpu.memory_space<vmem>>, vector<8x32xbf16>
    %c0_50 = arith.constant 0 : index
    %c0_51 = arith.constant 0 : index
    %66 = vector.load %arg19[%c0_50, %c0_51] : memref<8x1xf32, #tpu.memory_space<vmem>>, vector<8x1xf32>
    %cst_52 = arith.constant dense<0.000000e+00> : vector<8x256xf32>
    %67 = tpu.matmul %65, %64, %cst_52 {dimension_numbers = #tpu.dot_dimension_numbers<[1], [0], [0], [1], [0, 0, 1, 1], [], []>} : vector<8x32xbf16>, vector<32x256xbf16>, vector<8x256xf32> -> vector<8x256xf32>
    %68 = vector.broadcast %66 : vector<8x1xf32> to vector<8x256xf32>
    %69 = arith.addf %67, %68 : vector<8x256xf32>
    %c0_53 = arith.constant 0 : index
    %c0_54 = arith.constant 0 : index
    %70 = vector.load %arg20[%c0_53, %c0_54] : memref<8x256xf32, #tpu.memory_space<vmem>>, vector<8x256xf32>
    tpu.vector_store %arg20[%c0_53, %c0_54], %69 {strides = array<i32>} : memref<8x256xf32, #tpu.memory_space<vmem>>, vector<8x256xf32>,
    return
  }
  func.func @transform_0(%arg0: i32) -> (i32, i32) {
    %c0_i32 = arith.constant 0 : i32
    %c0_i32_0 = arith.constant 0 : i32
    return %c0_i32, %arg0 : i32, i32
  }
  func.func @transform_1(%arg0: i32) -> (i32, i32) {
    %c0_i32 = arith.constant 0 : i32
    %c0_i32_0 = arith.constant 0 : i32
    %c0_i32_1 = arith.constant 0 : i32
    return %c0_i32, %c0_i32_0 : i32, i32
  }
  func.func @transform_2(%arg0: i32) -> (i32, i32) {
    %c0_i32 = arith.constant 0 : i32
    %c0_i32_0 = arith.constant 0 : i32
    %c0_i32_1 = arith.constant 0 : i32
    return %c0_i32, %c0_i32_0 : i32, i32
  }
  func.func @transform_3(%arg0: i32) -> (i32, i32) {
    %c0_i32 = arith.constant 0 : i32
    %c0_i32_0 = arith.constant 0 : i32
    %c0_i32_1 = arith.constant 0 : i32
    return %c0_i32, %c0_i32_0 : i32, i32
  }
  func.func @transform_4(%arg0: i32) -> (i32, i32) {
    %c0_i32 = arith.constant 0 : i32
    %c0_i32_0 = arith.constant 0 : i32
    %c0_i32_1 = arith.constant 0 : i32
    return %c0_i32, %c0_i32_0 : i32, i32
  }
  func.func @transform_5(%arg0: i32) -> (i32, i32) {
    %c0_i32 = arith.constant 0 : i32
    %c0_i32_0 = arith.constant 0 : i32
    %c0_i32_1 = arith.constant 0 : i32
    return %c0_i32, %c0_i32_0 : i32, i32
  }
  func.func @transform_6(%arg0: i32) -> (i32, i32) {
    %c0_i32 = arith.constant 0 : i32
    %c0_i32_0 = arith.constant 0 : i32
    %c0_i32_1 = arith.constant 0 : i32
    return %c0_i32, %c0_i32_0 : i32, i32
  }
  func.func @transform_7(%arg0: i32) -> (i32, i32) {
    %c0_i32 = arith.constant 0 : i32
    %c0_i32_0 = arith.constant 0 : i32
    %c0_i32_1 = arith.constant 0 : i32
    return %c0_i32, %c0_i32_0 : i32, i32
  }
  func.func @transform_8(%arg0: i32) -> (i32, i32) {
    %c0_i32 = arith.constant 0 : i32
    %c0_i32_0 = arith.constant 0 : i32
    %c0_i32_1 = arith.constant 0 : i32
    return %c0_i32, %c0_i32_0 : i32, i32
  }
  func.func @transform_9(%arg0: i32) -> (i32, i32) {
    %c0_i32 = arith.constant 0 : i32
    %c0_i32_0 = arith.constant 0 : i32
    %c0_i32_1 = arith.constant 0 : i32
    return %c0_i32, %c0_i32_0 : i32, i32
  }
  func.func @transform_10(%arg0: i32) -> (i32, i32) {
    %c0_i32 = arith.constant 0 : i32
    %c0_i32_0 = arith.constant 0 : i32
    %c0_i32_1 = arith.constant 0 : i32
    return %c0_i32, %c0_i32_0 : i32, i32
  }
  func.func @transform_11(%arg0: i32) -> (i32, i32) {
    %c0_i32 = arith.constant 0 : i32
    %c0_i32_0 = arith.constant 0 : i32
    %c0_i32_1 = arith.constant 0 : i32
    return %c0_i32, %c0_i32_0 : i32, i32
  }
  func.func @transform_12(%arg0: i32) -> (i32, i32) {
    %c0_i32 = arith.constant 0 : i32
    %c0_i32_0 = arith.constant 0 : i32
    %c0_i32_1 = arith.constant 0 : i32
    return %c0_i32, %c0_i32_0 : i32, i32
  }
  func.func @transform_13(%arg0: i32) -> (i32, i32) {
    %c0_i32 = arith.constant 0 : i32
    %c0_i32_0 = arith.constant 0 : i32
    %c0_i32_1 = arith.constant 0 : i32
    return %c0_i32, %c0_i32_0 : i32, i32
  }
  func.func @transform_14(%arg0: i32) -> (i32, i32) {
    %c0_i32 = arith.constant 0 : i32
    %c0_i32_0 = arith.constant 0 : i32
    %c0_i32_1 = arith.constant 0 : i32
    return %c0_i32, %c0_i32_0 : i32, i32
  }
  func.func @transform_15(%arg0: i32) -> (i32, i32) {
    %c0_i32 = arith.constant 0 : i32
    %c0_i32_0 = arith.constant 0 : i32
    %c0_i32_1 = arith.constant 0 : i32
    return %c0_i32, %c0_i32_0 : i32, i32
  }
  func.func @transform_16(%arg0: i32) -> (i32, i32) {
    %c0_i32 = arith.constant 0 : i32
    %c0_i32_0 = arith.constant 0 : i32
    %c0_i32_1 = arith.constant 0 : i32
    return %c0_i32, %c0_i32_0 : i32, i32
  }
  func.func @transform_17(%arg0: i32) -> (i32, i32) {
    %c0_i32 = arith.constant 0 : i32
    %c0_i32_0 = arith.constant 0 : i32
    %c0_i32_1 = arith.constant 0 : i32
    return %c0_i32, %c0_i32_0 : i32, i32
  }
  func.func @transform_18(%arg0: i32) -> (i32, i32) {
    %c0_i32 = arith.constant 0 : i32
    %c0_i32_0 = arith.constant 0 : i32
    %c0_i32_1 = arith.constant 0 : i32
    return %c0_i32, %c0_i32_0 : i32, i32
  }
  func.func @transform_19(%arg0: i32) -> (i32, i32) {
    %c0_i32 = arith.constant 0 : i32
    %c0_i32_0 = arith.constant 0 : i32
    return %c0_i32, %arg0 : i32, i32
  }
}

</mosaic_0001>

<llo_original>
// kernel: softmax_classifier_forward.1
$region0: #{softmax_classifier_forward.1}
  #allocation0 [shape = 'u32[]', space=smem, size = 0x4, offset = 0x4, fixed_abs, tag = 'smem constant byte address 0x4 - core index']
  #allocation1 [shape = 'u32[144,128]{1,0:T(1,128)}', space=vmem, size = 0x12000, scoped, tag = 'internal scratch']
  %s0 = inlined_call_operand.vmem [shape: bf16[16,512], index: 0, kind: input, shape index: {}]
  %s1 = inlined_call_operand.vmem [shape: bf16[512,16], index: 1, kind: input, shape index: {}]
  %s2 = inlined_call_operand.vmem [shape: f32[512,1], index: 2, kind: input, shape index: {}]
  %s3 = inlined_call_operand.vmem [shape: bf16[256,512], index: 3, kind: input, shape index: {}]
  %s4 = inlined_call_operand.vmem [shape: f32[256,1], index: 4, kind: input, shape index: {}]
  %s5 = inlined_call_operand.vmem [shape: bf16[128,256], index: 5, kind: input, shape index: {}]
  %s6 = inlined_call_operand.vmem [shape: f32[128,1], index: 6, kind: input, shape index: {}]
  %s7 = inlined_call_operand.vmem [shape: bf16[64,128], index: 7, kind: input, shape index: {}]
  %s8 = inlined_call_operand.vmem [shape: f32[64,1], index: 8, kind: input, shape index: {}]
  %s9 = inlined_call_operand.vmem [shape: bf16[32,64], index: 9, kind: input, shape index: {}]
  %s10 = inlined_call_operand.vmem [shape: f32[32,1], index: 10, kind: input, shape index: {}]
  %s11 = inlined_call_operand.vmem [shape: bf16[32,32], index: 11, kind: input, shape index: {}]
  %s12 = inlined_call_operand.vmem [shape: f32[32,1], index: 12, kind: input, shape index: {}]
  %s13 = inlined_call_operand.vmem [shape: bf16[32,32], index: 13, kind: input, shape index: {}]
  %s14 = inlined_call_operand.vmem [shape: f32[32,1], index: 14, kind: input, shape index: {}]
  %s15 = inlined_call_operand.vmem [shape: bf16[32,32], index: 15, kind: input, shape index: {}]
  %s16 = inlined_call_operand.vmem [shape: f32[32,1], index: 16, kind: input, shape index: {}]
  %s17 = inlined_call_operand.vmem [shape: bf16[8,32], index: 17, kind: input, shape index: {}]
  %s18 = inlined_call_operand.vmem [shape: f32[8,1], index: 18, kind: input, shape index: {}]
  %s19 = inlined_call_operand.vmem [shape: f32[8,512], index: 19, kind: output, shape index: {}]
  %s20 = sld [smem:[#allocation0]]
  $region147: #{softmax_classifier_forward.1} parent=0
    _
  %s22 = ssub.s32 1, %s20
  %s23 = scalar_select 0, %s22, %s20
  $region1: #{softmax_classifier_forward.1} parent=0
    #allocation2 [shape = 'u8[16384]{0}', space=vmem, size = 0x4000, scoped, tag = 'input window, operand 0']
    loop: start=0, step=1, limit=4
    $region2: #{softmax_classifier_forward.1} parent=1 // loop_pre_header
      _
    $region3: #{softmax_classifier_forward.1} parent=1 // loop_header
      %s25 = sphi 0, %s29
      %p26 = scmp.ge.s32.totalorder %s25, 4
      %s35 = sphi 0, %s37
      %s38 = sphi 0, %s35
      %s39 = sphi 0, %s38
      %s55 = sphi 0, %s39
      %s59 = sphi 0, %s59
      %s61 = sphi 0, %s59
      %s62 = sphi 0, %s61
      %s76 = sphi 0, %s62
      %s80 = sphi 0, %s80
      %s82 = sphi 0, %s80
      %s83 = sphi 0, %s82
      %s97 = sphi 0, %s83
      %s101 = sphi 0, %s101
      %s103 = sphi 0, %s101
      %s104 = sphi 0, %s103
      %s118 = sphi 0, %s104
      %s122 = sphi 0, %s122
      %s124 = sphi 0, %s122
      %s125 = sphi 0, %s124
      %s139 = sphi 0, %s125
      %s143 = sphi 0, %s143
      %s145 = sphi 0, %s143
      %s146 = sphi 0, %s145
      %s160 = sphi 0, %s146
      %s164 = sphi 0, %s164
      %s166 = sphi 0, %s164
      %s167 = sphi 0, %s166
      %s181 = sphi 0, %s167
      %s185 = sphi 0, %s185
      %s187 = sphi 0, %s185
      %s188 = sphi 0, %s187
      %s202 = sphi 0, %s188
      %s206 = sphi 0, %s206
      %s208 = sphi 0, %s206
      %s209 = sphi 0, %s208
      %s223 = sphi 0, %s209
      %s227 = sphi 0, %s227
      %s229 = sphi 0, %s227
      %s230 = sphi 0, %s229
      %s244 = sphi 0, %s230
      %s248 = sphi 0, %s248
      %s250 = sphi 0, %s248
      %s251 = sphi 0, %s250
      %s265 = sphi 0, %s251
      %s269 = sphi 0, %s269
      %s271 = sphi 0, %s269
      %s272 = sphi 0, %s271
      %s286 = sphi 0, %s272
      %s290 = sphi 0, %s290
      %s292 = sphi 0, %s290
      %s293 = sphi 0, %s292
      %s307 = sphi 0, %s293
      %s311 = sphi 0, %s311
      %s313 = sphi 0, %s311
      %s314 = sphi 0, %s313
      %s328 = sphi 0, %s314
      %s332 = sphi 0, %s332
      %s334 = sphi 0, %s332
      %s335 = sphi 0, %s334
      %s349 = sphi 0, %s335
      %s353 = sphi 0, %s353
      %s355 = sphi 0, %s353
      %s356 = sphi 0, %s355
      %s370 = sphi 0, %s356
      %s374 = sphi 0, %s374
      %s376 = sphi 0, %s374
      %s377 = sphi 0, %s376
      %s391 = sphi 0, %s377
      %s395 = sphi 0, %s395
      %s397 = sphi 0, %s395
      %s398 = sphi 0, %s397
      %s412 = sphi 0, %s398
      %s416 = sphi 0, %s416
      %s418 = sphi 0, %s416
      %s419 = sphi 0, %s418
      %s433 = sphi 0, %s419
      %s439 = sphi 0, %s441
      %s442 = sphi 0, %s439
      %s443 = sphi 0, %s442
      %s459 = sphi 0, %s443
    $region4: #{softmax_classifier_forward.1} parent=1 // loop_header_branch
      %28 = sbr.rel (%p26) target = $region8
    $region5: #{softmax_classifier_forward.1} parent=1 // loop_body
      %s30 = ssub.s32 %s25, 1
      %s31 = ssub.s32 %s25, 2
      %s32 = sadd.s32 %s25, 1
      %s33 = ssub.s32 %s25, %s32
      %p34 = scmp.eq.s32.totalorder %s33, 0
      %s36 = sadd.s32 %s35, 1
      %s37 = scalar_select %p34, %s35, %s36
      %p40 = pneg %p34
      %p41 = scmp.eq.s32.totalorder %s25, 1
      %p42 = por %p40, %p41
      %p43 = scmp.ne.s32.totalorder %s35, %s38
      %p44 = scmp.eq.s32.totalorder %s25, 0
      %p45 = por %p43, %p44
      %p46 = scmp.ne.s32.totalorder %s35, %s38
      %p47 = scmp.eq.s32.totalorder %s30, 1
      %p48 = por %p46, %p47
      %p49 = scmp.ne.s32.totalorder %s38, %s39
      %p50 = scmp.eq.s32.totalorder %s30, 0
      %p51 = por %p49, %p50
      %p52 = scmp.ne.s32.totalorder %s38, %s39
      %p53 = scmp.eq.s32.totalorder %s31, 1
      %p54 = por %p52, %p53
      %p56 = scmp.ne.s32.totalorder %s39, %s55
      %p57 = scmp.eq.s32.totalorder %s31, 0
      %p58 = por %p56, %p57
      %s60 = sadd.s32 %s59, 1
      %p63 = scmp.eq.s32.totalorder %s25, 1
      %p64 = scmp.ne.s32.totalorder %s59, %s61
      %p65 = scmp.eq.s32.totalorder %s25, 0
      %p66 = por %p64, %p65
      %p67 = scmp.ne.s32.totalorder %s59, %s61
      %p68 = scmp.eq.s32.totalorder %s30, 1
      %p69 = por %p67, %p68
      %p70 = scmp.ne.s32.totalorder %s61, %s62
      %p71 = scmp.eq.s32.totalorder %s30, 0
      %p72 = por %p70, %p71
      %p73 = scmp.ne.s32.totalorder %s61, %s62
      %p74 = scmp.eq.s32.totalorder %s31, 1
      %p75 = por %p73, %p74
      %p77 = scmp.ne.s32.totalorder %s62, %s76
      %p78 = scmp.eq.s32.totalorder %s31, 0
      %p79 = por %p77, %p78
      %s81 = sadd.s32 %s80, 1
      %p84 = scmp.eq.s32.totalorder %s25, 1
      %p85 = scmp.ne.s32.totalorder %s80, %s82
      %p86 = scmp.eq.s32.totalorder %s25, 0
      %p87 = por %p85, %p86
      %p88 = scmp.ne.s32.totalorder %s80, %s82
      %p89 = scmp.eq.s32.totalorder %s30, 1
      %p90 = por %p88, %p89
      %p91 = scmp.ne.s32.totalorder %s82, %s83
      %p92 = scmp.eq.s32.totalorder %s30, 0
      %p93 = por %p91, %p92
      %p94 = scmp.ne.s32.totalorder %s82, %s83
      %p95 = scmp.eq.s32.totalorder %s31, 1
      %p96 = por %p94, %p95
      %p98 = scmp.ne.s32.totalorder %s83, %s97
      %p99 = scmp.eq.s32.totalorder %s31, 0
      %p100 = por %p98, %p99
      %s102 = sadd.s32 %s101, 1
      %p105 = scmp.eq.s32.totalorder %s25, 1
      %p106 = scmp.ne.s32.totalorder %s101, %s103
      %p107 = scmp.eq.s32.totalorder %s25, 0
      %p108 = por %p106, %p107
      %p109 = scmp.ne.s32.totalorder %s101, %s103
      %p110 = scmp.eq.s32.totalorder %s30, 1
      %p111 = por %p109, %p110
      %p112 = scmp.ne.s32.totalorder %s103, %s104
      %p113 = scmp.eq.s32.totalorder %s30, 0
      %p114 = por %p112, %p113
      %p115 = scmp.ne.s32.totalorder %s103, %s104
      %p116 = scmp.eq.s32.totalorder %s31, 1
      %p117 = por %p115, %p116
      %p119 = scmp.ne.s32.totalorder %s104, %s118
      %p120 = scmp.eq.s32.totalorder %s31, 0
      %p121 = por %p119, %p120
      %s123 = sadd.s32 %s122, 1
      %p126 = scmp.eq.s32.totalorder %s25, 1
      %p127 = scmp.ne.s32.totalorder %s122, %s124
      %p128 = scmp.eq.s32.totalorder %s25, 0
      %p129 = por %p127, %p128
      %p130 = scmp.ne.s32.totalorder %s122, %s124
      %p131 = scmp.eq.s32.totalorder %s30, 1
      %p132 = por %p130, %p131
      %p133 = scmp.ne.s32.totalorder %s124, %s125
      %p134 = scmp.eq.s32.totalorder %s30, 0
      %p135 = por %p133, %p134
      %p136 = scmp.ne.s32.totalorder %s124, %s125
      %p137 = scmp.eq.s32.totalorder %s31, 1
      %p138 = por %p136, %p137
      %p140 = scmp.ne.s32.totalorder %s125, %s139
      %p141 = scmp.eq.s32.totalorder %s31, 0
      %p142 = por %p140, %p141
      %s144 = sadd.s32 %s143, 1
      %p147 = scmp.eq.s32.totalorder %s25, 1
      %p148 = scmp.ne.s32.totalorder %s143, %s145
      %p149 = scmp.eq.s32.totalorder %s25, 0
      %p150 = por %p148, %p149
      %p151 = scmp.ne.s32.totalorder %s143, %s145
      %p152 = scmp.eq.s32.totalorder %s30, 1
      %p153 = por %p151, %p152
      %p154 = scmp.ne.s32.totalorder %s145, %s146
      %p155 = scmp.eq.s32.totalorder %s30, 0
      %p156 = por %p154, %p155
      %p157 = scmp.ne.s32.totalorder %s145, %s146
      %p158 = scmp.eq.s32.totalorder %s31, 1
      %p159 = por %p157, %p158
      %p161 = scmp.ne.s32.totalorder %s146, %s160
      %p162 = scmp.eq.s32.totalorder %s31, 0
      %p163 = por %p161, %p162
      %s165 = sadd.s32 %s164, 1
      %p168 = scmp.eq.s32.totalorder %s25, 1
      %p169 = scmp.ne.s32.totalorder %s164, %s166
      %p170 = scmp.eq.s32.totalorder %s25, 0
      %p171 = por %p169, %p170
      %p172 = scmp.ne.s32.totalorder %s164, %s166
      %p173 = scmp.eq.s32.totalorder %s30, 1
      %p174 = por %p172, %p173
      %p175 = scmp.ne.s32.totalorder %s166, %s167
      %p176 = scmp.eq.s32.totalorder %s30, 0
      %p177 = por %p175, %p176
      %p178 = scmp.ne.s32.totalorder %s166, %s167
      %p179 = scmp.eq.s32.totalorder %s31, 1
      %p180 = por %p178, %p179
      %p182 = scmp.ne.s32.totalorder %s167, %s181
      %p183 = scmp.eq.s32.totalorder %s31, 0
      %p184 = por %p182, %p183
      %s186 = sadd.s32 %s185, 1
      %p189 = scmp.eq.s32.totalorder %s25, 1
      %p190 = scmp.ne.s32.totalorder %s185, %s187
      %p191 = scmp.eq.s32.totalorder %s25, 0
      %p192 = por %p190, %p191
      %p193 = scmp.ne.s32.totalorder %s185, %s187
      %p194 = scmp.eq.s32.totalorder %s30, 1
      %p195 = por %p193, %p194
      %p196 = scmp.ne.s32.totalorder %s187, %s188
      %p197 = scmp.eq.s32.totalorder %s30, 0
      %p198 = por %p196, %p197
      %p199 = scmp.ne.s32.totalorder %s187, %s188
      %p200 = scmp.eq.s32.totalorder %s31, 1
      %p201 = por %p199, %p200
      %p203 = scmp.ne.s32.totalorder %s188, %s202
      %p204 = scmp.eq.s32.totalorder %s31, 0
      %p205 = por %p203, %p204
      %s207 = sadd.s32 %s206, 1
      %p210 = scmp.eq.s32.totalorder %s25, 1
      %p211 = scmp.ne.s32.totalorder %s206, %s208
      %p212 = scmp.eq.s32.totalorder %s25, 0
      %p213 = por %p211, %p212
      %p214 = scmp.ne.s32.totalorder %s206, %s208
      %p215 = scmp.eq.s32.totalorder %s30, 1
      %p216 = por %p214, %p215
      %p217 = scmp.ne.s32.totalorder %s208, %s209
      %p218 = scmp.eq.s32.totalorder %s30, 0
      %p219 = por %p217, %p218
      %p220 = scmp.ne.s32.totalorder %s208, %s209
      %p221 = scmp.eq.s32.totalorder %s31, 1
      %p222 = por %p220, %p221
      %p224 = scmp.ne.s32.totalorder %s209, %s223
      %p225 = scmp.eq.s32.totalorder %s31, 0
      %p226 = por %p224, %p225
      %s228 = sadd.s32 %s227, 1
      %p231 = scmp.eq.s32.totalorder %s25, 1
      %p232 = scmp.ne.s32.totalorder %s227, %s229
      %p233 = scmp.eq.s32.totalorder %s25, 0
      %p234 = por %p232, %p233
      %p235 = scmp.ne.s32.totalorder %s227, %s229
      %p236 = scmp.eq.s32.totalorder %s30, 1
      %p237 = por %p235, %p236
      %p238 = scmp.ne.s32.totalorder %s229, %s230
      %p239 = scmp.eq.s32.totalorder %s30, 0
      %p240 = por %p238, %p239
      %p241 = scmp.ne.s32.totalorder %s229, %s230
      %p242 = scmp.eq.s32.totalorder %s31, 1
      %p243 = por %p241, %p242
      %p245 = scmp.ne.s32.totalorder %s230, %s244
      %p246 = scmp.eq.s32.totalorder %s31, 0
      %p247 = por %p245, %p246
      %s249 = sadd.s32 %s248, 1
      %p252 = scmp.eq.s32.totalorder %s25, 1
      %p253 = scmp.ne.s32.totalorder %s248, %s250
      %p254 = scmp.eq.s32.totalorder %s25, 0
      %p255 = por %p253, %p254
      %p256 = scmp.ne.s32.totalorder %s248, %s250
      %p257 = scmp.eq.s32.totalorder %s30, 1
      %p258 = por %p256, %p257
      %p259 = scmp.ne.s32.totalorder %s250, %s251
      %p260 = scmp.eq.s32.totalorder %s30, 0
      %p261 = por %p259, %p260
      %p262 = scmp.ne.s32.totalorder %s250, %s251
      %p263 = scmp.eq.s32.totalorder %s31, 1
      %p264 = por %p262, %p263
      %p266 = scmp.ne.s32.totalorder %s251, %s265
      %p267 = scmp.eq.s32.totalorder %s31, 0
      %p268 = por %p266, %p267
      %s270 = sadd.s32 %s269, 1
      %p273 = scmp.eq.s32.totalorder %s25, 1
      %p274 = scmp.ne.s32.totalorder %s269, %s271
      %p275 = scmp.eq.s32.totalorder %s25, 0
      %p276 = por %p274, %p275
      %p277 = scmp.ne.s32.totalorder %s269, %s271
      %p278 = scmp.eq.s32.totalorder %s30, 1
      %p279 = por %p277, %p278
      %p280 = scmp.ne.s32.totalorder %s271, %s272
      %p281 = scmp.eq.s32.totalorder %s30, 0
      %p282 = por %p280, %p281
      %p283 = scmp.ne.s32.totalorder %s271, %s272
      %p284 = scmp.eq.s32.totalorder %s31, 1
      %p285 = por %p283, %p284
      %p287 = scmp.ne.s32.totalorder %s272, %s286
      %p288 = scmp.eq.s32.totalorder %s31, 0
      %p289 = por %p287, %p288
      %s291 = sadd.s32 %s290, 1
      %p294 = scmp.eq.s32.totalorder %s25, 1
      %p295 = scmp.ne.s32.totalorder %s290, %s292
      %p296 = scmp.eq.s32.totalorder %s25, 0
      %p297 = por %p295, %p296
      %p298 = scmp.ne.s32.totalorder %s290, %s292
      %p299 = scmp.eq.s32.totalorder %s30, 1
      %p300 = por %p298, %p299
      %p301 = scmp.ne.s32.totalorder %s292, %s293
      %p302 = scmp.eq.s32.totalorder %s30, 0
      %p303 = por %p301, %p302
      %p304 = scmp.ne.s32.totalorder %s292, %s293
      %p305 = scmp.eq.s32.totalorder %s31, 1
      %p306 = por %p304, %p305
      %p308 = scmp.ne.s32.totalorder %s293, %s307
      %p309 = scmp.eq.s32.totalorder %s31, 0
      %p310 = por %p308, %p309
      %s312 = sadd.s32 %s311, 1
      %p315 = scmp.eq.s32.totalorder %s25, 1
      %p316 = scmp.ne.s32.totalorder %s311, %s313
      %p317 = scmp.eq.s32.totalorder %s25, 0
      %p318 = por %p316, %p317
      %p319 = scmp.ne.s32.totalorder %s311, %s313
      %p320 = scmp.eq.s32.totalorder %s30, 1
      %p321 = por %p319, %p320
      %p322 = scmp.ne.s32.totalorder %s313, %s314
      %p323 = scmp.eq.s32.totalorder %s30, 0
      %p324 = por %p322, %p323
      %p325 = scmp.ne.s32.totalorder %s313, %s314
      %p326 = scmp.eq.s32.totalorder %s31, 1
      %p327 = por %p325, %p326
      %p329 = scmp.ne.s32.totalorder %s314, %s328
      %p330 = scmp.eq.s32.totalorder %s31, 0
      %p331 = por %p329, %p330
      %s333 = sadd.s32 %s332, 1
      %p336 = scmp.eq.s32.totalorder %s25, 1
      %p337 = scmp.ne.s32.totalorder %s332, %s334
      %p338 = scmp.eq.s32.totalorder %s25, 0
      %p339 = por %p337, %p338
      %p340 = scmp.ne.s32.totalorder %s332, %s334
      %p341 = scmp.eq.s32.totalorder %s30, 1
      %p342 = por %p340, %p341
      %p343 = scmp.ne.s32.totalorder %s334, %s335
      %p344 = scmp.eq.s32.totalorder %s30, 0
      %p345 = por %p343, %p344
      %p346 = scmp.ne.s32.totalorder %s334, %s335
      %p347 = scmp.eq.s32.totalorder %s31, 1
      %p348 = por %p346, %p347
      %p350 = scmp.ne.s32.totalorder %s335, %s349
      %p351 = scmp.eq.s32.totalorder %s31, 0
      %p352 = por %p350, %p351
      %s354 = sadd.s32 %s353, 1
      %p357 = scmp.eq.s32.totalorder %s25, 1
      %p358 = scmp.ne.s32.totalorder %s353, %s355
      %p359 = scmp.eq.s32.totalorder %s25, 0
      %p360 = por %p358, %p359
      %p361 = scmp.ne.s32.totalorder %s353, %s355
      %p362 = scmp.eq.s32.totalorder %s30, 1
      %p363 = por %p361, %p362
      %p364 = scmp.ne.s32.totalorder %s355, %s356
      %p365 = scmp.eq.s32.totalorder %s30, 0
      %p366 = por %p364, %p365
      %p367 = scmp.ne.s32.totalorder %s355, %s356
      %p368 = scmp.eq.s32.totalorder %s31, 1
      %p369 = por %p367, %p368
      %p371 = scmp.ne.s32.totalorder %s356, %s370
      %p372 = scmp.eq.s32.totalorder %s31, 0
      %p373 = por %p371, %p372
      %s375 = sadd.s32 %s374, 1
      %p378 = scmp.eq.s32.totalorder %s25, 1
      %p379 = scmp.ne.s32.totalorder %s374, %s376
      %p380 = scmp.eq.s32.totalorder %s25, 0
      %p381 = por %p379, %p380
      %p382 = scmp.ne.s32.totalorder %s374, %s376
      %p383 = scmp.eq.s32.totalorder %s30, 1
      %p384 = por %p382, %p383
      %p385 = scmp.ne.s32.totalorder %s376, %s377
      %p386 = scmp.eq.s32.totalorder %s30, 0
      %p387 = por %p385, %p386
      %p388 = scmp.ne.s32.totalorder %s376, %s377
      %p389 = scmp.eq.s32.totalorder %s31, 1
      %p390 = por %p388, %p389
      %p392 = scmp.ne.s32.totalorder %s377, %s391
      %p393 = scmp.eq.s32.totalorder %s31, 0
      %p394 = por %p392, %p393
      %s396 = sadd.s32 %s395, 1
      %p399 = scmp.eq.s32.totalorder %s25, 1
      %p400 = scmp.ne.s32.totalorder %s395, %s397
      %p401 = scmp.eq.s32.totalorder %s25, 0
      %p402 = por %p400, %p401
      %p403 = scmp.ne.s32.totalorder %s395, %s397
      %p404 = scmp.eq.s32.totalorder %s30, 1
      %p405 = por %p403, %p404
      %p406 = scmp.ne.s32.totalorder %s397, %s398
      %p407 = scmp.eq.s32.totalorder %s30, 0
      %p408 = por %p406, %p407
      %p409 = scmp.ne.s32.totalorder %s397, %s398
      %p410 = scmp.eq.s32.totalorder %s31, 1
      %p411 = por %p409, %p410
      %p413 = scmp.ne.s32.totalorder %s398, %s412
      %p414 = scmp.eq.s32.totalorder %s31, 0
      %p415 = por %p413, %p414
      %s417 = sadd.s32 %s416, 1
      %p420 = scmp.eq.s32.totalorder %s25, 1
      %p421 = scmp.ne.s32.totalorder %s416, %s418
      %p422 = scmp.eq.s32.totalorder %s25, 0
      %p423 = por %p421, %p422
      %p424 = scmp.ne.s32.totalorder %s416, %s418
      %p425 = scmp.eq.s32.totalorder %s30, 1
      %p426 = por %p424, %p425
      %p427 = scmp.ne.s32.totalorder %s418, %s419
      %p428 = scmp.eq.s32.totalorder %s30, 0
      %p429 = por %p427, %p428
      %p430 = scmp.ne.s32.totalorder %s418, %s419
      %p431 = scmp.eq.s32.totalorder %s31, 1
      %p432 = por %p430, %p431
      %p434 = scmp.ne.s32.totalorder %s419, %s433
      %p435 = scmp.eq.s32.totalorder %s31, 0
      %p436 = por %p434, %p435
      %s437 = ssub.s32 %s25, %s32
      %p438 = scmp.eq.s32.totalorder %s437, 0
      %s440 = sadd.s32 %s439, 1
      %s441 = scalar_select %p438, %s439, %s440
      %p444 = pneg %p438
      %p445 = scmp.eq.s32.totalorder %s25, 1
      %p446 = por %p444, %p445
      %p447 = scmp.ne.s32.totalorder %s439, %s442
      %p448 = scmp.eq.s32.totalorder %s25, 0
      %p449 = por %p447, %p448
      %p450 = scmp.ne.s32.totalorder %s439, %s442
      %p451 = scmp.eq.s32.totalorder %s30, 1
      %p452 = por %p450, %p451
      %p453 = scmp.ne.s32.totalorder %s442, %s443
      %p454 = scmp.eq.s32.totalorder %s30, 0
      %p455 = por %p453, %p454
      %p456 = scmp.ne.s32.totalorder %s442, %s443
      %p457 = scmp.eq.s32.totalorder %s31, 1
      %p458 = por %p456, %p457
      %p460 = scmp.ne.s32.totalorder %s443, %s459
      %p461 = scmp.eq.s32.totalorder %s31, 0
      %p462 = por %p460, %p461
      %p463 = scmp.le.s32.totalorder 1, %s25
      %p464 = scmp.lt.s32.totalorder %s25, 3
      %p465 = pnand %p463, %p464
      %p466 = pneg %p465
      // Predicated region
      $region9: #{softmax_classifier_forward.1} parent=5 // pred_check
        _
      $region10: #{softmax_classifier_forward.1} parent=5 // pred_check_branch
        %468 = sbr.rel (%p465) target = $region12
      $region11: #{softmax_classifier_forward.1} parent=5 // pred_region
        %s469 = ssub.s32 %s25, 1
        // Predicated region
        $region13: #{softmax_classifier_forward.1} parent=11 // pred_check
          %p470 = pneg %p72
        $region14: #{softmax_classifier_forward.1} parent=11 // pred_check_branch
          %472 = sbr.rel (%p470) target = $region16
        $region15: #{softmax_classifier_forward.1} parent=11 // pred_region
          _
        $region16: #{softmax_classifier_forward.1} parent=11 // pred_fallthru
          _
        // Predicated region
        $region17: #{softmax_classifier_forward.1} parent=11 // pred_check
          %p473 = pneg %p93
        $region18: #{softmax_classifier_forward.1} parent=11 // pred_check_branch
          %475 = sbr.rel (%p473) target = $region20
        $region19: #{softmax_classifier_forward.1} parent=11 // pred_region
          _
        $region20: #{softmax_classifier_forward.1} parent=11 // pred_fallthru
          _
        // Predicated region
        $region21: #{softmax_classifier_forward.1} parent=11 // pred_check
          %p476 = pneg %p114
        $region22: #{softmax_classifier_forward.1} parent=11 // pred_check_branch
          %478 = sbr.rel (%p476) target = $region24
        $region23: #{softmax_classifier_forward.1} parent=11 // pred_region
          _
        $region24: #{softmax_classifier_forward.1} parent=11 // pred_fallthru
          _
        // Predicated region
        $region25: #{softmax_classifier_forward.1} parent=11 // pred_check
          %p479 = pneg %p135
        $region26: #{softmax_classifier_forward.1} parent=11 // pred_check_branch
          %481 = sbr.rel (%p479) target = $region28
        $region27: #{softmax_classifier_forward.1} parent=11 // pred_region
          _
        $region28: #{softmax_classifier_forward.1} parent=11 // pred_fallthru
          _
        // Predicated region
        $region29: #{softmax_classifier_forward.1} parent=11 // pred_check
          %p482 = pneg %p156
        $region30: #{softmax_classifier_forward.1} parent=11 // pred_check_branch
          %484 = sbr.rel (%p482) target = $region32
        $region31: #{softmax_classifier_forward.1} parent=11 // pred_region
          _
        $region32: #{softmax_classifier_forward.1} parent=11 // pred_fallthru
          _
        // Predicated region
        $region33: #{softmax_classifier_forward.1} parent=11 // pred_check
          %p485 = pneg %p177
        $region34: #{softmax_classifier_forward.1} parent=11 // pred_check_branch
          %487 = sbr.rel (%p485) target = $region36
        $region35: #{softmax_classifier_forward.1} parent=11 // pred_region
          _
        $region36: #{softmax_classifier_forward.1} parent=11 // pred_fallthru
          _
        // Predicated region
        $region37: #{softmax_classifier_forward.1} parent=11 // pred_check
          %p488 = pneg %p198
        $region38: #{softmax_classifier_forward.1} parent=11 // pred_check_branch
          %490 = sbr.rel (%p488) target = $region40
        $region39: #{softmax_classifier_forward.1} parent=11 // pred_region
          _
        $region40: #{softmax_classifier_forward.1} parent=11 // pred_fallthru
          _
        // Predicated region
        $region41: #{softmax_classifier_forward.1} parent=11 // pred_check
          %p491 = pneg %p219
        $region42: #{softmax_classifier_forward.1} parent=11 // pred_check_branch
          %493 = sbr.rel (%p491) target = $region44
        $region43: #{softmax_classifier_forward.1} parent=11 // pred_region
          _
        $region44: #{softmax_classifier_forward.1} parent=11 // pred_fallthru
          _
        // Predicated region
        $region45: #{softmax_classifier_forward.1} parent=11 // pred_check
          %p494 = pneg %p240
        $region46: #{softmax_classifier_forward.1} parent=11 // pred_check_branch
          %496 = sbr.rel (%p494) target = $region48
        $region47: #{softmax_classifier_forward.1} parent=11 // pred_region
          _
        $region48: #{softmax_classifier_forward.1} parent=11 // pred_fallthru
          _
        // Predicated region
        $region49: #{softmax_classifier_forward.1} parent=11 // pred_check
          %p497 = pneg %p261
        $region50: #{softmax_classifier_forward.1} parent=11 // pred_check_branch
          %499 = sbr.rel (%p497) target = $region52
        $region51: #{softmax_classifier_forward.1} parent=11 // pred_region
          _
        $region52: #{softmax_classifier_forward.1} parent=11 // pred_fallthru
          _
        // Predicated region
        $region53: #{softmax_classifier_forward.1} parent=11 // pred_check
          %p500 = pneg %p282
        $region54: #{softmax_classifier_forward.1} parent=11 // pred_check_branch
          %502 = sbr.rel (%p500) target = $region56
        $region55: #{softmax_classifier_forward.1} parent=11 // pred_region
          _
        $region56: #{softmax_classifier_forward.1} parent=11 // pred_fallthru
          _
        // Predicated region
        $region57: #{softmax_classifier_forward.1} parent=11 // pred_check
          %p503 = pneg %p303
        $region58: #{softmax_classifier_forward.1} parent=11 // pred_check_branch
          %505 = sbr.rel (%p503) target = $region60
        $region59: #{softmax_classifier_forward.1} parent=11 // pred_region
          _
        $region60: #{softmax_classifier_forward.1} parent=11 // pred_fallthru
          _
        // Predicated region
        $region61: #{softmax_classifier_forward.1} parent=11 // pred_check
          %p506 = pneg %p324
        $region62: #{softmax_classifier_forward.1} parent=11 // pred_check_branch
          %508 = sbr.rel (%p506) target = $region64
        $region63: #{softmax_classifier_forward.1} parent=11 // pred_region
          _
        $region64: #{softmax_classifier_forward.1} parent=11 // pred_fallthru
          _
        // Predicated region
        $region65: #{softmax_classifier_forward.1} parent=11 // pred_check
          %p509 = pneg %p345
        $region66: #{softmax_classifier_forward.1} parent=11 // pred_check_branch
          %511 = sbr.rel (%p509) target = $region68
        $region67: #{softmax_classifier_forward.1} parent=11 // pred_region
          _
        $region68: #{softmax_classifier_forward.1} parent=11 // pred_fallthru
          _
        // Predicated region
        $region69: #{softmax_classifier_forward.1} parent=11 // pred_check
          %p512 = pneg %p366
        $region70: #{softmax_classifier_forward.1} parent=11 // pred_check_branch
          %514 = sbr.rel (%p512) target = $region72
        $region71: #{softmax_classifier_forward.1} parent=11 // pred_region
          _
        $region72: #{softmax_classifier_forward.1} parent=11 // pred_fallthru
          _
        // Predicated region
        $region73: #{softmax_classifier_forward.1} parent=11 // pred_check
          %p515 = pneg %p387
        $region74: #{softmax_classifier_forward.1} parent=11 // pred_check_branch
          %517 = sbr.rel (%p515) target = $region76
        $region75: #{softmax_classifier_forward.1} parent=11 // pred_region
          _
        $region76: #{softmax_classifier_forward.1} parent=11 // pred_fallthru
          _
        // Predicated region
        $region77: #{softmax_classifier_forward.1} parent=11 // pred_check
          %p518 = pneg %p408
        $region78: #{softmax_classifier_forward.1} parent=11 // pred_check_branch
          %520 = sbr.rel (%p518) target = $region80
        $region79: #{softmax_classifier_forward.1} parent=11 // pred_region
          _
        $region80: #{softmax_classifier_forward.1} parent=11 // pred_fallthru
          _
        // Predicated region
        $region81: #{softmax_classifier_forward.1} parent=11 // pred_check
          %p521 = pneg %p429
        $region82: #{softmax_classifier_forward.1} parent=11 // pred_check_branch
          %523 = sbr.rel (%p521) target = $region84
        $region83: #{softmax_classifier_forward.1} parent=11 // pred_region
          _
        $region84: #{softmax_classifier_forward.1} parent=11 // pred_fallthru
          _
      $region12: #{softmax_classifier_forward.1} parent=5 // pred_fallthru
        _
      %p524 = scmp.lt.s32.totalorder %s25, 2
      // Predicated region
      $region85: #{softmax_classifier_forward.1} parent=5 // pred_check
        %p525 = pneg %p524
      $region86: #{softmax_classifier_forward.1} parent=5 // pred_check_branch
        %527 = sbr.rel (%p525) target = $region88
      $region87: #{softmax_classifier_forward.1} parent=5 // pred_region
        // Predicated region
        $region89: #{softmax_classifier_forward.1} parent=87 // pred_check
          %p528 = pneg %p45
        $region90: #{softmax_classifier_forward.1} parent=87 // pred_check_branch
          %530 = sbr.rel (%p528) target = $region92
        $region91: #{softmax_classifier_forward.1} parent=87 // pred_region
          %s531 = sand.u32 %s35, 1
          %s532 = sand.u32 %s35, 1
          %s533 = smul.addr %s532, 16
          %s534 = scalar_lea.vmem [#allocation2], %s533
          %s535 = smul.u32 2, %s25
          %s536 = smul.addr %s535, 4
          %s537 = scalar_lea.vmem %s0, %s536
          // Predicated region
          $region93: #{softmax_classifier_forward.1} parent=91 // pred_check
            _
          $region94: #{softmax_classifier_forward.1} parent=91 // pred_check_branch
            %539 = sbr.rel (0) target = $region96
          $region95: #{softmax_classifier_forward.1} parent=91 // pred_region
            // Predicated region
            $region97: #{softmax_classifier_forward.1} parent=95 // pred_check
              _
            $region98: #{softmax_classifier_forward.1} parent=95 // pred_check_branch
              %541 = sbr.rel (0) target = $region100
            $region99: #{softmax_classifier_forward.1} parent=95 // pred_region
              // Predicated region
              $region112: #{softmax_classifier_forward.1} parent=99 // pred_check
                _
              $region113: #{softmax_classifier_forward.1} parent=99 // pred_check_branch
                %559 = sbr.rel (0) target = $region115
              $region114: #{softmax_classifier_forward.1} parent=99 // pred_region
                loop: start=0, step=1, limit=1
                $region116: #{softmax_classifier_forward.1} parent=114 // loop_pre_header
                  _
                $region117: #{softmax_classifier_forward.1} parent=114 // loop_header
                  %s561 = sphi 0, %s565
                  %p562 = scmp.ge.s32.totalorder %s561, 1
                  %s566 = sphi %s537, %s537
                  %s567 = sphi %s534, %s534
                $region118: #{softmax_classifier_forward.1} parent=114 // loop_header_branch
                  %564 = sbr.rel (%p562) target = $region122
                $region119: #{softmax_classifier_forward.1} parent=114 // loop_body
                  %v568 = vld [vmem:[%s566] sm:$0xff]
                  %569 = vst [vmem:[%s567] sm:$0xff] %v568
                  %v570 = vld [vmem:[%s566 + $0x10] sm:$0xff]
                  %571 = vst [vmem:[%s567 + $0x8] sm:$0xff] %v570
                $region120: #{softmax_classifier_forward.1} parent=114 // loop_footer
                  %s565 = sadd.s32 1, %s561
                $region121: #{softmax_classifier_forward.1} parent=114 // loop_footer_branch
                  %560 = sbr.rel target = $region117
                $region122: #{softmax_classifier_forward.1} parent=114 // loop_exit
                  _
              $region115: #{softmax_classifier_forward.1} parent=99 // pred_fallthru
                _
              // Predicated region
              $region123: #{softmax_classifier_forward.1} parent=99 // pred_check
                _
              $region124: #{softmax_classifier_forward.1} parent=99 // pred_check_branch
                %573 = sbr.rel target = $region126
              $region125: #{softmax_classifier_forward.1} parent=99 // pred_region
                _
              $region126: #{softmax_classifier_forward.1} parent=99 // pred_fallthru
                _
            $region100: #{softmax_classifier_forward.1} parent=95 // pred_fallthru
              _
            // Predicated region
            $region101: #{softmax_classifier_forward.1} parent=95 // pred_check
              _
            $region102: #{softmax_classifier_forward.1} parent=95 // pred_check_branch
              %543 = sbr.rel target = $region104
            $region103: #{softmax_classifier_forward.1} parent=95 // pred_region
              %s545 = ssub.s32 256, 1
              loop: start=0, step=1, limit=1
              $region105: #{softmax_classifier_forward.1} parent=103 // loop_pre_header
                _
              $region106: #{softmax_classifier_forward.1} parent=103 // loop_header
                %s547 = sphi 0, %s551
                %p548 = scmp.ge.s32.totalorder %s547, 1
                %s552 = sphi %s537, %s537
                %s553 = sphi %s534, %s534
              $region107: #{softmax_classifier_forward.1} parent=103 // loop_header_branch
                %550 = sbr.rel (%p548) target = $region111
              $region108: #{softmax_classifier_forward.1} parent=103 // loop_body
                %v554 = vld [vmem:[%s552] sm:%s545]
                %555 = vst [vmem:[%s553] sm:%s545] %v554
                %v556 = vld [vmem:[%s552 + $0x10] sm:%s545]
                %557 = vst [vmem:[%s553 + $0x8] sm:%s545] %v556
              $region109: #{softmax_classifier_forward.1} parent=103 // loop_footer
                %s551 = sadd.s32 1, %s547
              $region110: #{softmax_classifier_forward.1} parent=103 // loop_footer_branch
                %546 = sbr.rel target = $region106
              $region111: #{softmax_classifier_forward.1} parent=103 // loop_exit
                _
            $region104: #{softmax_classifier_forward.1} parent=95 // pred_fallthru
              _
          $region96: #{softmax_classifier_forward.1} parent=91 // pred_fallthru
            _
          %574 = vnop
        $region92: #{softmax_classifier_forward.1} parent=87 // pred_fallthru
          _
      $region88: #{softmax_classifier_forward.1} parent=5 // pred_fallthru
        _
      %p575 = scmp.le.s32.totalorder 1, %s25
      %p576 = scmp.lt.s32.totalorder %s25, 3
      %p577 = pnand %p575, %p576
      %p578 = pneg %p577
      // Predicated region
      $region127: #{softmax_classifier_forward.1} parent=5 // pred_check
        _
      $region128: #{softmax_classifier_forward.1} parent=5 // pred_check_branch
        %580 = sbr.rel (%p577) target = $region130
      $region129: #{softmax_classifier_forward.1} parent=5 // pred_region
        %s581 = ssub.s32 %s25, 1
        %s582 = sand.u32 %s38, 1
        %s583 = sand.u32 %s38, 1
        %s584 = smul.addr %s583, 16
        %s585 = scalar_lea.vmem [#allocation2], %s584
        // Predicated region
        $region131: #{softmax_classifier_forward.1} parent=129 // pred_check
          %p586 = pneg %p51
        $region132: #{softmax_classifier_forward.1} parent=129 // pred_check_branch
          %588 = sbr.rel (%p586) target = $region134
        $region133: #{softmax_classifier_forward.1} parent=129 // pred_region
          _
        $region134: #{softmax_classifier_forward.1} parent=129 // pred_fallthru
          _
        %s589 = sand.u32 %s38, 1
        %s590 = sand.u32 %s38, 1
        %s591 = smul.addr %s590, 16
        %s592 = scalar_lea.vmem [#allocation2], %s591
        %p593 = pneg %p51
        %p594 = pneg %p48
        %p595 = pneg %p72
        %p596 = pneg %p69
        %p597 = pneg %p93
        %p598 = pneg %p90
        %p599 = pneg %p114
        %p600 = pneg %p111
        %p601 = pneg %p135
        %p602 = pneg %p132
        %p603 = pneg %p156
        %p604 = pneg %p153
        %p605 = pneg %p177
        %p606 = pneg %p174
        %p607 = pneg %p198
        %p608 = pneg %p195
        %p609 = pneg %p219
        %p610 = pneg %p216
        %p611 = pneg %p240
        %p612 = pneg %p237
        %p613 = pneg %p261
        %p614 = pneg %p258
        %p615 = pneg %p282
        %p616 = pneg %p279
        %p617 = pneg %p303
        %p618 = pneg %p300
        %p619 = pneg %p324
        %p620 = pneg %p321
        %p621 = pneg %p345
        %p622 = pneg %p342
        %p623 = pneg %p366
        %p624 = pneg %p363
        %p625 = pneg %p387
        %p626 = pneg %p384
        %p627 = pneg %p408
        %p628 = pneg %p405
        %p629 = pneg %p429
        %p630 = pneg %p426
        %p631 = pneg %p455
        %p632 = pneg %p452
        %s633 = smul.u32 2, %s30
        %p634 = scmp.lt.s32.totalorder %s633, 3
        %s635 = scalar_select %p634, %s633, 3
        %s636 = smul.addr %s635, 8
        %s637 = scalar_lea.vmem %s19, %s636
        %s638 = smul.u32 2, %s30
        %s639 = smul.u32 2, %s30
        %p640 = scmp.lt.s32.totalorder %s639, 3
        %s641 = scalar_select %p640, %s639, 3
        %s642 = smul.addr %s641, 8
        %s643 = scalar_lea.vmem %s19, %s642
        %s644 = smul.u32 2, %s30
        %v646 = vld [vmem:[%s585] sm:$0xff]
        %v647 = vld [vmem:[%s585 + $0x8] sm:$0xff]
        %v648 = vld [vmem:[%s1] sm:$0xf]
        %v649 = vld [vmem:[%s1 + $0x4] sm:$0xf]
        %v650 = vld [vmem:[%s1 + $0x8] sm:$0xf]
        %v651 = vld [vmem:[%s1 + $0xc] sm:$0xf]
        %v652 = vld [vmem:[%s1 + $0x10] sm:$0xf]
        %v653 = vld [vmem:[%s1 + $0x14] sm:$0xf]
        %v654 = vld [vmem:[%s1 + $0x18] sm:$0xf]
        %v655 = vld [vmem:[%s1 + $0x1c] sm:$0xf]
        %v656 = vld [vmem:[%s1 + $0x20] sm:$0xf]
        %v657 = vld [vmem:[%s1 + $0x24] sm:$0xf]
        %v658 = vld [vmem:[%s1 + $0x28] sm:$0xf]
        %v659 = vld [vmem:[%s1 + $0x2c] sm:$0xf]
        %v660 = vld [vmem:[%s1 + $0x30] sm:$0xf]
        %v661 = vld [vmem:[%s1 + $0x34] sm:$0xf]
        %v662 = vld [vmem:[%s1 + $0x38] sm:$0xf]
        %v663 = vld [vmem:[%s1 + $0x3c] sm:$0xf]
        %v664 = vld [vmem:[%s1 + $0x40] sm:$0xf]
        %v665 = vld [vmem:[%s1 + $0x44] sm:$0xf]
        %v666 = vld [vmem:[%s1 + $0x48] sm:$0xf]
        %v667 = vld [vmem:[%s1 + $0x4c] sm:$0xf]
        %v668 = vld [vmem:[%s1 + $0x50] sm:$0xf]
        %v669 = vld [vmem:[%s1 + $0x54] sm:$0xf]
        %v670 = vld [vmem:[%s1 + $0x58] sm:$0xf]
        %v671 = vld [vmem:[%s1 + $0x5c] sm:$0xf]
        %v672 = vld [vmem:[%s1 + $0x60] sm:$0xf]
        %v673 = vld [vmem:[%s1 + $0x64] sm:$0xf]
        %v674 = vld [vmem:[%s1 + $0x68] sm:$0xf]
        %v675 = vld [vmem:[%s1 + $0x6c] sm:$0xf]
        %v676 = vld [vmem:[%s1 + $0x70] sm:$0xf]
        %v677 = vld [vmem:[%s1 + $0x74] sm:$0xf]
        %v678 = vld [vmem:[%s1 + $0x78] sm:$0xf]
        %v679 = vld [vmem:[%s1 + $0x7c] sm:$0xf]
        %v680 = vld [vmem:[%s1 + $0x80] sm:$0xf]
        %v681 = vld [vmem:[%s1 + $0x84] sm:$0xf]
        %v682 = vld [vmem:[%s1 + $0x88] sm:$0xf]
        %v683 = vld [vmem:[%s1 + $0x8c] sm:$0xf]
        %v684 = vld [vmem:[%s1 + $0x90] sm:$0xf]
        %v685 = vld [vmem:[%s1 + $0x94] sm:$0xf]
        %v686 = vld [vmem:[%s1 + $0x98] sm:$0xf]
        %v687 = vld [vmem:[%s1 + $0x9c] sm:$0xf]
        %v688 = vld [vmem:[%s1 + $0xa0] sm:$0xf]
        %v689 = vld [vmem:[%s1 + $0xa4] sm:$0xf]
        %v690 = vld [vmem:[%s1 + $0xa8] sm:$0xf]
        %v691 = vld [vmem:[%s1 + $0xac] sm:$0xf]
        %v692 = vld [vmem:[%s1 + $0xb0] sm:$0xf]
        %v693 = vld [vmem:[%s1 + $0xb4] sm:$0xf]
        %v694 = vld [vmem:[%s1 + $0xb8] sm:$0xf]
        %v695 = vld [vmem:[%s1 + $0xbc] sm:$0xf]
        %v696 = vld [vmem:[%s1 + $0xc0] sm:$0xf]
        %v697 = vld [vmem:[%s1 + $0xc4] sm:$0xf]
        %v698 = vld [vmem:[%s1 + $0xc8] sm:$0xf]
        %v699 = vld [vmem:[%s1 + $0xcc] sm:$0xf]
        %v700 = vld [vmem:[%s1 + $0xd0] sm:$0xf]
        %v701 = vld [vmem:[%s1 + $0xd4] sm:$0xf]
        %v702 = vld [vmem:[%s1 + $0xd8] sm:$0xf]
        %v703 = vld [vmem:[%s1 + $0xdc] sm:$0xf]
        %v704 = vld [vmem:[%s1 + $0xe0] sm:$0xf]
        %v705 = vld [vmem:[%s1 + $0xe4] sm:$0xf]
        %v706 = vld [vmem:[%s1 + $0xe8] sm:$0xf]
        %v707 = vld [vmem:[%s1 + $0xec] sm:$0xf]
        %v708 = vld [vmem:[%s1 + $0xf0] sm:$0xf]
        %v709 = vld [vmem:[%s1 + $0xf4] sm:$0xf]
        %v710 = vld [vmem:[%s1 + $0xf8] sm:$0xf]
        %v711 = vld [vmem:[%s1 + $0xfc] sm:$0xf]
        %v712 = vld [vmem:[%s2] sm:$0xff]
        %v713 = vld [vmem:[%s2 + $0x8] sm:$0xff]
        %v714 = vld [vmem:[%s2 + $0x10] sm:$0xff]
        %v715 = vld [vmem:[%s2 + $0x18] sm:$0xff]
        %v716 = vld [vmem:[%s2 + $0x20] sm:$0xff]
        %v717 = vld [vmem:[%s2 + $0x28] sm:$0xff]
        %v718 = vld [vmem:[%s2 + $0x30] sm:$0xff]
        %v719 = vld [vmem:[%s2 + $0x38] sm:$0xff]
        %v720 = vld [vmem:[%s2 + $0x40] sm:$0xff]
        %v721 = vld [vmem:[%s2 + $0x48] sm:$0xff]
        %v722 = vld [vmem:[%s2 + $0x50] sm:$0xff]
        %v723 = vld [vmem:[%s2 + $0x58] sm:$0xff]
        %v724 = vld [vmem:[%s2 + $0x60] sm:$0xff]
        %v725 = vld [vmem:[%s2 + $0x68] sm:$0xff]
        %v726 = vld [vmem:[%s2 + $0x70] sm:$0xff]
        %v727 = vld [vmem:[%s2 + $0x78] sm:$0xff]
        %v728 = vld [vmem:[%s2 + $0x80] sm:$0xff]
        %v729 = vld [vmem:[%s2 + $0x88] sm:$0xff]
        %v730 = vld [vmem:[%s2 + $0x90] sm:$0xff]
        %v731 = vld [vmem:[%s2 + $0x98] sm:$0xff]
        %v732 = vld [vmem:[%s2 + $0xa0] sm:$0xff]
        %v733 = vld [vmem:[%s2 + $0xa8] sm:$0xff]
        %v734 = vld [vmem:[%s2 + $0xb0] sm:$0xff]
        %v735 = vld [vmem:[%s2 + $0xb8] sm:$0xff]
        %v736 = vld [vmem:[%s2 + $0xc0] sm:$0xff]
        %v737 = vld [vmem:[%s2 + $0xc8] sm:$0xff]
        %v738 = vld [vmem:[%s2 + $0xd0] sm:$0xff]
        %v739 = vld [vmem:[%s2 + $0xd8] sm:$0xff]
        %v740 = vld [vmem:[%s2 + $0xe0] sm:$0xff]
        %v741 = vld [vmem:[%s2 + $0xe8] sm:$0xff]
        %v742 = vld [vmem:[%s2 + $0xf0] sm:$0xff]
        %v743 = vld [vmem:[%s2 + $0xf8] sm:$0xff]
        %v744 = vld [vmem:[%s2 + $0x100] sm:$0xff]
        %v745 = vld [vmem:[%s2 + $0x108] sm:$0xff]
        %v746 = vld [vmem:[%s2 + $0x110] sm:$0xff]
        %v747 = vld [vmem:[%s2 + $0x118] sm:$0xff]
        %v748 = vld [vmem:[%s2 + $0x120] sm:$0xff]
        %v749 = vld [vmem:[%s2 + $0x128] sm:$0xff]
        %v750 = vld [vmem:[%s2 + $0x130] sm:$0xff]
        %v751 = vld [vmem:[%s2 + $0x138] sm:$0xff]
        %v752 = vld [vmem:[%s2 + $0x140] sm:$0xff]
        %v753 = vld [vmem:[%s2 + $0x148] sm:$0xff]
        %v754 = vld [vmem:[%s2 + $0x150] sm:$0xff]
        %v755 = vld [vmem:[%s2 + $0x158] sm:$0xff]
        %v756 = vld [vmem:[%s2 + $0x160] sm:$0xff]
        %v757 = vld [vmem:[%s2 + $0x168] sm:$0xff]
        %v758 = vld [vmem:[%s2 + $0x170] sm:$0xff]
        %v759 = vld [vmem:[%s2 + $0x178] sm:$0xff]
        %v760 = vld [vmem:[%s2 + $0x180] sm:$0xff]
        %v761 = vld [vmem:[%s2 + $0x188] sm:$0xff]
        %v762 = vld [vmem:[%s2 + $0x190] sm:$0xff]
        %v763 = vld [vmem:[%s2 + $0x198] sm:$0xff]
        %v764 = vld [vmem:[%s2 + $0x1a0] sm:$0xff]
        %v765 = vld [vmem:[%s2 + $0x1a8] sm:$0xff]
        %v766 = vld [vmem:[%s2 + $0x1b0] sm:$0xff]
        %v767 = vld [vmem:[%s2 + $0x1b8] sm:$0xff]
        %v768 = vld [vmem:[%s2 + $0x1c0] sm:$0xff]
        %v769 = vld [vmem:[%s2 + $0x1c8] sm:$0xff]
        %v770 = vld [vmem:[%s2 + $0x1d0] sm:$0xff]
        %v771 = vld [vmem:[%s2 + $0x1d8] sm:$0xff]
        %v772 = vld [vmem:[%s2 + $0x1e0] sm:$0xff]
        %v773 = vld [vmem:[%s2 + $0x1e8] sm:$0xff]
        %v774 = vld [vmem:[%s2 + $0x1f0] sm:$0xff]
        %v775 = vld [vmem:[%s2 + $0x1f8] sm:$0xff]
        %777 = vset.pattern.permute.xlu0 0
        %778 = vperm.xlu0 %777, %v712
        %v779 = vpop.permute.xlu0 %778
        %782 = vset.pattern.permute.xlu0 0
        %783 = vperm.xlu0 %782, %v713
        %v784 = vpop.permute.xlu0 %783
        %787 = vset.pattern.permute.xlu0 0
        %788 = vperm.xlu0 %787, %v714
        %v789 = vpop.permute.xlu0 %788
        %792 = vset.pattern.permute.xlu0 0
        %793 = vperm.xlu0 %792, %v715
        %v794 = vpop.permute.xlu0 %793
        %797 = vset.pattern.permute.xlu0 0
        %798 = vperm.xlu0 %797, %v716
        %v799 = vpop.permute.xlu0 %798
        %802 = vset.pattern.permute.xlu0 0
        %803 = vperm.xlu0 %802, %v717
        %v804 = vpop.permute.xlu0 %803
        %807 = vset.pattern.permute.xlu0 0
        %808 = vperm.xlu0 %807, %v718
        %v809 = vpop.permute.xlu0 %808
        %812 = vset.pattern.permute.xlu0 0
        %813 = vperm.xlu0 %812, %v719
        %v814 = vpop.permute.xlu0 %813
        %817 = vset.pattern.permute.xlu0 0
        %818 = vperm.xlu0 %817, %v720
        %v819 = vpop.permute.xlu0 %818
        %822 = vset.pattern.permute.xlu0 0
        %823 = vperm.xlu0 %822, %v721
        %v824 = vpop.permute.xlu0 %823
        %827 = vset.pattern.permute.xlu0 0
        %828 = vperm.xlu0 %827, %v722
        %v829 = vpop.permute.xlu0 %828
        %832 = vset.pattern.permute.xlu0 0
        %833 = vperm.xlu0 %832, %v723
        %v834 = vpop.permute.xlu0 %833
        %837 = vset.pattern.permute.xlu0 0
        %838 = vperm.xlu0 %837, %v724
        %v839 = vpop.permute.xlu0 %838
        %842 = vset.pattern.permute.xlu0 0
        %843 = vperm.xlu0 %842, %v725
        %v844 = vpop.permute.xlu0 %843
        %847 = vset.pattern.permute.xlu0 0
        %848 = vperm.xlu0 %847, %v726
        %v849 = vpop.permute.xlu0 %848
        %852 = vset.pattern.permute.xlu0 0
        %853 = vperm.xlu0 %852, %v727
        %v854 = vpop.permute.xlu0 %853
        %857 = vset.pattern.permute.xlu0 0
        %858 = vperm.xlu0 %857, %v728
        %v859 = vpop.permute.xlu0 %858
        %862 = vset.pattern.permute.xlu0 0
        %863 = vperm.xlu0 %862, %v729
        %v864 = vpop.permute.xlu0 %863
        %867 = vset.pattern.permute.xlu0 0
        %868 = vperm.xlu0 %867, %v730
        %v869 = vpop.permute.xlu0 %868
        %872 = vset.pattern.permute.xlu0 0
        %873 = vperm.xlu0 %872, %v731
        %v874 = vpop.permute.xlu0 %873
        %877 = vset.pattern.permute.xlu0 0
        %878 = vperm.xlu0 %877, %v732
        %v879 = vpop.permute.xlu0 %878
        %882 = vset.pattern.permute.xlu0 0
        %883 = vperm.xlu0 %882, %v733
        %v884 = vpop.permute.xlu0 %883
        %887 = vset.pattern.permute.xlu0 0
        %888 = vperm.xlu0 %887, %v734
        %v889 = vpop.permute.xlu0 %888
        %892 = vset.pattern.permute.xlu0 0
        %893 = vperm.xlu0 %892, %v735
        %v894 = vpop.permute.xlu0 %893
        %897 = vset.pattern.permute.xlu0 0
        %898 = vperm.xlu0 %897, %v736
        %v899 = vpop.permute.xlu0 %898
        %902 = vset.pattern.permute.xlu0 0
        %903 = vperm.xlu0 %902, %v737
        %v904 = vpop.permute.xlu0 %903
        %907 = vset.pattern.permute.xlu0 0
        %908 = vperm.xlu0 %907, %v738
        %v909 = vpop.permute.xlu0 %908
        %912 = vset.pattern.permute.xlu0 0
        %913 = vperm.xlu0 %912, %v739
        %v914 = vpop.permute.xlu0 %913
        %917 = vset.pattern.permute.xlu0 0
        %918 = vperm.xlu0 %917, %v740
        %v919 = vpop.permute.xlu0 %918
        %922 = vset.pattern.permute.xlu0 0
        %923 = vperm.xlu0 %922, %v741
        %v924 = vpop.permute.xlu0 %923
        %927 = vset.pattern.permute.xlu0 0
        %928 = vperm.xlu0 %927, %v742
        %v929 = vpop.permute.xlu0 %928
        %932 = vset.pattern.permute.xlu0 0
        %933 = vperm.xlu0 %932, %v743
        %v934 = vpop.permute.xlu0 %933
        %937 = vset.pattern.permute.xlu0 0
        %938 = vperm.xlu0 %937, %v744
        %v939 = vpop.permute.xlu0 %938
        %942 = vset.pattern.permute.xlu0 0
        %943 = vperm.xlu0 %942, %v745
        %v944 = vpop.permute.xlu0 %943
        %947 = vset.pattern.permute.xlu0 0
        %948 = vperm.xlu0 %947, %v746
        %v949 = vpop.permute.xlu0 %948
        %952 = vset.pattern.permute.xlu0 0
        %953 = vperm.xlu0 %952, %v747
        %v954 = vpop.permute.xlu0 %953
        %957 = vset.pattern.permute.xlu0 0
        %958 = vperm.xlu0 %957, %v748
        %v959 = vpop.permute.xlu0 %958
        %962 = vset.pattern.permute.xlu0 0
        %963 = vperm.xlu0 %962, %v749
        %v964 = vpop.permute.xlu0 %963
        %967 = vset.pattern.permute.xlu0 0
        %968 = vperm.xlu0 %967, %v750
        %v969 = vpop.permute.xlu0 %968
        %972 = vset.pattern.permute.xlu0 0
        %973 = vperm.xlu0 %972, %v751
        %v974 = vpop.permute.xlu0 %973
        %977 = vset.pattern.permute.xlu0 0
        %978 = vperm.xlu0 %977, %v752
        %v979 = vpop.permute.xlu0 %978
        %982 = vset.pattern.permute.xlu0 0
        %983 = vperm.xlu0 %982, %v753
        %v984 = vpop.permute.xlu0 %983
        %987 = vset.pattern.permute.xlu0 0
        %988 = vperm.xlu0 %987, %v754
        %v989 = vpop.permute.xlu0 %988
        %992 = vset.pattern.permute.xlu0 0
        %993 = vperm.xlu0 %992, %v755
        %v994 = vpop.permute.xlu0 %993
        %997 = vset.pattern.permute.xlu0 0
        %998 = vperm.xlu0 %997, %v756
        %v999 = vpop.permute.xlu0 %998
        %1002 = vset.pattern.permute.xlu0 0
        %1003 = vperm.xlu0 %1002, %v757
        %v1004 = vpop.permute.xlu0 %1003
        %1007 = vset.pattern.permute.xlu0 0
        %1008 = vperm.xlu0 %1007, %v758
        %v1009 = vpop.permute.xlu0 %1008
        %1012 = vset.pattern.permute.xlu0 0
        %1013 = vperm.xlu0 %1012, %v759
        %v1014 = vpop.permute.xlu0 %1013
        %1017 = vset.pattern.permute.xlu0 0
        %1018 = vperm.xlu0 %1017, %v760
        %v1019 = vpop.permute.xlu0 %1018
        %1022 = vset.pattern.permute.xlu0 0
        %1023 = vperm.xlu0 %1022, %v761
        %v1024 = vpop.permute.xlu0 %1023
        %1027 = vset.pattern.permute.xlu0 0
        %1028 = vperm.xlu0 %1027, %v762
        %v1029 = vpop.permute.xlu0 %1028
        %1032 = vset.pattern.permute.xlu0 0
        %1033 = vperm.xlu0 %1032, %v763
        %v1034 = vpop.permute.xlu0 %1033
        %1037 = vset.pattern.permute.xlu0 0
        %1038 = vperm.xlu0 %1037, %v764
        %v1039 = vpop.permute.xlu0 %1038
        %1042 = vset.pattern.permute.xlu0 0
        %1043 = vperm.xlu0 %1042, %v765
        %v1044 = vpop.permute.xlu0 %1043
        %1047 = vset.pattern.permute.xlu0 0
        %1048 = vperm.xlu0 %1047, %v766
        %v1049 = vpop.permute.xlu0 %1048
        %1052 = vset.pattern.permute.xlu0 0
        %1053 = vperm.xlu0 %1052, %v767
        %v1054 = vpop.permute.xlu0 %1053
        %1057 = vset.pattern.permute.xlu0 0
        %1058 = vperm.xlu0 %1057, %v768
        %v1059 = vpop.permute.xlu0 %1058
        %1062 = vset.pattern.permute.xlu0 0
        %1063 = vperm.xlu0 %1062, %v769
        %v1064 = vpop.permute.xlu0 %1063
        %1067 = vset.pattern.permute.xlu0 0
        %1068 = vperm.xlu0 %1067, %v770
        %v1069 = vpop.permute.xlu0 %1068
        %1072 = vset.pattern.permute.xlu0 0
        %1073 = vperm.xlu0 %1072, %v771
        %v1074 = vpop.permute.xlu0 %1073
        %1077 = vset.pattern.permute.xlu0 0
        %1078 = vperm.xlu0 %1077, %v772
        %v1079 = vpop.permute.xlu0 %1078
        %1082 = vset.pattern.permute.xlu0 0
        %1083 = vperm.xlu0 %1082, %v773
        %v1084 = vpop.permute.xlu0 %1083
        %1087 = vset.pattern.permute.xlu0 0
        %1088 = vperm.xlu0 %1087, %v774
        %v1089 = vpop.permute.xlu0 %1088
        %1092 = vset.pattern.permute.xlu0 0
        %1093 = vperm.xlu0 %1092, %v775
        %v1094 = vpop.permute.xlu0 %1093
        %v1160 = vunpack.c.l.b16 %v648
        %v1161 = vunpack.c.l.b16 %v649
        %v1162 = vunpack.c.l.b16 %v650
        %v1163 = vunpack.c.l.b16 %v651
        %v1164 = vunpack.c.l.b16 %v652
        %v1165 = vunpack.c.l.b16 %v653
        %v1166 = vunpack.c.l.b16 %v654
        %v1167 = vunpack.c.l.b16 %v655
        %v1168 = vunpack.c.l.b16 %v656
        %v1169 = vunpack.c.l.b16 %v657
        %v1170 = vunpack.c.l.b16 %v658
        %v1171 = vunpack.c.l.b16 %v659
        %v1172 = vunpack.c.l.b16 %v660
        %v1173 = vunpack.c.l.b16 %v661
        %v1174 = vunpack.c.l.b16 %v662
        %v1175 = vunpack.c.l.b16 %v663
        %v1176 = vunpack.c.l.b16 %v664
        %v1177 = vunpack.c.l.b16 %v665
        %v1178 = vunpack.c.l.b16 %v666
        %v1179 = vunpack.c.l.b16 %v667
        %v1180 = vunpack.c.l.b16 %v668
        %v1181 = vunpack.c.l.b16 %v669
        %v1182 = vunpack.c.l.b16 %v670
        %v1183 = vunpack.c.l.b16 %v671
        %v1184 = vunpack.c.l.b16 %v672
        %v1185 = vunpack.c.l.b16 %v673
        %v1186 = vunpack.c.l.b16 %v674
        %v1187 = vunpack.c.l.b16 %v675
        %v1188 = vunpack.c.l.b16 %v676
        %v1189 = vunpack.c.l.b16 %v677
        %v1190 = vunpack.c.l.b16 %v678
        %v1191 = vunpack.c.l.b16 %v679
        %v1192 = vunpack.c.l.b16 %v680
        %v1193 = vunpack.c.l.b16 %v681
        %v1194 = vunpack.c.l.b16 %v682
        %v1195 = vunpack.c.l.b16 %v683
        %v1196 = vunpack.c.l.b16 %v684
        %v1197 = vunpack.c.l.b16 %v685
        %v1198 = vunpack.c.l.b16 %v686
        %v1199 = vunpack.c.l.b16 %v687
        %v1200 = vunpack.c.l.b16 %v688
        %v1201 = vunpack.c.l.b16 %v689
        %v1202 = vunpack.c.l.b16 %v690
        %v1203 = vunpack.c.l.b16 %v691
        %v1204 = vunpack.c.l.b16 %v692
        %v1205 = vunpack.c.l.b16 %v693
        %v1206 = vunpack.c.l.b16 %v694
        %v1207 = vunpack.c.l.b16 %v695
        %v1208 = vunpack.c.l.b16 %v696
        %v1209 = vunpack.c.l.b16 %v697
        %v1210 = vunpack.c.l.b16 %v698
        %v1211 = vunpack.c.l.b16 %v699
        %v1212 = vunpack.c.l.b16 %v700
        %v1213 = vunpack.c.l.b16 %v701
        %v1214 = vunpack.c.l.b16 %v702
        %v1215 = vunpack.c.l.b16 %v703
        %v1216 = vunpack.c.l.b16 %v704
        %v1217 = vunpack.c.l.b16 %v705
        %v1218 = vunpack.c.l.b16 %v706
        %v1219 = vunpack.c.l.b16 %v707
        %v1220 = vunpack.c.l.b16 %v708
        %v1221 = vunpack.c.l.b16 %v709
        %v1222 = vunpack.c.l.b16 %v710
        %v1223 = vunpack.c.l.b16 %v711
        %v1224 = vpack.c.b16 %v1161, %v1160
        %v1225 = vpack.c.b16 %v1163, %v1162
        %v1226 = vpack.c.b16 %v1165, %v1164
        %v1227 = vpack.c.b16 %v1167, %v1166
        %v1228 = vpack.c.b16 %v1169, %v1168
        %v1229 = vpack.c.b16 %v1171, %v1170
        %v1230 = vpack.c.b16 %v1173, %v1172
        %v1231 = vpack.c.b16 %v1175, %v1174
        %v1232 = vpack.c.b16 %v1177, %v1176
        %v1233 = vpack.c.b16 %v1179, %v1178
        %v1234 = vpack.c.b16 %v1181, %v1180
        %v1235 = vpack.c.b16 %v1183, %v1182
        %v1236 = vpack.c.b16 %v1185, %v1184
        %v1237 = vpack.c.b16 %v1187, %v1186
        %v1238 = vpack.c.b16 %v1189, %v1188
        %v1239 = vpack.c.b16 %v1191, %v1190
        %v1240 = vpack.c.b16 %v1193, %v1192
        %v1241 = vpack.c.b16 %v1195, %v1194
        %v1242 = vpack.c.b16 %v1197, %v1196
        %v1243 = vpack.c.b16 %v1199, %v1198
        %v1244 = vpack.c.b16 %v1201, %v1200
        %v1245 = vpack.c.b16 %v1203, %v1202
        %v1246 = vpack.c.b16 %v1205, %v1204
        %v1247 = vpack.c.b16 %v1207, %v1206
        %v1248 = vpack.c.b16 %v1209, %v1208
        %v1249 = vpack.c.b16 %v1211, %v1210
        %v1250 = vpack.c.b16 %v1213, %v1212
        %v1251 = vpack.c.b16 %v1215, %v1214
        %v1252 = vpack.c.b16 %v1217, %v1216
        %v1253 = vpack.c.b16 %v1219, %v1218
        %v1254 = vpack.c.b16 %v1221, %v1220
        %v1255 = vpack.c.b16 %v1223, %v1222
        %v1258 = vunpack.c.l.b16 %v646
        %v1259 = vunpack.c.h.b16 %v646
        %v1260 = vunpack.c.l.b16 %v647
        %v1261 = vunpack.c.h.b16 %v647
        %v1262 = vpack.c.b16 %v1260, %v1258
        %v1263 = vpack.c.b16 %v1261, %v1259
        %vm1266 = vcmask 130048
        %v1268 = vsel %vm1266, %v1224, 0
        %v1271 = vsel %vm1266, %v1225, 0
        %v1274 = vsel %vm1266, %v1226, 0
        %v1277 = vsel %vm1266, %v1227, 0
        %v1280 = vsel %vm1266, %v1228, 0
        %v1283 = vsel %vm1266, %v1229, 0
        %v1286 = vsel %vm1266, %v1230, 0
        %v1289 = vsel %vm1266, %v1231, 0
        %v1292 = vsel %vm1266, %v1232, 0
        %v1295 = vsel %vm1266, %v1233, 0
        %v1298 = vsel %vm1266, %v1234, 0
        %v1301 = vsel %vm1266, %v1235, 0
        %v1304 = vsel %vm1266, %v1236, 0
        %v1307 = vsel %vm1266, %v1237, 0
        %v1310 = vsel %vm1266, %v1238, 0
        %v1313 = vsel %vm1266, %v1239, 0
        %v1316 = vsel %vm1266, %v1240, 0
        %v1319 = vsel %vm1266, %v1241, 0
        %v1322 = vsel %vm1266, %v1242, 0
        %v1325 = vsel %vm1266, %v1243, 0
        %v1328 = vsel %vm1266, %v1244, 0
        %v1331 = vsel %vm1266, %v1245, 0
        %v1334 = vsel %vm1266, %v1246, 0
        %v1337 = vsel %vm1266, %v1247, 0
        %v1340 = vsel %vm1266, %v1248, 0
        %v1343 = vsel %vm1266, %v1249, 0
        %v1346 = vsel %vm1266, %v1250, 0
        %v1349 = vsel %vm1266, %v1251, 0
        %v1352 = vsel %vm1266, %v1252, 0
        %v1355 = vsel %vm1266, %v1253, 0
        %v1358 = vsel %vm1266, %v1254, 0
        %v1361 = vsel %vm1266, %v1255, 0
        %1363 = vmatprep.subr.bf16.mxu0 0
        %1364 = vmatpush1.bf16.msra.mxu0 0
        %1365 = vmatprep.subr.bf16.mxu0 0
        %1366 = vmatpush1.bf16.msra.mxu0 0
        %1367 = vmatprep.subr.bf16.mxu0 0
        %1368 = vmatpush1.bf16.msra.mxu0 0
        %1369 = vmatprep.subr.bf16.mxu0 0
        %1370 = vmatpush1.bf16.msra.mxu0 0
        %1371 = vmatprep.subr.bf16.mxu0 0
        %1372 = vmatpush1.bf16.msra.mxu0 0
        %1373 = vmatprep.subr.bf16.mxu0 0
        %1374 = vmatpush1.bf16.msra.mxu0 0
        %1375 = vmatprep.subr.bf16.mxu0 0
        %1376 = vmatpush1.bf16.msra.mxu0 0
        %1377 = vmatprep.subr.bf16.mxu0 %v1263
        %1378 = vmatpush1.bf16.msra.mxu0 %v1262
        %1379 = vmatprep.subr.bf16.mxu0 0
        %1380 = vmatpush2.bf16.msra.mxu0 0
        %1381 = vmatprep.subr.bf16.mxu0 0
        %1382 = vmatpush2.bf16.msra.mxu0 0
        %1383 = vmatprep.subr.bf16.mxu0 0
        %1384 = vmatpush2.bf16.msra.mxu0 0
        %1385 = vmatprep.subr.bf16.mxu0 0
        %1386 = vmatpush2.bf16.msra.mxu0 0
        %1387 = vmatprep.subr.bf16.mxu0 0
        %1388 = vmatpush2.bf16.msra.mxu0 0
        %1389 = vmatprep.subr.bf16.mxu0 0
        %1390 = vmatpush2.bf16.msra.mxu0 0
        %1391 = vmatprep.subr.bf16.mxu0 0
        %1392 = vmatpush2.bf16.msra.mxu0 0
        %1393 = vmatprep.subr.bf16.mxu0 0
        %1394 = vmatpush2.bf16.msra.mxu0 0
        %1395 = vmatprep.mubr.bf16.mxu0 0
        %1396 = vmatmul.mubr.bf16.gmra.mxu0 %v1268
        %v1397 = vpop.f32.mrf.mxu0
        %v1398 = vadd.f32 %v779, %v1397
        %v1399 = vpop.f32.mrf.mxu0
        %v1400 = vadd.f32 %v779, %v1399
        %v1401 = vpop.f32.mrf.mxu0
        %v1402 = vadd.f32 %v784, %v1401
        %v1403 = vpop.f32.mrf.mxu0
        %v1404 = vadd.f32 %v784, %v1403
        %1405 = vmatprep.mubr.bf16.mxu0 0
        %1406 = vmatmul.mubr.bf16.gmra.mxu0 %v1271
        %v1407 = vpop.f32.mrf.mxu0
        %v1408 = vadd.f32 %v789, %v1407
        %v1409 = vpop.f32.mrf.mxu0
        %v1410 = vadd.f32 %v789, %v1409
        %v1411 = vpop.f32.mrf.mxu0
        %v1412 = vadd.f32 %v794, %v1411
        %v1413 = vpop.f32.mrf.mxu0
        %v1414 = vadd.f32 %v794, %v1413
        %1415 = vmatprep.mubr.bf16.mxu0 0
        %1416 = vmatmul.mubr.bf16.gmra.mxu0 %v1274
        %v1417 = vpop.f32.mrf.mxu0
        %v1418 = vadd.f32 %v799, %v1417
        %v1419 = vpop.f32.mrf.mxu0
        %v1420 = vadd.f32 %v799, %v1419
        %v1421 = vpop.f32.mrf.mxu0
        %v1422 = vadd.f32 %v804, %v1421
        %v1423 = vpop.f32.mrf.mxu0
        %v1424 = vadd.f32 %v804, %v1423
        %1425 = vmatprep.mubr.bf16.mxu0 0
        %1426 = vmatmul.mubr.bf16.gmra.mxu0 %v1277
        %v1427 = vpop.f32.mrf.mxu0
        %v1428 = vadd.f32 %v809, %v1427
        %v1429 = vpop.f32.mrf.mxu0
        %v1430 = vadd.f32 %v809, %v1429
        %v1431 = vpop.f32.mrf.mxu0
        %v1432 = vadd.f32 %v814, %v1431
        %v1433 = vpop.f32.mrf.mxu0
        %v1434 = vadd.f32 %v814, %v1433
        %1435 = vmatprep.mubr.bf16.mxu0 0
        %1436 = vmatmul.mubr.bf16.gmra.mxu0 %v1280
        %v1437 = vpop.f32.mrf.mxu0
        %v1438 = vadd.f32 %v819, %v1437
        %v1439 = vpop.f32.mrf.mxu0
        %v1440 = vadd.f32 %v819, %v1439
        %v1441 = vpop.f32.mrf.mxu0
        %v1442 = vadd.f32 %v824, %v1441
        %v1443 = vpop.f32.mrf.mxu0
        %v1444 = vadd.f32 %v824, %v1443
        %1445 = vmatprep.mubr.bf16.mxu0 0
        %1446 = vmatmul.mubr.bf16.gmra.mxu0 %v1283
        %v1447 = vpop.f32.mrf.mxu0
        %v1448 = vadd.f32 %v829, %v1447
        %v1449 = vpop.f32.mrf.mxu0
        %v1450 = vadd.f32 %v829, %v1449
        %v1451 = vpop.f32.mrf.mxu0
        %v1452 = vadd.f32 %v834, %v1451
        %v1453 = vpop.f32.mrf.mxu0
        %v1454 = vadd.f32 %v834, %v1453
        %1455 = vmatprep.mubr.bf16.mxu0 0
        %1456 = vmatmul.mubr.bf16.gmra.mxu0 %v1286
        %v1457 = vpop.f32.mrf.mxu0
        %v1458 = vadd.f32 %v839, %v1457
        %v1459 = vpop.f32.mrf.mxu0
        %v1460 = vadd.f32 %v839, %v1459
        %v1461 = vpop.f32.mrf.mxu0
        %v1462 = vadd.f32 %v844, %v1461
        %v1463 = vpop.f32.mrf.mxu0
        %v1464 = vadd.f32 %v844, %v1463
        %1465 = vmatprep.mubr.bf16.mxu0 0
        %1466 = vmatmul.mubr.bf16.gmra.mxu0 %v1289
        %v1467 = vpop.f32.mrf.mxu0
        %v1468 = vadd.f32 %v849, %v1467
        %v1469 = vpop.f32.mrf.mxu0
        %v1470 = vadd.f32 %v849, %v1469
        %v1471 = vpop.f32.mrf.mxu0
        %v1472 = vadd.f32 %v854, %v1471
        %v1473 = vpop.f32.mrf.mxu0
        %v1474 = vadd.f32 %v854, %v1473
        %1475 = vmatprep.mubr.bf16.mxu0 0
        %1476 = vmatmul.mubr.bf16.gmra.mxu0 %v1292
        %v1477 = vpop.f32.mrf.mxu0
        %v1478 = vadd.f32 %v859, %v1477
        %v1479 = vpop.f32.mrf.mxu0
        %v1480 = vadd.f32 %v859, %v1479
        %v1481 = vpop.f32.mrf.mxu0
        %v1482 = vadd.f32 %v864, %v1481
        %v1483 = vpop.f32.mrf.mxu0
        %v1484 = vadd.f32 %v864, %v1483
        %1485 = vmatprep.mubr.bf16.mxu0 0
        %1486 = vmatmul.mubr.bf16.gmra.mxu0 %v1295
        %v1487 = vpop.f32.mrf.mxu0
        %v1488 = vadd.f32 %v869, %v1487
        %v1489 = vpop.f32.mrf.mxu0
        %v1490 = vadd.f32 %v869, %v1489
        %v1491 = vpop.f32.mrf.mxu0
        %v1492 = vadd.f32 %v874, %v1491
        %v1493 = vpop.f32.mrf.mxu0
        %v1494 = vadd.f32 %v874, %v1493
        %1495 = vmatprep.mubr.bf16.mxu0 0
        %1496 = vmatmul.mubr.bf16.gmra.mxu0 %v1298
        %v1497 = vpop.f32.mrf.mxu0
        %v1498 = vadd.f32 %v879, %v1497
        %v1499 = vpop.f32.mrf.mxu0
        %v1500 = vadd.f32 %v879, %v1499
        %v1501 = vpop.f32.mrf.mxu0
        %v1502 = vadd.f32 %v884, %v1501
        %v1503 = vpop.f32.mrf.mxu0
        %v1504 = vadd.f32 %v884, %v1503
        %1505 = vmatprep.mubr.bf16.mxu0 0
        %1506 = vmatmul.mubr.bf16.gmra.mxu0 %v1301
        %v1507 = vpop.f32.mrf.mxu0
        %v1508 = vadd.f32 %v889, %v1507
        %v1509 = vpop.f32.mrf.mxu0
        %v1510 = vadd.f32 %v889, %v1509
        %v1511 = vpop.f32.mrf.mxu0
        %v1512 = vadd.f32 %v894, %v1511
        %v1513 = vpop.f32.mrf.mxu0
        %v1514 = vadd.f32 %v894, %v1513
        %1515 = vmatprep.mubr.bf16.mxu0 0
        %1516 = vmatmul.mubr.bf16.gmra.mxu0 %v1304
        %v1517 = vpop.f32.mrf.mxu0
        %v1518 = vadd.f32 %v899, %v1517
        %v1519 = vpop.f32.mrf.mxu0
        %v1520 = vadd.f32 %v899, %v1519
        %v1521 = vpop.f32.mrf.mxu0
        %v1522 = vadd.f32 %v904, %v1521
        %v1523 = vpop.f32.mrf.mxu0
        %v1524 = vadd.f32 %v904, %v1523
        %1525 = vmatprep.mubr.bf16.mxu0 0
        %1526 = vmatmul.mubr.bf16.gmra.mxu0 %v1307
        %v1527 = vpop.f32.mrf.mxu0
        %v1528 = vadd.f32 %v909, %v1527
        %v1529 = vpop.f32.mrf.mxu0
        %v1530 = vadd.f32 %v909, %v1529
        %v1531 = vpop.f32.mrf.mxu0
        %v1532 = vadd.f32 %v914, %v1531
        %v1533 = vpop.f32.mrf.mxu0
        %v1534 = vadd.f32 %v914, %v1533
        %1535 = vmatprep.mubr.bf16.mxu0 0
        %1536 = vmatmul.mubr.bf16.gmra.mxu0 %v1310
        %v1537 = vpop.f32.mrf.mxu0
        %v1538 = vadd.f32 %v919, %v1537
        %v1539 = vpop.f32.mrf.mxu0
        %v1540 = vadd.f32 %v919, %v1539
        %v1541 = vpop.f32.mrf.mxu0
        %v1542 = vadd.f32 %v924, %v1541
        %v1543 = vpop.f32.mrf.mxu0
        %v1544 = vadd.f32 %v924, %v1543
        %1545 = vmatprep.mubr.bf16.mxu0 0
        %1546 = vmatmul.mubr.bf16.gmra.mxu0 %v1313
        %v1547 = vpop.f32.mrf.mxu0
        %v1548 = vadd.f32 %v929, %v1547
        %v1549 = vpop.f32.mrf.mxu0
        %v1550 = vadd.f32 %v929, %v1549
        %v1551 = vpop.f32.mrf.mxu0
        %v1552 = vadd.f32 %v934, %v1551
        %v1553 = vpop.f32.mrf.mxu0
        %v1554 = vadd.f32 %v934, %v1553
        %1555 = vmatprep.mubr.bf16.mxu0 0
        %1556 = vmatmul.mubr.bf16.gmra.mxu0 %v1316
        %v1557 = vpop.f32.mrf.mxu0
        %v1558 = vadd.f32 %v939, %v1557
        %v1559 = vpop.f32.mrf.mxu0
        %v1560 = vadd.f32 %v939, %v1559
        %v1561 = vpop.f32.mrf.mxu0
        %v1562 = vadd.f32 %v944, %v1561
        %v1563 = vpop.f32.mrf.mxu0
        %v1564 = vadd.f32 %v944, %v1563
        %1565 = vmatprep.mubr.bf16.mxu0 0
        %1566 = vmatmul.mubr.bf16.gmra.mxu0 %v1319
        %v1567 = vpop.f32.mrf.mxu0
        %v1568 = vadd.f32 %v949, %v1567
        %v1569 = vpop.f32.mrf.mxu0
        %v1570 = vadd.f32 %v949, %v1569
        %v1571 = vpop.f32.mrf.mxu0
        %v1572 = vadd.f32 %v954, %v1571
        %v1573 = vpop.f32.mrf.mxu0
        %v1574 = vadd.f32 %v954, %v1573
        %1575 = vmatprep.mubr.bf16.mxu0 0
        %1576 = vmatmul.mubr.bf16.gmra.mxu0 %v1322
        %v1577 = vpop.f32.mrf.mxu0
        %v1578 = vadd.f32 %v959, %v1577
        %v1579 = vpop.f32.mrf.mxu0
        %v1580 = vadd.f32 %v959, %v1579
        %v1581 = vpop.f32.mrf.mxu0
        %v1582 = vadd.f32 %v964, %v1581
        %v1583 = vpop.f32.mrf.mxu0
        %v1584 = vadd.f32 %v964, %v1583
        %1585 = vmatprep.mubr.bf16.mxu0 0
        %1586 = vmatmul.mubr.bf16.gmra.mxu0 %v1325
        %v1587 = vpop.f32.mrf.mxu0
        %v1588 = vadd.f32 %v969, %v1587
        %v1589 = vpop.f32.mrf.mxu0
        %v1590 = vadd.f32 %v969, %v1589
        %v1591 = vpop.f32.mrf.mxu0
        %v1592 = vadd.f32 %v974, %v1591
        %v1593 = vpop.f32.mrf.mxu0
        %v1594 = vadd.f32 %v974, %v1593
        %1595 = vmatprep.mubr.bf16.mxu0 0
        %1596 = vmatmul.mubr.bf16.gmra.mxu0 %v1328
        %v1597 = vpop.f32.mrf.mxu0
        %v1598 = vadd.f32 %v979, %v1597
        %v1599 = vpop.f32.mrf.mxu0
        %v1600 = vadd.f32 %v979, %v1599
        %v1601 = vpop.f32.mrf.mxu0
        %v1602 = vadd.f32 %v984, %v1601
        %v1603 = vpop.f32.mrf.mxu0
        %v1604 = vadd.f32 %v984, %v1603
        %1605 = vmatprep.mubr.bf16.mxu0 0
        %1606 = vmatmul.mubr.bf16.gmra.mxu0 %v1331
        %v1607 = vpop.f32.mrf.mxu0
        %v1608 = vadd.f32 %v989, %v1607
        %v1609 = vpop.f32.mrf.mxu0
        %v1610 = vadd.f32 %v989, %v1609
        %v1611 = vpop.f32.mrf.mxu0
        %v1612 = vadd.f32 %v994, %v1611
        %v1613 = vpop.f32.mrf.mxu0
        %v1614 = vadd.f32 %v994, %v1613
        %1615 = vmatprep.mubr.bf16.mxu0 0
        %1616 = vmatmul.mubr.bf16.gmra.mxu0 %v1334
        %v1617 = vpop.f32.mrf.mxu0
        %v1618 = vadd.f32 %v999, %v1617
        %v1619 = vpop.f32.mrf.mxu0
        %v1620 = vadd.f32 %v999, %v1619
        %v1621 = vpop.f32.mrf.mxu0
        %v1622 = vadd.f32 %v1004, %v1621
        %v1623 = vpop.f32.mrf.mxu0
        %v1624 = vadd.f32 %v1004, %v1623
        %1625 = vmatprep.mubr.bf16.mxu0 0
        %1626 = vmatmul.mubr.bf16.gmra.mxu0 %v1337
        %v1627 = vpop.f32.mrf.mxu0
        %v1628 = vadd.f32 %v1009, %v1627
        %v1629 = vpop.f32.mrf.mxu0
        %v1630 = vadd.f32 %v1009, %v1629
        %v1631 = vpop.f32.mrf.mxu0
        %v1632 = vadd.f32 %v1014, %v1631
        %v1633 = vpop.f32.mrf.mxu0
        %v1634 = vadd.f32 %v1014, %v1633
        %1635 = vmatprep.mubr.bf16.mxu0 0
        %1636 = vmatmul.mubr.bf16.gmra.mxu0 %v1340
        %v1637 = vpop.f32.mrf.mxu0
        %v1638 = vadd.f32 %v1019, %v1637
        %v1639 = vpop.f32.mrf.mxu0
        %v1640 = vadd.f32 %v1019, %v1639
        %v1641 = vpop.f32.mrf.mxu0
        %v1642 = vadd.f32 %v1024, %v1641
        %v1643 = vpop.f32.mrf.mxu0
        %v1644 = vadd.f32 %v1024, %v1643
        %1645 = vmatprep.mubr.bf16.mxu0 0
        %1646 = vmatmul.mubr.bf16.gmra.mxu0 %v1343
        %v1647 = vpop.f32.mrf.mxu0
        %v1648 = vadd.f32 %v1029, %v1647
        %v1649 = vpop.f32.mrf.mxu0
        %v1650 = vadd.f32 %v1029, %v1649
        %v1651 = vpop.f32.mrf.mxu0
        %v1652 = vadd.f32 %v1034, %v1651
        %v1653 = vpop.f32.mrf.mxu0
        %v1654 = vadd.f32 %v1034, %v1653
        %1655 = vmatprep.mubr.bf16.mxu0 0
        %1656 = vmatmul.mubr.bf16.gmra.mxu0 %v1346
        %v1657 = vpop.f32.mrf.mxu0
        %v1658 = vadd.f32 %v1039, %v1657
        %v1659 = vpop.f32.mrf.mxu0
        %v1660 = vadd.f32 %v1039, %v1659
        %v1661 = vpop.f32.mrf.mxu0
        %v1662 = vadd.f32 %v1044, %v1661
        %v1663 = vpop.f32.mrf.mxu0
        %v1664 = vadd.f32 %v1044, %v1663
        %1665 = vmatprep.mubr.bf16.mxu0 0
        %1666 = vmatmul.mubr.bf16.gmra.mxu0 %v1349
        %v1667 = vpop.f32.mrf.mxu0
        %v1668 = vadd.f32 %v1049, %v1667
        %v1669 = vpop.f32.mrf.mxu0
        %v1670 = vadd.f32 %v1049, %v1669
        %v1671 = vpop.f32.mrf.mxu0
        %v1672 = vadd.f32 %v1054, %v1671
        %v1673 = vpop.f32.mrf.mxu0
        %v1674 = vadd.f32 %v1054, %v1673
        %1675 = vmatprep.mubr.bf16.mxu0 0
        %1676 = vmatmul.mubr.bf16.gmra.mxu0 %v1352
        %v1677 = vpop.f32.mrf.mxu0
        %v1678 = vadd.f32 %v1059, %v1677
        %v1679 = vpop.f32.mrf.mxu0
        %v1680 = vadd.f32 %v1059, %v1679
        %v1681 = vpop.f32.mrf.mxu0
        %v1682 = vadd.f32 %v1064, %v1681
        %v1683 = vpop.f32.mrf.mxu0
        %v1684 = vadd.f32 %v1064, %v1683
        %1685 = vmatprep.mubr.bf16.mxu0 0
        %1686 = vmatmul.mubr.bf16.gmra.mxu0 %v1355
        %v1687 = vpop.f32.mrf.mxu0
        %v1688 = vadd.f32 %v1069, %v1687
        %v1689 = vpop.f32.mrf.mxu0
        %v1690 = vadd.f32 %v1069, %v1689
        %v1691 = vpop.f32.mrf.mxu0
        %v1692 = vadd.f32 %v1074, %v1691
        %v1693 = vpop.f32.mrf.mxu0
        %v1694 = vadd.f32 %v1074, %v1693
        %1695 = vmatprep.mubr.bf16.mxu0 0
        %1696 = vmatmul.mubr.bf16.gmra.mxu0 %v1358
        %v1697 = vpop.f32.mrf.mxu0
        %v1698 = vadd.f32 %v1079, %v1697
        %v1699 = vpop.f32.mrf.mxu0
        %v1700 = vadd.f32 %v1079, %v1699
        %v1701 = vpop.f32.mrf.mxu0
        %v1702 = vadd.f32 %v1084, %v1701
        %v1703 = vpop.f32.mrf.mxu0
        %v1704 = vadd.f32 %v1084, %v1703
        %1705 = vmatprep.mubr.bf16.mxu0 0
        %1706 = vmatmul.mubr.bf16.gmra.mxu0 %v1361
        %v1707 = vpop.f32.mrf.mxu0
        %v1708 = vadd.f32 %v1089, %v1707
        %v1709 = vpop.f32.mrf.mxu0
        %v1710 = vadd.f32 %v1089, %v1709
        %v1711 = vpop.f32.mrf.mxu0
        %v1712 = vadd.f32 %v1094, %v1711
        %v1713 = vpop.f32.mrf.mxu0
        %v1714 = vadd.f32 %v1094, %v1713
        %1715 = vdwg.mxu0
        %v1716 = vmax.f32 %v1398, 0.0
        %v1717 = vmax.f32 %v1400, 0.0
        %v1718 = vmax.f32 %v1402, 0.0
        %v1719 = vmax.f32 %v1404, 0.0
        %v1720 = vmax.f32 %v1408, 0.0
        %v1721 = vmax.f32 %v1410, 0.0
        %v1722 = vmax.f32 %v1412, 0.0
        %v1723 = vmax.f32 %v1414, 0.0
        %v1724 = vmax.f32 %v1418, 0.0
        %v1725 = vmax.f32 %v1420, 0.0
        %v1726 = vmax.f32 %v1422, 0.0
        %v1727 = vmax.f32 %v1424, 0.0
        %v1728 = vmax.f32 %v1428, 0.0
        %v1729 = vmax.f32 %v1430, 0.0
        %v1730 = vmax.f32 %v1432, 0.0
        %v1731 = vmax.f32 %v1434, 0.0
        %v1732 = vmax.f32 %v1438, 0.0
        %v1733 = vmax.f32 %v1440, 0.0
        %v1734 = vmax.f32 %v1442, 0.0
        %v1735 = vmax.f32 %v1444, 0.0
        %v1736 = vmax.f32 %v1448, 0.0
        %v1737 = vmax.f32 %v1450, 0.0
        %v1738 = vmax.f32 %v1452, 0.0
        %v1739 = vmax.f32 %v1454, 0.0
        %v1740 = vmax.f32 %v1458, 0.0
        %v1741 = vmax.f32 %v1460, 0.0
        %v1742 = vmax.f32 %v1462, 0.0
        %v1743 = vmax.f32 %v1464, 0.0
        %v1744 = vmax.f32 %v1468, 0.0
        %v1745 = vmax.f32 %v1470, 0.0
        %v1746 = vmax.f32 %v1472, 0.0
        %v1747 = vmax.f32 %v1474, 0.0
        %v1748 = vmax.f32 %v1478, 0.0
        %v1749 = vmax.f32 %v1480, 0.0
        %v1750 = vmax.f32 %v1482, 0.0
        %v1751 = vmax.f32 %v1484, 0.0
        %v1752 = vmax.f32 %v1488, 0.0
        %v1753 = vmax.f32 %v1490, 0.0
        %v1754 = vmax.f32 %v1492, 0.0
        %v1755 = vmax.f32 %v1494, 0.0
        %v1756 = vmax.f32 %v1498, 0.0
        %v1757 = vmax.f32 %v1500, 0.0
        %v1758 = vmax.f32 %v1502, 0.0
        %v1759 = vmax.f32 %v1504, 0.0
        %v1760 = vmax.f32 %v1508, 0.0
        %v1761 = vmax.f32 %v1510, 0.0
        %v1762 = vmax.f32 %v1512, 0.0
        %v1763 = vmax.f32 %v1514, 0.0
        %v1764 = vmax.f32 %v1518, 0.0
        %v1765 = vmax.f32 %v1520, 0.0
        %v1766 = vmax.f32 %v1522, 0.0
        %v1767 = vmax.f32 %v1524, 0.0
        %v1768 = vmax.f32 %v1528, 0.0
        %v1769 = vmax.f32 %v1530, 0.0
        %v1770 = vmax.f32 %v1532, 0.0
        %v1771 = vmax.f32 %v1534, 0.0
        %v1772 = vmax.f32 %v1538, 0.0
        %v1773 = vmax.f32 %v1540, 0.0
        %v1774 = vmax.f32 %v1542, 0.0
        %v1775 = vmax.f32 %v1544, 0.0
        %v1776 = vmax.f32 %v1548, 0.0
        %v1777 = vmax.f32 %v1550, 0.0
        %v1778 = vmax.f32 %v1552, 0.0
        %v1779 = vmax.f32 %v1554, 0.0
        %v1780 = vmax.f32 %v1558, 0.0
        %v1781 = vmax.f32 %v1560, 0.0
        %v1782 = vmax.f32 %v1562, 0.0
        %v1783 = vmax.f32 %v1564, 0.0
        %v1784 = vmax.f32 %v1568, 0.0
        %v1785 = vmax.f32 %v1570, 0.0
        %v1786 = vmax.f32 %v1572, 0.0
        %v1787 = vmax.f32 %v1574, 0.0
        %v1788 = vmax.f32 %v1578, 0.0
        %v1789 = vmax.f32 %v1580, 0.0
        %v1790 = vmax.f32 %v1582, 0.0
        %v1791 = vmax.f32 %v1584, 0.0
        %v1792 = vmax.f32 %v1588, 0.0
        %v1793 = vmax.f32 %v1590, 0.0
        %v1794 = vmax.f32 %v1592, 0.0
        %v1795 = vmax.f32 %v1594, 0.0
        %v1796 = vmax.f32 %v1598, 0.0
        %v1797 = vmax.f32 %v1600, 0.0
        %v1798 = vmax.f32 %v1602, 0.0
        %v1799 = vmax.f32 %v1604, 0.0
        %v1800 = vmax.f32 %v1608, 0.0
        %v1801 = vmax.f32 %v1610, 0.0
        %v1802 = vmax.f32 %v1612, 0.0
        %v1803 = vmax.f32 %v1614, 0.0
        %v1804 = vmax.f32 %v1618, 0.0
        %v1805 = vmax.f32 %v1620, 0.0
        %v1806 = vmax.f32 %v1622, 0.0
        %v1807 = vmax.f32 %v1624, 0.0
        %v1808 = vmax.f32 %v1628, 0.0
        %v1809 = vmax.f32 %v1630, 0.0
        %v1810 = vmax.f32 %v1632, 0.0
        %v1811 = vmax.f32 %v1634, 0.0
        %v1812 = vmax.f32 %v1638, 0.0
        %v1813 = vmax.f32 %v1640, 0.0
        %v1814 = vmax.f32 %v1642, 0.0
        %v1815 = vmax.f32 %v1644, 0.0
        %v1816 = vmax.f32 %v1648, 0.0
        %v1817 = vmax.f32 %v1650, 0.0
        %v1818 = vmax.f32 %v1652, 0.0
        %v1819 = vmax.f32 %v1654, 0.0
        %v1820 = vmax.f32 %v1658, 0.0
        %v1821 = vmax.f32 %v1660, 0.0
        %v1822 = vmax.f32 %v1662, 0.0
        %v1823 = vmax.f32 %v1664, 0.0
        %v1824 = vmax.f32 %v1668, 0.0
        %v1825 = vmax.f32 %v1670, 0.0
        %v1826 = vmax.f32 %v1672, 0.0
        %v1827 = vmax.f32 %v1674, 0.0
        %v1828 = vmax.f32 %v1678, 0.0
        %v1829 = vmax.f32 %v1680, 0.0
        %v1830 = vmax.f32 %v1682, 0.0
        %v1831 = vmax.f32 %v1684, 0.0
        %v1832 = vmax.f32 %v1688, 0.0
        %v1833 = vmax.f32 %v1690, 0.0
        %v1834 = vmax.f32 %v1692, 0.0
        %v1835 = vmax.f32 %v1694, 0.0
        %v1836 = vmax.f32 %v1698, 0.0
        %v1837 = vmax.f32 %v1700, 0.0
        %v1838 = vmax.f32 %v1702, 0.0
        %v1839 = vmax.f32 %v1704, 0.0
        %v1840 = vmax.f32 %v1708, 0.0
        %v1841 = vmax.f32 %v1710, 0.0
        %v1842 = vmax.f32 %v1712, 0.0
        %v1843 = vmax.f32 %v1714, 0.0
        %v1844 = vpack.c.bf16 %v1718, %v1716
        %v1845 = vpack.c.bf16 %v1719, %v1717
        %v1846 = vpack.c.bf16 %v1722, %v1720
        %v1847 = vpack.c.bf16 %v1723, %v1721
        %v1848 = vpack.c.bf16 %v1726, %v1724
        %v1849 = vpack.c.bf16 %v1727, %v1725
        %v1850 = vpack.c.bf16 %v1730, %v1728
        %v1851 = vpack.c.bf16 %v1731, %v1729
        %v1852 = vpack.c.bf16 %v1734, %v1732
        %v1853 = vpack.c.bf16 %v1735, %v1733
        %v1854 = vpack.c.bf16 %v1738, %v1736
        %v1855 = vpack.c.bf16 %v1739, %v1737
        %v1856 = vpack.c.bf16 %v1742, %v1740
        %v1857 = vpack.c.bf16 %v1743, %v1741
        %v1858 = vpack.c.bf16 %v1746, %v1744
        %v1859 = vpack.c.bf16 %v1747, %v1745
        %v1860 = vpack.c.bf16 %v1750, %v1748
        %v1861 = vpack.c.bf16 %v1751, %v1749
        %v1862 = vpack.c.bf16 %v1754, %v1752
        %v1863 = vpack.c.bf16 %v1755, %v1753
        %v1864 = vpack.c.bf16 %v1758, %v1756
        %v1865 = vpack.c.bf16 %v1759, %v1757
        %v1866 = vpack.c.bf16 %v1762, %v1760
        %v1867 = vpack.c.bf16 %v1763, %v1761
        %v1868 = vpack.c.bf16 %v1766, %v1764
        %v1869 = vpack.c.bf16 %v1767, %v1765
        %v1870 = vpack.c.bf16 %v1770, %v1768
        %v1871 = vpack.c.bf16 %v1771, %v1769
        %v1872 = vpack.c.bf16 %v1774, %v1772
        %v1873 = vpack.c.bf16 %v1775, %v1773
        %v1874 = vpack.c.bf16 %v1778, %v1776
        %v1875 = vpack.c.bf16 %v1779, %v1777
        %v1876 = vpack.c.bf16 %v1782, %v1780
        %v1877 = vpack.c.bf16 %v1783, %v1781
        %v1878 = vpack.c.bf16 %v1786, %v1784
        %v1879 = vpack.c.bf16 %v1787, %v1785
        %v1880 = vpack.c.bf16 %v1790, %v1788
        %v1881 = vpack.c.bf16 %v1791, %v1789
        %v1882 = vpack.c.bf16 %v1794, %v1792
        %v1883 = vpack.c.bf16 %v1795, %v1793
        %v1884 = vpack.c.bf16 %v1798, %v1796
        %v1885 = vpack.c.bf16 %v1799, %v1797
        %v1886 = vpack.c.bf16 %v1802, %v1800
        %v1887 = vpack.c.bf16 %v1803, %v1801
        %v1888 = vpack.c.bf16 %v1806, %v1804
        %v1889 = vpack.c.bf16 %v1807, %v1805
        %v1890 = vpack.c.bf16 %v1810, %v1808
        %v1891 = vpack.c.bf16 %v1811, %v1809
        %v1892 = vpack.c.bf16 %v1814, %v1812
        %v1893 = vpack.c.bf16 %v1815, %v1813
        %v1894 = vpack.c.bf16 %v1818, %v1816
        %v1895 = vpack.c.bf16 %v1819, %v1817
        %v1896 = vpack.c.bf16 %v1822, %v1820
        %v1897 = vpack.c.bf16 %v1823, %v1821
        %v1898 = vpack.c.bf16 %v1826, %v1824
        %v1899 = vpack.c.bf16 %v1827, %v1825
        %v1900 = vpack.c.bf16 %v1830, %v1828
        %v1901 = vpack.c.bf16 %v1831, %v1829
        %v1902 = vpack.c.bf16 %v1834, %v1832
        %v1903 = vpack.c.bf16 %v1835, %v1833
        %v1904 = vpack.c.bf16 %v1838, %v1836
        %v1905 = vpack.c.bf16 %v1839, %v1837
        %v1906 = vpack.c.bf16 %v1842, %v1840
        %v1907 = vpack.c.bf16 %v1843, %v1841
        %v1908 = vld [vmem:[%s3] sm:$0xff]
        %v1909 = vld [vmem:[%s3 + $0x8] sm:$0xff]
        %v1910 = vld [vmem:[%s3 + $0x10] sm:$0xff]
        %v1911 = vld [vmem:[%s3 + $0x18] sm:$0xff]
        %v1912 = vld [vmem:[%s3 + $0x20] sm:$0xff]
        %v1913 = vld [vmem:[%s3 + $0x28] sm:$0xff]
        %v1914 = vld [vmem:[%s3 + $0x30] sm:$0xff]
        %v1915 = vld [vmem:[%s3 + $0x38] sm:$0xff]
        %v1916 = vld [vmem:[%s3 + $0x40] sm:$0xff]
        %v1917 = vld [vmem:[%s3 + $0x48] sm:$0xff]
        %v1918 = vld [vmem:[%s3 + $0x50] sm:$0xff]
        %v1919 = vld [vmem:[%s3 + $0x58] sm:$0xff]
        %v1920 = vld [vmem:[%s3 + $0x60] sm:$0xff]
        %v1921 = vld [vmem:[%s3 + $0x68] sm:$0xff]
        %v1922 = vld [vmem:[%s3 + $0x70] sm:$0xff]
        %v1923 = vld [vmem:[%s3 + $0x78] sm:$0xff]
        %v1924 = vld [vmem:[%s3 + $0x80] sm:$0xff]
        %v1925 = vld [vmem:[%s3 + $0x88] sm:$0xff]
        %v1926 = vld [vmem:[%s3 + $0x90] sm:$0xff]
        %v1927 = vld [vmem:[%s3 + $0x98] sm:$0xff]
        %v1928 = vld [vmem:[%s3 + $0xa0] sm:$0xff]
        %v1929 = vld [vmem:[%s3 + $0xa8] sm:$0xff]
        %v1930 = vld [vmem:[%s3 + $0xb0] sm:$0xff]
        %v1931 = vld [vmem:[%s3 + $0xb8] sm:$0xff]
        %v1932 = vld [vmem:[%s3 + $0xc0] sm:$0xff]
        %v1933 = vld [vmem:[%s3 + $0xc8] sm:$0xff]
        %v1934 = vld [vmem:[%s3 + $0xd0] sm:$0xff]
        %v1935 = vld [vmem:[%s3 + $0xd8] sm:$0xff]
        %v1936 = vld [vmem:[%s3 + $0xe0] sm:$0xff]
        %v1937 = vld [vmem:[%s3 + $0xe8] sm:$0xff]
        %v1938 = vld [vmem:[%s3 + $0xf0] sm:$0xff]
        %v1939 = vld [vmem:[%s3 + $0xf8] sm:$0xff]
        %v1940 = vld [vmem:[%s3 + $0x100] sm:$0xff]
        %v1941 = vld [vmem:[%s3 + $0x108] sm:$0xff]
        %v1942 = vld [vmem:[%s3 + $0x110] sm:$0xff]
        %v1943 = vld [vmem:[%s3 + $0x118] sm:$0xff]
        %v1944 = vld [vmem:[%s3 + $0x120] sm:$0xff]
        %v1945 = vld [vmem:[%s3 + $0x128] sm:$0xff]
        %v1946 = vld [vmem:[%s3 + $0x130] sm:$0xff]
        %v1947 = vld [vmem:[%s3 + $0x138] sm:$0xff]
        %v1948 = vld [vmem:[%s3 + $0x140] sm:$0xff]
        %v1949 = vld [vmem:[%s3 + $0x148] sm:$0xff]
        %v1950 = vld [vmem:[%s3 + $0x150] sm:$0xff]
        %v1951 = vld [vmem:[%s3 + $0x158] sm:$0xff]
        %v1952 = vld [vmem:[%s3 + $0x160] sm:$0xff]
        %v1953 = vld [vmem:[%s3 + $0x168] sm:$0xff]
        %v1954 = vld [vmem:[%s3 + $0x170] sm:$0xff]
        %v1955 = vld [vmem:[%s3 + $0x178] sm:$0xff]
        %v1956 = vld [vmem:[%s3 + $0x180] sm:$0xff]
        %v1957 = vld [vmem:[%s3 + $0x188] sm:$0xff]
        %v1958 = vld [vmem:[%s3 + $0x190] sm:$0xff]
        %v1959 = vld [vmem:[%s3 + $0x198] sm:$0xff]
        %v1960 = vld [vmem:[%s3 + $0x1a0] sm:$0xff]
        %v1961 = vld [vmem:[%s3 + $0x1a8] sm:$0xff]
        %v1962 = vld [vmem:[%s3 + $0x1b0] sm:$0xff]
        %v1963 = vld [vmem:[%s3 + $0x1b8] sm:$0xff]
        %v1964 = vld [vmem:[%s3 + $0x1c0] sm:$0xff]
        %v1965 = vld [vmem:[%s3 + $0x1c8] sm:$0xff]
        %v1966 = vld [vmem:[%s3 + $0x1d0] sm:$0xff]
        %v1967 = vld [vmem:[%s3 + $0x1d8] sm:$0xff]
        %v1968 = vld [vmem:[%s3 + $0x1e0] sm:$0xff]
        %v1969 = vld [vmem:[%s3 + $0x1e8] sm:$0xff]
        %v1970 = vld [vmem:[%s3 + $0x1f0] sm:$0xff]
        %v1971 = vld [vmem:[%s3 + $0x1f8] sm:$0xff]
        %v1972 = vld [vmem:[%s4] sm:$0xff]
        %v1973 = vld [vmem:[%s4 + $0x8] sm:$0xff]
        %v1974 = vld [vmem:[%s4 + $0x10] sm:$0xff]
        %v1975 = vld [vmem:[%s4 + $0x18] sm:$0xff]
        %v1976 = vld [vmem:[%s4 + $0x20] sm:$0xff]
        %v1977 = vld [vmem:[%s4 + $0x28] sm:$0xff]
        %v1978 = vld [vmem:[%s4 + $0x30] sm:$0xff]
        %v1979 = vld [vmem:[%s4 + $0x38] sm:$0xff]
        %v1980 = vld [vmem:[%s4 + $0x40] sm:$0xff]
        %v1981 = vld [vmem:[%s4 + $0x48] sm:$0xff]
        %v1982 = vld [vmem:[%s4 + $0x50] sm:$0xff]
        %v1983 = vld [vmem:[%s4 + $0x58] sm:$0xff]
        %v1984 = vld [vmem:[%s4 + $0x60] sm:$0xff]
        %v1985 = vld [vmem:[%s4 + $0x68] sm:$0xff]
        %v1986 = vld [vmem:[%s4 + $0x70] sm:$0xff]
        %v1987 = vld [vmem:[%s4 + $0x78] sm:$0xff]
        %v1988 = vld [vmem:[%s4 + $0x80] sm:$0xff]
        %v1989 = vld [vmem:[%s4 + $0x88] sm:$0xff]
        %v1990 = vld [vmem:[%s4 + $0x90] sm:$0xff]
        %v1991 = vld [vmem:[%s4 + $0x98] sm:$0xff]
        %v1992 = vld [vmem:[%s4 + $0xa0] sm:$0xff]
        %v1993 = vld [vmem:[%s4 + $0xa8] sm:$0xff]
        %v1994 = vld [vmem:[%s4 + $0xb0] sm:$0xff]
        %v1995 = vld [vmem:[%s4 + $0xb8] sm:$0xff]
        %v1996 = vld [vmem:[%s4 + $0xc0] sm:$0xff]
        %v1997 = vld [vmem:[%s4 + $0xc8] sm:$0xff]
        %v1998 = vld [vmem:[%s4 + $0xd0] sm:$0xff]
        %v1999 = vld [vmem:[%s4 + $0xd8] sm:$0xff]
        %v2000 = vld [vmem:[%s4 + $0xe0] sm:$0xff]
        %v2001 = vld [vmem:[%s4 + $0xe8] sm:$0xff]
        %v2002 = vld [vmem:[%s4 + $0xf0] sm:$0xff]
        %v2003 = vld [vmem:[%s4 + $0xf8] sm:$0xff]
        %2005 = vset.pattern.permute.xlu0 0
        %2006 = vperm.xlu0 %2005, %v1972
        %v2007 = vpop.permute.xlu0 %2006
        %2010 = vset.pattern.permute.xlu0 0
        %2011 = vperm.xlu0 %2010, %v1973
        %v2012 = vpop.permute.xlu0 %2011
        %2015 = vset.pattern.permute.xlu0 0
        %2016 = vperm.xlu0 %2015, %v1974
        %v2017 = vpop.permute.xlu0 %2016
        %2020 = vset.pattern.permute.xlu0 0
        %2021 = vperm.xlu0 %2020, %v1975
        %v2022 = vpop.permute.xlu0 %2021
        %2025 = vset.pattern.permute.xlu0 0
        %2026 = vperm.xlu0 %2025, %v1976
        %v2027 = vpop.permute.xlu0 %2026
        %2030 = vset.pattern.permute.xlu0 0
        %2031 = vperm.xlu0 %2030, %v1977
        %v2032 = vpop.permute.xlu0 %2031
        %2035 = vset.pattern.permute.xlu0 0
        %2036 = vperm.xlu0 %2035, %v1978
        %v2037 = vpop.permute.xlu0 %2036
        %2040 = vset.pattern.permute.xlu0 0
        %2041 = vperm.xlu0 %2040, %v1979
        %v2042 = vpop.permute.xlu0 %2041
        %2045 = vset.pattern.permute.xlu0 0
        %2046 = vperm.xlu0 %2045, %v1980
        %v2047 = vpop.permute.xlu0 %2046
        %2050 = vset.pattern.permute.xlu0 0
        %2051 = vperm.xlu0 %2050, %v1981
        %v2052 = vpop.permute.xlu0 %2051
        %2055 = vset.pattern.permute.xlu0 0
        %2056 = vperm.xlu0 %2055, %v1982
        %v2057 = vpop.permute.xlu0 %2056
        %2060 = vset.pattern.permute.xlu0 0
        %2061 = vperm.xlu0 %2060, %v1983
        %v2062 = vpop.permute.xlu0 %2061
        %2065 = vset.pattern.permute.xlu0 0
        %2066 = vperm.xlu0 %2065, %v1984
        %v2067 = vpop.permute.xlu0 %2066
        %2070 = vset.pattern.permute.xlu0 0
        %2071 = vperm.xlu0 %2070, %v1985
        %v2072 = vpop.permute.xlu0 %2071
        %2075 = vset.pattern.permute.xlu0 0
        %2076 = vperm.xlu0 %2075, %v1986
        %v2077 = vpop.permute.xlu0 %2076
        %2080 = vset.pattern.permute.xlu0 0
        %2081 = vperm.xlu0 %2080, %v1987
        %v2082 = vpop.permute.xlu0 %2081
        %2085 = vset.pattern.permute.xlu0 0
        %2086 = vperm.xlu0 %2085, %v1988
        %v2087 = vpop.permute.xlu0 %2086
        %2090 = vset.pattern.permute.xlu0 0
        %2091 = vperm.xlu0 %2090, %v1989
        %v2092 = vpop.permute.xlu0 %2091
        %2095 = vset.pattern.permute.xlu0 0
        %2096 = vperm.xlu0 %2095, %v1990
        %v2097 = vpop.permute.xlu0 %2096
        %2100 = vset.pattern.permute.xlu0 0
        %2101 = vperm.xlu0 %2100, %v1991
        %v2102 = vpop.permute.xlu0 %2101
        %2105 = vset.pattern.permute.xlu0 0
        %2106 = vperm.xlu0 %2105, %v1992
        %v2107 = vpop.permute.xlu0 %2106
        %2110 = vset.pattern.permute.xlu0 0
        %2111 = vperm.xlu0 %2110, %v1993
        %v2112 = vpop.permute.xlu0 %2111
        %2115 = vset.pattern.permute.xlu0 0
        %2116 = vperm.xlu0 %2115, %v1994
        %v2117 = vpop.permute.xlu0 %2116
        %2120 = vset.pattern.permute.xlu0 0
        %2121 = vperm.xlu0 %2120, %v1995
        %v2122 = vpop.permute.xlu0 %2121
        %2125 = vset.pattern.permute.xlu0 0
        %2126 = vperm.xlu0 %2125, %v1996
        %v2127 = vpop.permute.xlu0 %2126
        %2130 = vset.pattern.permute.xlu0 0
        %2131 = vperm.xlu0 %2130, %v1997
        %v2132 = vpop.permute.xlu0 %2131
        %2135 = vset.pattern.permute.xlu0 0
        %2136 = vperm.xlu0 %2135, %v1998
        %v2137 = vpop.permute.xlu0 %2136
        %2140 = vset.pattern.permute.xlu0 0
        %2141 = vperm.xlu0 %2140, %v1999
        %v2142 = vpop.permute.xlu0 %2141
        %2145 = vset.pattern.permute.xlu0 0
        %2146 = vperm.xlu0 %2145, %v2000
        %v2147 = vpop.permute.xlu0 %2146
        %2150 = vset.pattern.permute.xlu0 0
        %2151 = vperm.xlu0 %2150, %v2001
        %v2152 = vpop.permute.xlu0 %2151
        %2155 = vset.pattern.permute.xlu0 0
        %2156 = vperm.xlu0 %2155, %v2002
        %v2157 = vpop.permute.xlu0 %2156
        %2160 = vset.pattern.permute.xlu0 0
        %2161 = vperm.xlu0 %2160, %v2003
        %v2162 = vpop.permute.xlu0 %2161
        %v2228 = vunpack.c.l.b16 %v1908
        %v2229 = vunpack.c.h.b16 %v1908
        %v2230 = vunpack.c.l.b16 %v1909
        %v2231 = vunpack.c.h.b16 %v1909
        %v2232 = vunpack.c.l.b16 %v1910
        %v2233 = vunpack.c.h.b16 %v1910
        %v2234 = vunpack.c.l.b16 %v1911
        %v2235 = vunpack.c.h.b16 %v1911
        %v2236 = vunpack.c.l.b16 %v1912
        %v2237 = vunpack.c.h.b16 %v1912
        %v2238 = vunpack.c.l.b16 %v1913
        %v2239 = vunpack.c.h.b16 %v1913
        %v2240 = vunpack.c.l.b16 %v1914
        %v2241 = vunpack.c.h.b16 %v1914
        %v2242 = vunpack.c.l.b16 %v1915
        %v2243 = vunpack.c.h.b16 %v1915
        %v2244 = vunpack.c.l.b16 %v1916
        %v2245 = vunpack.c.h.b16 %v1916
        %v2246 = vunpack.c.l.b16 %v1917
        %v2247 = vunpack.c.h.b16 %v1917
        %v2248 = vunpack.c.l.b16 %v1918
        %v2249 = vunpack.c.h.b16 %v1918
        %v2250 = vunpack.c.l.b16 %v1919
        %v2251 = vunpack.c.h.b16 %v1919
        %v2252 = vunpack.c.l.b16 %v1920
        %v2253 = vunpack.c.h.b16 %v1920
        %v2254 = vunpack.c.l.b16 %v1921
        %v2255 = vunpack.c.h.b16 %v1921
        %v2256 = vunpack.c.l.b16 %v1922
        %v2257 = vunpack.c.h.b16 %v1922
        %v2258 = vunpack.c.l.b16 %v1923
        %v2259 = vunpack.c.h.b16 %v1923
        %v2260 = vunpack.c.l.b16 %v1924
        %v2261 = vunpack.c.h.b16 %v1924
        %v2262 = vunpack.c.l.b16 %v1925
        %v2263 = vunpack.c.h.b16 %v1925
        %v2264 = vunpack.c.l.b16 %v1926
        %v2265 = vunpack.c.h.b16 %v1926
        %v2266 = vunpack.c.l.b16 %v1927
        %v2267 = vunpack.c.h.b16 %v1927
        %v2268 = vunpack.c.l.b16 %v1928
        %v2269 = vunpack.c.h.b16 %v1928
        %v2270 = vunpack.c.l.b16 %v1929
        %v2271 = vunpack.c.h.b16 %v1929
        %v2272 = vunpack.c.l.b16 %v1930
        %v2273 = vunpack.c.h.b16 %v1930
        %v2274 = vunpack.c.l.b16 %v1931
        %v2275 = vunpack.c.h.b16 %v1931
        %v2276 = vunpack.c.l.b16 %v1932
        %v2277 = vunpack.c.h.b16 %v1932
        %v2278 = vunpack.c.l.b16 %v1933
        %v2279 = vunpack.c.h.b16 %v1933
        %v2280 = vunpack.c.l.b16 %v1934
        %v2281 = vunpack.c.h.b16 %v1934
        %v2282 = vunpack.c.l.b16 %v1935
        %v2283 = vunpack.c.h.b16 %v1935
        %v2284 = vunpack.c.l.b16 %v1936
        %v2285 = vunpack.c.h.b16 %v1936
        %v2286 = vunpack.c.l.b16 %v1937
        %v2287 = vunpack.c.h.b16 %v1937
        %v2288 = vunpack.c.l.b16 %v1938
        %v2289 = vunpack.c.h.b16 %v1938
        %v2290 = vunpack.c.l.b16 %v1939
        %v2291 = vunpack.c.h.b16 %v1939
        %v2292 = vunpack.c.l.b16 %v1940
        %v2293 = vunpack.c.h.b16 %v1940
        %v2294 = vunpack.c.l.b16 %v1941
        %v2295 = vunpack.c.h.b16 %v1941
        %v2296 = vunpack.c.l.b16 %v1942
        %v2297 = vunpack.c.h.b16 %v1942
        %v2298 = vunpack.c.l.b16 %v1943
        %v2299 = vunpack.c.h.b16 %v1943
        %v2300 = vunpack.c.l.b16 %v1944
        %v2301 = vunpack.c.h.b16 %v1944
        %v2302 = vunpack.c.l.b16 %v1945
        %v2303 = vunpack.c.h.b16 %v1945
        %v2304 = vunpack.c.l.b16 %v1946
        %v2305 = vunpack.c.h.b16 %v1946
        %v2306 = vunpack.c.l.b16 %v1947
        %v2307 = vunpack.c.h.b16 %v1947
        %v2308 = vunpack.c.l.b16 %v1948
        %v2309 = vunpack.c.h.b16 %v1948
        %v2310 = vunpack.c.l.b16 %v1949
        %v2311 = vunpack.c.h.b16 %v1949
        %v2312 = vunpack.c.l.b16 %v1950
        %v2313 = vunpack.c.h.b16 %v1950
        %v2314 = vunpack.c.l.b16 %v1951
        %v2315 = vunpack.c.h.b16 %v1951
        %v2316 = vunpack.c.l.b16 %v1952
        %v2317 = vunpack.c.h.b16 %v1952
        %v2318 = vunpack.c.l.b16 %v1953
        %v2319 = vunpack.c.h.b16 %v1953
        %v2320 = vunpack.c.l.b16 %v1954
        %v2321 = vunpack.c.h.b16 %v1954
        %v2322 = vunpack.c.l.b16 %v1955
        %v2323 = vunpack.c.h.b16 %v1955
        %v2324 = vunpack.c.l.b16 %v1956
        %v2325 = vunpack.c.h.b16 %v1956
        %v2326 = vunpack.c.l.b16 %v1957
        %v2327 = vunpack.c.h.b16 %v1957
        %v2328 = vunpack.c.l.b16 %v1958
        %v2329 = vunpack.c.h.b16 %v1958
        %v2330 = vunpack.c.l.b16 %v1959
        %v2331 = vunpack.c.h.b16 %v1959
        %v2332 = vunpack.c.l.b16 %v1960
        %v2333 = vunpack.c.h.b16 %v1960
        %v2334 = vunpack.c.l.b16 %v1961
        %v2335 = vunpack.c.h.b16 %v1961
        %v2336 = vunpack.c.l.b16 %v1962
        %v2337 = vunpack.c.h.b16 %v1962
        %v2338 = vunpack.c.l.b16 %v1963
        %v2339 = vunpack.c.h.b16 %v1963
        %v2340 = vunpack.c.l.b16 %v1964
        %v2341 = vunpack.c.h.b16 %v1964
        %v2342 = vunpack.c.l.b16 %v1965
        %v2343 = vunpack.c.h.b16 %v1965
        %v2344 = vunpack.c.l.b16 %v1966
        %v2345 = vunpack.c.h.b16 %v1966
        %v2346 = vunpack.c.l.b16 %v1967
        %v2347 = vunpack.c.h.b16 %v1967
        %v2348 = vunpack.c.l.b16 %v1968
        %v2349 = vunpack.c.h.b16 %v1968
        %v2350 = vunpack.c.l.b16 %v1969
        %v2351 = vunpack.c.h.b16 %v1969
        %v2352 = vunpack.c.l.b16 %v1970
        %v2353 = vunpack.c.h.b16 %v1970
        %v2354 = vunpack.c.l.b16 %v1971
        %v2355 = vunpack.c.h.b16 %v1971
        %v2356 = vpack.c.b16 %v2232, %v2228
        %v2357 = vpack.c.b16 %v2233, %v2229
        %v2358 = vpack.c.b16 %v2234, %v2230
        %v2359 = vpack.c.b16 %v2235, %v2231
        %v2360 = vpack.c.b16 %v2240, %v2236
        %v2361 = vpack.c.b16 %v2241, %v2237
        %v2362 = vpack.c.b16 %v2242, %v2238
        %v2363 = vpack.c.b16 %v2243, %v2239
        %v2364 = vpack.c.b16 %v2248, %v2244
        %v2365 = vpack.c.b16 %v2249, %v2245
        %v2366 = vpack.c.b16 %v2250, %v2246
        %v2367 = vpack.c.b16 %v2251, %v2247
        %v2368 = vpack.c.b16 %v2256, %v2252
        %v2369 = vpack.c.b16 %v2257, %v2253
        %v2370 = vpack.c.b16 %v2258, %v2254
        %v2371 = vpack.c.b16 %v2259, %v2255
        %v2372 = vpack.c.b16 %v2264, %v2260
        %v2373 = vpack.c.b16 %v2265, %v2261
        %v2374 = vpack.c.b16 %v2266, %v2262
        %v2375 = vpack.c.b16 %v2267, %v2263
        %v2376 = vpack.c.b16 %v2272, %v2268
        %v2377 = vpack.c.b16 %v2273, %v2269
        %v2378 = vpack.c.b16 %v2274, %v2270
        %v2379 = vpack.c.b16 %v2275, %v2271
        %v2380 = vpack.c.b16 %v2280, %v2276
        %v2381 = vpack.c.b16 %v2281, %v2277
        %v2382 = vpack.c.b16 %v2282, %v2278
        %v2383 = vpack.c.b16 %v2283, %v2279
        %v2384 = vpack.c.b16 %v2288, %v2284
        %v2385 = vpack.c.b16 %v2289, %v2285
        %v2386 = vpack.c.b16 %v2290, %v2286
        %v2387 = vpack.c.b16 %v2291, %v2287
        %v2388 = vpack.c.b16 %v2296, %v2292
        %v2389 = vpack.c.b16 %v2297, %v2293
        %v2390 = vpack.c.b16 %v2298, %v2294
        %v2391 = vpack.c.b16 %v2299, %v2295
        %v2392 = vpack.c.b16 %v2304, %v2300
        %v2393 = vpack.c.b16 %v2305, %v2301
        %v2394 = vpack.c.b16 %v2306, %v2302
        %v2395 = vpack.c.b16 %v2307, %v2303
        %v2396 = vpack.c.b16 %v2312, %v2308
        %v2397 = vpack.c.b16 %v2313, %v2309
        %v2398 = vpack.c.b16 %v2314, %v2310
        %v2399 = vpack.c.b16 %v2315, %v2311
        %v2400 = vpack.c.b16 %v2320, %v2316
        %v2401 = vpack.c.b16 %v2321, %v2317
        %v2402 = vpack.c.b16 %v2322, %v2318
        %v2403 = vpack.c.b16 %v2323, %v2319
        %v2404 = vpack.c.b16 %v2328, %v2324
        %v2405 = vpack.c.b16 %v2329, %v2325
        %v2406 = vpack.c.b16 %v2330, %v2326
        %v2407 = vpack.c.b16 %v2331, %v2327
        %v2408 = vpack.c.b16 %v2336, %v2332
        %v2409 = vpack.c.b16 %v2337, %v2333
        %v2410 = vpack.c.b16 %v2338, %v2334
        %v2411 = vpack.c.b16 %v2339, %v2335
        %v2412 = vpack.c.b16 %v2344, %v2340
        %v2413 = vpack.c.b16 %v2345, %v2341
        %v2414 = vpack.c.b16 %v2346, %v2342
        %v2415 = vpack.c.b16 %v2347, %v2343
        %v2416 = vpack.c.b16 %v2352, %v2348
        %v2417 = vpack.c.b16 %v2353, %v2349
        %v2418 = vpack.c.b16 %v2354, %v2350
        %v2419 = vpack.c.b16 %v2355, %v2351
        %2484 = vmatprep.subr.bf16.mxu0 %v1859
        %2485 = vmatpush1.bf16.msra.mxu0 %v1858
        %2486 = vmatprep.subr.bf16.mxu0 %v1857
        %2487 = vmatpush1.bf16.msra.mxu0 %v1856
        %2488 = vmatprep.subr.bf16.mxu0 %v1855
        %2489 = vmatpush1.bf16.msra.mxu0 %v1854
        %2490 = vmatprep.subr.bf16.mxu0 %v1853
        %2491 = vmatpush1.bf16.msra.mxu0 %v1852
        %2492 = vmatprep.subr.bf16.mxu0 %v1851
        %2493 = vmatpush1.bf16.msra.mxu0 %v1850
        %2494 = vmatprep.subr.bf16.mxu0 %v1849
        %2495 = vmatpush1.bf16.msra.mxu0 %v1848
        %2496 = vmatprep.subr.bf16.mxu0 %v1847
        %2497 = vmatpush1.bf16.msra.mxu0 %v1846
        %2498 = vmatprep.subr.bf16.mxu0 %v1845
        %2499 = vmatpush1.bf16.msra.mxu0 %v1844
        %2500 = vmatprep.subr.bf16.mxu0 %v1875
        %2501 = vmatpush2.bf16.msra.mxu0 %v1874
        %2502 = vmatprep.subr.bf16.mxu0 %v1873
        %2503 = vmatpush2.bf16.msra.mxu0 %v1872
        %2504 = vmatprep.subr.bf16.mxu0 %v1871
        %2505 = vmatpush2.bf16.msra.mxu0 %v1870
        %2506 = vmatprep.subr.bf16.mxu0 %v1869
        %2507 = vmatpush2.bf16.msra.mxu0 %v1868
        %2508 = vmatprep.subr.bf16.mxu0 %v1867
        %2509 = vmatpush2.bf16.msra.mxu0 %v1866
        %2510 = vmatprep.subr.bf16.mxu0 %v1865
        %2511 = vmatpush2.bf16.msra.mxu0 %v1864
        %2512 = vmatprep.subr.bf16.mxu0 %v1863
        %2513 = vmatpush2.bf16.msra.mxu0 %v1862
        %2514 = vmatprep.subr.bf16.mxu0 %v1861
        %2515 = vmatpush2.bf16.msra.mxu0 %v1860
        %2516 = vmatprep.mubr.bf16.mxu0 %v2357
        %2517 = vmatmul.mubr.bf16.gmra.mxu0 %v2356
        %v2518 = vpop.f32.mrf.mxu0
        %v2519 = vadd.f32 %v2007, %v2518
        %v2520 = vpop.f32.mrf.mxu0
        %v2521 = vadd.f32 %v2007, %v2520
        %v2522 = vpop.f32.mrf.mxu0
        %v2523 = vadd.f32 %v2012, %v2522
        %v2524 = vpop.f32.mrf.mxu0
        %v2525 = vadd.f32 %v2012, %v2524
        %2526 = vmatprep.mubr.bf16.mxu0 %v2361
        %2527 = vmatmul.mubr.bf16.gmra.mxu0 %v2360
        %v2528 = vpop.f32.mrf.mxu0
        %v2529 = vadd.f32 %v2017, %v2528
        %v2530 = vpop.f32.mrf.mxu0
        %v2531 = vadd.f32 %v2017, %v2530
        %v2532 = vpop.f32.mrf.mxu0
        %v2533 = vadd.f32 %v2022, %v2532
        %v2534 = vpop.f32.mrf.mxu0
        %v2535 = vadd.f32 %v2022, %v2534
        %2536 = vmatprep.mubr.bf16.mxu0 %v2365
        %2537 = vmatmul.mubr.bf16.gmra.mxu0 %v2364
        %v2538 = vpop.f32.mrf.mxu0
        %v2539 = vadd.f32 %v2027, %v2538
        %v2540 = vpop.f32.mrf.mxu0
        %v2541 = vadd.f32 %v2027, %v2540
        %v2542 = vpop.f32.mrf.mxu0
        %v2543 = vadd.f32 %v2032, %v2542
        %v2544 = vpop.f32.mrf.mxu0
        %v2545 = vadd.f32 %v2032, %v2544
        %2546 = vmatprep.mubr.bf16.mxu0 %v2369
        %2547 = vmatmul.mubr.bf16.gmra.mxu0 %v2368
        %v2548 = vpop.f32.mrf.mxu0
        %v2549 = vadd.f32 %v2037, %v2548
        %v2550 = vpop.f32.mrf.mxu0
        %v2551 = vadd.f32 %v2037, %v2550
        %v2552 = vpop.f32.mrf.mxu0
        %v2553 = vadd.f32 %v2042, %v2552
        %v2554 = vpop.f32.mrf.mxu0
        %v2555 = vadd.f32 %v2042, %v2554
        %2556 = vmatprep.mubr.bf16.mxu0 %v2373
        %2557 = vmatmul.mubr.bf16.gmra.mxu0 %v2372
        %v2558 = vpop.f32.mrf.mxu0
        %v2559 = vadd.f32 %v2047, %v2558
        %v2560 = vpop.f32.mrf.mxu0
        %v2561 = vadd.f32 %v2047, %v2560
        %v2562 = vpop.f32.mrf.mxu0
        %v2563 = vadd.f32 %v2052, %v2562
        %v2564 = vpop.f32.mrf.mxu0
        %v2565 = vadd.f32 %v2052, %v2564
        %2566 = vmatprep.mubr.bf16.mxu0 %v2377
        %2567 = vmatmul.mubr.bf16.gmra.mxu0 %v2376
        %v2568 = vpop.f32.mrf.mxu0
        %v2569 = vadd.f32 %v2057, %v2568
        %v2570 = vpop.f32.mrf.mxu0
        %v2571 = vadd.f32 %v2057, %v2570
        %v2572 = vpop.f32.mrf.mxu0
        %v2573 = vadd.f32 %v2062, %v2572
        %v2574 = vpop.f32.mrf.mxu0
        %v2575 = vadd.f32 %v2062, %v2574
        %2576 = vmatprep.mubr.bf16.mxu0 %v2381
        %2577 = vmatmul.mubr.bf16.gmra.mxu0 %v2380
        %v2578 = vpop.f32.mrf.mxu0
        %v2579 = vadd.f32 %v2067, %v2578
        %v2580 = vpop.f32.mrf.mxu0
        %v2581 = vadd.f32 %v2067, %v2580
        %v2582 = vpop.f32.mrf.mxu0
        %v2583 = vadd.f32 %v2072, %v2582
        %v2584 = vpop.f32.mrf.mxu0
        %v2585 = vadd.f32 %v2072, %v2584
        %2586 = vmatprep.mubr.bf16.mxu0 %v2385
        %2587 = vmatmul.mubr.bf16.gmra.mxu0 %v2384
        %v2588 = vpop.f32.mrf.mxu0
        %v2589 = vadd.f32 %v2077, %v2588
        %v2590 = vpop.f32.mrf.mxu0
        %v2591 = vadd.f32 %v2077, %v2590
        %v2592 = vpop.f32.mrf.mxu0
        %v2593 = vadd.f32 %v2082, %v2592
        %v2594 = vpop.f32.mrf.mxu0
        %v2595 = vadd.f32 %v2082, %v2594
        %2596 = vmatprep.mubr.bf16.mxu0 %v2389
        %2597 = vmatmul.mubr.bf16.gmra.mxu0 %v2388
        %v2598 = vpop.f32.mrf.mxu0
        %v2599 = vadd.f32 %v2087, %v2598
        %v2600 = vpop.f32.mrf.mxu0
        %v2601 = vadd.f32 %v2087, %v2600
        %v2602 = vpop.f32.mrf.mxu0
        %v2603 = vadd.f32 %v2092, %v2602
        %v2604 = vpop.f32.mrf.mxu0
        %v2605 = vadd.f32 %v2092, %v2604
        %2606 = vmatprep.mubr.bf16.mxu0 %v2393
        %2607 = vmatmul.mubr.bf16.gmra.mxu0 %v2392
        %v2608 = vpop.f32.mrf.mxu0
        %v2609 = vadd.f32 %v2097, %v2608
        %v2610 = vpop.f32.mrf.mxu0
        %v2611 = vadd.f32 %v2097, %v2610
        %v2612 = vpop.f32.mrf.mxu0
        %v2613 = vadd.f32 %v2102, %v2612
        %v2614 = vpop.f32.mrf.mxu0
        %v2615 = vadd.f32 %v2102, %v2614
        %2616 = vmatprep.mubr.bf16.mxu0 %v2397
        %2617 = vmatmul.mubr.bf16.gmra.mxu0 %v2396
        %v2618 = vpop.f32.mrf.mxu0
        %v2619 = vadd.f32 %v2107, %v2618
        %v2620 = vpop.f32.mrf.mxu0
        %v2621 = vadd.f32 %v2107, %v2620
        %v2622 = vpop.f32.mrf.mxu0
        %v2623 = vadd.f32 %v2112, %v2622
        %v2624 = vpop.f32.mrf.mxu0
        %v2625 = vadd.f32 %v2112, %v2624
        %2626 = vmatprep.mubr.bf16.mxu0 %v2401
        %2627 = vmatmul.mubr.bf16.gmra.mxu0 %v2400
        %v2628 = vpop.f32.mrf.mxu0
        %v2629 = vadd.f32 %v2117, %v2628
        %v2630 = vpop.f32.mrf.mxu0
        %v2631 = vadd.f32 %v2117, %v2630
        %v2632 = vpop.f32.mrf.mxu0
        %v2633 = vadd.f32 %v2122, %v2632
        %v2634 = vpop.f32.mrf.mxu0
        %v2635 = vadd.f32 %v2122, %v2634
        %2636 = vmatprep.mubr.bf16.mxu0 %v2405
        %2637 = vmatmul.mubr.bf16.gmra.mxu0 %v2404
        %v2638 = vpop.f32.mrf.mxu0
        %v2639 = vadd.f32 %v2127, %v2638
        %v2640 = vpop.f32.mrf.mxu0
        %v2641 = vadd.f32 %v2127, %v2640
        %v2642 = vpop.f32.mrf.mxu0
        %v2643 = vadd.f32 %v2132, %v2642
        %v2644 = vpop.f32.mrf.mxu0
        %v2645 = vadd.f32 %v2132, %v2644
        %2646 = vmatprep.mubr.bf16.mxu0 %v2409
        %2647 = vmatmul.mubr.bf16.gmra.mxu0 %v2408
        %v2648 = vpop.f32.mrf.mxu0
        %v2649 = vadd.f32 %v2137, %v2648
        %v2650 = vpop.f32.mrf.mxu0
        %v2651 = vadd.f32 %v2137, %v2650
        %v2652 = vpop.f32.mrf.mxu0
        %v2653 = vadd.f32 %v2142, %v2652
        %v2654 = vpop.f32.mrf.mxu0
        %v2655 = vadd.f32 %v2142, %v2654
        %2656 = vmatprep.mubr.bf16.mxu0 %v2413
        %2657 = vmatmul.mubr.bf16.gmra.mxu0 %v2412
        %v2658 = vpop.f32.mrf.mxu0
        %v2659 = vadd.f32 %v2147, %v2658
        %v2660 = vpop.f32.mrf.mxu0
        %v2661 = vadd.f32 %v2147, %v2660
        %v2662 = vpop.f32.mrf.mxu0
        %v2663 = vadd.f32 %v2152, %v2662
        %v2664 = vpop.f32.mrf.mxu0
        %v2665 = vadd.f32 %v2152, %v2664
        %2666 = vmatprep.mubr.bf16.mxu0 %v2417
        %2667 = vmatmul.mubr.bf16.gmra.mxu0 %v2416
        %v2668 = vpop.f32.mrf.mxu0
        %v2669 = vadd.f32 %v2157, %v2668
        %v2670 = vpop.f32.mrf.mxu0
        %v2671 = vadd.f32 %v2157, %v2670
        %v2672 = vpop.f32.mrf.mxu0
        %v2673 = vadd.f32 %v2162, %v2672
        %v2674 = vpop.f32.mrf.mxu0
        %v2675 = vadd.f32 %v2162, %v2674
        %2676 = vdwg.mxu0
        %2677 = vmatprep.subr.bf16.mxu0 %v1891
        %2678 = vmatpush1.bf16.msra.mxu0 %v1890
        %2679 = vmatprep.subr.bf16.mxu0 %v1889
        %2680 = vmatpush1.bf16.msra.mxu0 %v1888
        %2681 = vmatprep.subr.bf16.mxu0 %v1887
        %2682 = vmatpush1.bf16.msra.mxu0 %v1886
        %2683 = vmatprep.subr.bf16.mxu0 %v1885
        %2684 = vmatpush1.bf16.msra.mxu0 %v1884
        %2685 = vmatprep.subr.bf16.mxu0 %v1883
        %2686 = vmatpush1.bf16.msra.mxu0 %v1882
        %2687 = vmatprep.subr.bf16.mxu0 %v1881
        %2688 = vmatpush1.bf16.msra.mxu0 %v1880
        %2689 = vmatprep.subr.bf16.mxu0 %v1879
        %2690 = vmatpush1.bf16.msra.mxu0 %v1878
        %2691 = vmatprep.subr.bf16.mxu0 %v1877
        %2692 = vmatpush1.bf16.msra.mxu0 %v1876
        %2693 = vmatprep.subr.bf16.mxu0 %v1907
        %2694 = vmatpush2.bf16.msra.mxu0 %v1906
        %2695 = vmatprep.subr.bf16.mxu0 %v1905
        %2696 = vmatpush2.bf16.msra.mxu0 %v1904
        %2697 = vmatprep.subr.bf16.mxu0 %v1903
        %2698 = vmatpush2.bf16.msra.mxu0 %v1902
        %2699 = vmatprep.subr.bf16.mxu0 %v1901
        %2700 = vmatpush2.bf16.msra.mxu0 %v1900
        %2701 = vmatprep.subr.bf16.mxu0 %v1899
        %2702 = vmatpush2.bf16.msra.mxu0 %v1898
        %2703 = vmatprep.subr.bf16.mxu0 %v1897
        %2704 = vmatpush2.bf16.msra.mxu0 %v1896
        %2705 = vmatprep.subr.bf16.mxu0 %v1895
        %2706 = vmatpush2.bf16.msra.mxu0 %v1894
        %2707 = vmatprep.subr.bf16.mxu0 %v1893
        %2708 = vmatpush2.bf16.msra.mxu0 %v1892
        %2709 = vmatprep.mubr.bf16.mxu0 %v2359
        %2710 = vmatmul.mubr.bf16.gmra.mxu0 %v2358
        %v2711 = vpop.f32.mrf.mxu0
        %v2712 = vadd.f32 %v2519, %v2711
        %v2713 = vpop.f32.mrf.mxu0
        %v2714 = vadd.f32 %v2521, %v2713
        %v2715 = vpop.f32.mrf.mxu0
        %v2716 = vadd.f32 %v2523, %v2715
        %v2717 = vpop.f32.mrf.mxu0
        %v2718 = vadd.f32 %v2525, %v2717
        %2719 = vmatprep.mubr.bf16.mxu0 %v2363
        %2720 = vmatmul.mubr.bf16.gmra.mxu0 %v2362
        %v2721 = vpop.f32.mrf.mxu0
        %v2722 = vadd.f32 %v2529, %v2721
        %v2723 = vpop.f32.mrf.mxu0
        %v2724 = vadd.f32 %v2531, %v2723
        %v2725 = vpop.f32.mrf.mxu0
        %v2726 = vadd.f32 %v2533, %v2725
        %v2727 = vpop.f32.mrf.mxu0
        %v2728 = vadd.f32 %v2535, %v2727
        %2729 = vmatprep.mubr.bf16.mxu0 %v2367
        %2730 = vmatmul.mubr.bf16.gmra.mxu0 %v2366
        %v2731 = vpop.f32.mrf.mxu0
        %v2732 = vadd.f32 %v2539, %v2731
        %v2733 = vpop.f32.mrf.mxu0
        %v2734 = vadd.f32 %v2541, %v2733
        %v2735 = vpop.f32.mrf.mxu0
        %v2736 = vadd.f32 %v2543, %v2735
        %v2737 = vpop.f32.mrf.mxu0
        %v2738 = vadd.f32 %v2545, %v2737
        %2739 = vmatprep.mubr.bf16.mxu0 %v2371
        %2740 = vmatmul.mubr.bf16.gmra.mxu0 %v2370
        %v2741 = vpop.f32.mrf.mxu0
        %v2742 = vadd.f32 %v2549, %v2741
        %v2743 = vpop.f32.mrf.mxu0
        %v2744 = vadd.f32 %v2551, %v2743
        %v2745 = vpop.f32.mrf.mxu0
        %v2746 = vadd.f32 %v2553, %v2745
        %v2747 = vpop.f32.mrf.mxu0
        %v2748 = vadd.f32 %v2555, %v2747
        %2749 = vmatprep.mubr.bf16.mxu0 %v2375
        %2750 = vmatmul.mubr.bf16.gmra.mxu0 %v2374
        %v2751 = vpop.f32.mrf.mxu0
        %v2752 = vadd.f32 %v2559, %v2751
        %v2753 = vpop.f32.mrf.mxu0
        %v2754 = vadd.f32 %v2561, %v2753
        %v2755 = vpop.f32.mrf.mxu0
        %v2756 = vadd.f32 %v2563, %v2755
        %v2757 = vpop.f32.mrf.mxu0
        %v2758 = vadd.f32 %v2565, %v2757
        %2759 = vmatprep.mubr.bf16.mxu0 %v2379
        %2760 = vmatmul.mubr.bf16.gmra.mxu0 %v2378
        %v2761 = vpop.f32.mrf.mxu0
        %v2762 = vadd.f32 %v2569, %v2761
        %v2763 = vpop.f32.mrf.mxu0
        %v2764 = vadd.f32 %v2571, %v2763
        %v2765 = vpop.f32.mrf.mxu0
        %v2766 = vadd.f32 %v2573, %v2765
        %v2767 = vpop.f32.mrf.mxu0
        %v2768 = vadd.f32 %v2575, %v2767
        %2769 = vmatprep.mubr.bf16.mxu0 %v2383
        %2770 = vmatmul.mubr.bf16.gmra.mxu0 %v2382
        %v2771 = vpop.f32.mrf.mxu0
        %v2772 = vadd.f32 %v2579, %v2771
        %v2773 = vpop.f32.mrf.mxu0
        %v2774 = vadd.f32 %v2581, %v2773
        %v2775 = vpop.f32.mrf.mxu0
        %v2776 = vadd.f32 %v2583, %v2775
        %v2777 = vpop.f32.mrf.mxu0
        %v2778 = vadd.f32 %v2585, %v2777
        %2779 = vmatprep.mubr.bf16.mxu0 %v2387
        %2780 = vmatmul.mubr.bf16.gmra.mxu0 %v2386
        %v2781 = vpop.f32.mrf.mxu0
        %v2782 = vadd.f32 %v2589, %v2781
        %v2783 = vpop.f32.mrf.mxu0
        %v2784 = vadd.f32 %v2591, %v2783
        %v2785 = vpop.f32.mrf.mxu0
        %v2786 = vadd.f32 %v2593, %v2785
        %v2787 = vpop.f32.mrf.mxu0
        %v2788 = vadd.f32 %v2595, %v2787
        %2789 = vmatprep.mubr.bf16.mxu0 %v2391
        %2790 = vmatmul.mubr.bf16.gmra.mxu0 %v2390
        %v2791 = vpop.f32.mrf.mxu0
        %v2792 = vadd.f32 %v2599, %v2791
        %v2793 = vpop.f32.mrf.mxu0
        %v2794 = vadd.f32 %v2601, %v2793
        %v2795 = vpop.f32.mrf.mxu0
        %v2796 = vadd.f32 %v2603, %v2795
        %v2797 = vpop.f32.mrf.mxu0
        %v2798 = vadd.f32 %v2605, %v2797
        %2799 = vmatprep.mubr.bf16.mxu0 %v2395
        %2800 = vmatmul.mubr.bf16.gmra.mxu0 %v2394
        %v2801 = vpop.f32.mrf.mxu0
        %v2802 = vadd.f32 %v2609, %v2801
        %v2803 = vpop.f32.mrf.mxu0
        %v2804 = vadd.f32 %v2611, %v2803
        %v2805 = vpop.f32.mrf.mxu0
        %v2806 = vadd.f32 %v2613, %v2805
        %v2807 = vpop.f32.mrf.mxu0
        %v2808 = vadd.f32 %v2615, %v2807
        %2809 = vmatprep.mubr.bf16.mxu0 %v2399
        %2810 = vmatmul.mubr.bf16.gmra.mxu0 %v2398
        %v2811 = vpop.f32.mrf.mxu0
        %v2812 = vadd.f32 %v2619, %v2811
        %v2813 = vpop.f32.mrf.mxu0
        %v2814 = vadd.f32 %v2621, %v2813
        %v2815 = vpop.f32.mrf.mxu0
        %v2816 = vadd.f32 %v2623, %v2815
        %v2817 = vpop.f32.mrf.mxu0
        %v2818 = vadd.f32 %v2625, %v2817
        %2819 = vmatprep.mubr.bf16.mxu0 %v2403
        %2820 = vmatmul.mubr.bf16.gmra.mxu0 %v2402
        %v2821 = vpop.f32.mrf.mxu0
        %v2822 = vadd.f32 %v2629, %v2821
        %v2823 = vpop.f32.mrf.mxu0
        %v2824 = vadd.f32 %v2631, %v2823
        %v2825 = vpop.f32.mrf.mxu0
        %v2826 = vadd.f32 %v2633, %v2825
        %v2827 = vpop.f32.mrf.mxu0
        %v2828 = vadd.f32 %v2635, %v2827
        %2829 = vmatprep.mubr.bf16.mxu0 %v2407
        %2830 = vmatmul.mubr.bf16.gmra.mxu0 %v2406
        %v2831 = vpop.f32.mrf.mxu0
        %v2832 = vadd.f32 %v2639, %v2831
        %v2833 = vpop.f32.mrf.mxu0
        %v2834 = vadd.f32 %v2641, %v2833
        %v2835 = vpop.f32.mrf.mxu0
        %v2836 = vadd.f32 %v2643, %v2835
        %v2837 = vpop.f32.mrf.mxu0
        %v2838 = vadd.f32 %v2645, %v2837
        %2839 = vmatprep.mubr.bf16.mxu0 %v2411
        %2840 = vmatmul.mubr.bf16.gmra.mxu0 %v2410
        %v2841 = vpop.f32.mrf.mxu0
        %v2842 = vadd.f32 %v2649, %v2841
        %v2843 = vpop.f32.mrf.mxu0
        %v2844 = vadd.f32 %v2651, %v2843
        %v2845 = vpop.f32.mrf.mxu0
        %v2846 = vadd.f32 %v2653, %v2845
        %v2847 = vpop.f32.mrf.mxu0
        %v2848 = vadd.f32 %v2655, %v2847
        %2849 = vmatprep.mubr.bf16.mxu0 %v2415
        %2850 = vmatmul.mubr.bf16.gmra.mxu0 %v2414
        %v2851 = vpop.f32.mrf.mxu0
        %v2852 = vadd.f32 %v2659, %v2851
        %v2853 = vpop.f32.mrf.mxu0
        %v2854 = vadd.f32 %v2661, %v2853
        %v2855 = vpop.f32.mrf.mxu0
        %v2856 = vadd.f32 %v2663, %v2855
        %v2857 = vpop.f32.mrf.mxu0
        %v2858 = vadd.f32 %v2665, %v2857
        %2859 = vmatprep.mubr.bf16.mxu0 %v2419
        %2860 = vmatmul.mubr.bf16.gmra.mxu0 %v2418
        %v2861 = vpop.f32.mrf.mxu0
        %v2862 = vadd.f32 %v2669, %v2861
        %v2863 = vpop.f32.mrf.mxu0
        %v2864 = vadd.f32 %v2671, %v2863
        %v2865 = vpop.f32.mrf.mxu0
        %v2866 = vadd.f32 %v2673, %v2865
        %v2867 = vpop.f32.mrf.mxu0
        %v2868 = vadd.f32 %v2675, %v2867
        %2869 = vdwg.mxu0
        %v2870 = vmax.f32 %v2712, 0.0
        %v2871 = vmax.f32 %v2714, 0.0
        %v2872 = vmax.f32 %v2716, 0.0
        %v2873 = vmax.f32 %v2718, 0.0
        %v2874 = vmax.f32 %v2722, 0.0
        %v2875 = vmax.f32 %v2724, 0.0
        %v2876 = vmax.f32 %v2726, 0.0
        %v2877 = vmax.f32 %v2728, 0.0
        %v2878 = vmax.f32 %v2732, 0.0
        %v2879 = vmax.f32 %v2734, 0.0
        %v2880 = vmax.f32 %v2736, 0.0
        %v2881 = vmax.f32 %v2738, 0.0
        %v2882 = vmax.f32 %v2742, 0.0
        %v2883 = vmax.f32 %v2744, 0.0
        %v2884 = vmax.f32 %v2746, 0.0
        %v2885 = vmax.f32 %v2748, 0.0
        %v2886 = vmax.f32 %v2752, 0.0
        %v2887 = vmax.f32 %v2754, 0.0
        %v2888 = vmax.f32 %v2756, 0.0
        %v2889 = vmax.f32 %v2758, 0.0
        %v2890 = vmax.f32 %v2762, 0.0
        %v2891 = vmax.f32 %v2764, 0.0
        %v2892 = vmax.f32 %v2766, 0.0
        %v2893 = vmax.f32 %v2768, 0.0
        %v2894 = vmax.f32 %v2772, 0.0
        %v2895 = vmax.f32 %v2774, 0.0
        %v2896 = vmax.f32 %v2776, 0.0
        %v2897 = vmax.f32 %v2778, 0.0
        %v2898 = vmax.f32 %v2782, 0.0
        %v2899 = vmax.f32 %v2784, 0.0
        %v2900 = vmax.f32 %v2786, 0.0
        %v2901 = vmax.f32 %v2788, 0.0
        %v2902 = vmax.f32 %v2792, 0.0
        %v2903 = vmax.f32 %v2794, 0.0
        %v2904 = vmax.f32 %v2796, 0.0
        %v2905 = vmax.f32 %v2798, 0.0
        %v2906 = vmax.f32 %v2802, 0.0
        %v2907 = vmax.f32 %v2804, 0.0
        %v2908 = vmax.f32 %v2806, 0.0
        %v2909 = vmax.f32 %v2808, 0.0
        %v2910 = vmax.f32 %v2812, 0.0
        %v2911 = vmax.f32 %v2814, 0.0
        %v2912 = vmax.f32 %v2816, 0.0
        %v2913 = vmax.f32 %v2818, 0.0
        %v2914 = vmax.f32 %v2822, 0.0
        %v2915 = vmax.f32 %v2824, 0.0
        %v2916 = vmax.f32 %v2826, 0.0
        %v2917 = vmax.f32 %v2828, 0.0
        %v2918 = vmax.f32 %v2832, 0.0
        %v2919 = vmax.f32 %v2834, 0.0
        %v2920 = vmax.f32 %v2836, 0.0
        %v2921 = vmax.f32 %v2838, 0.0
        %v2922 = vmax.f32 %v2842, 0.0
        %v2923 = vmax.f32 %v2844, 0.0
        %v2924 = vmax.f32 %v2846, 0.0
        %v2925 = vmax.f32 %v2848, 0.0
        %v2926 = vmax.f32 %v2852, 0.0
        %v2927 = vmax.f32 %v2854, 0.0
        %v2928 = vmax.f32 %v2856, 0.0
        %v2929 = vmax.f32 %v2858, 0.0
        %v2930 = vmax.f32 %v2862, 0.0
        %v2931 = vmax.f32 %v2864, 0.0
        %v2932 = vmax.f32 %v2866, 0.0
        %v2933 = vmax.f32 %v2868, 0.0
        %v2934 = vpack.c.bf16 %v2872, %v2870
        %v2935 = vpack.c.bf16 %v2873, %v2871
        %v2936 = vpack.c.bf16 %v2876, %v2874
        %v2937 = vpack.c.bf16 %v2877, %v2875
        %v2938 = vpack.c.bf16 %v2880, %v2878
        %v2939 = vpack.c.bf16 %v2881, %v2879
        %v2940 = vpack.c.bf16 %v2884, %v2882
        %v2941 = vpack.c.bf16 %v2885, %v2883
        %v2942 = vpack.c.bf16 %v2888, %v2886
        %v2943 = vpack.c.bf16 %v2889, %v2887
        %v2944 = vpack.c.bf16 %v2892, %v2890
        %v2945 = vpack.c.bf16 %v2893, %v2891
        %v2946 = vpack.c.bf16 %v2896, %v2894
        %v2947 = vpack.c.bf16 %v2897, %v2895
        %v2948 = vpack.c.bf16 %v2900, %v2898
        %v2949 = vpack.c.bf16 %v2901, %v2899
        %v2950 = vpack.c.bf16 %v2904, %v2902
        %v2951 = vpack.c.bf16 %v2905, %v2903
        %v2952 = vpack.c.bf16 %v2908, %v2906
        %v2953 = vpack.c.bf16 %v2909, %v2907
        %v2954 = vpack.c.bf16 %v2912, %v2910
        %v2955 = vpack.c.bf16 %v2913, %v2911
        %v2956 = vpack.c.bf16 %v2916, %v2914
        %v2957 = vpack.c.bf16 %v2917, %v2915
        %v2958 = vpack.c.bf16 %v2920, %v2918
        %v2959 = vpack.c.bf16 %v2921, %v2919
        %v2960 = vpack.c.bf16 %v2924, %v2922
        %v2961 = vpack.c.bf16 %v2925, %v2923
        %v2962 = vpack.c.bf16 %v2928, %v2926
        %v2963 = vpack.c.bf16 %v2929, %v2927
        %v2964 = vpack.c.bf16 %v2932, %v2930
        %v2965 = vpack.c.bf16 %v2933, %v2931
        %v2966 = vld [vmem:[%s5] sm:$0xff]
        %v2967 = vld [vmem:[%s5 + $0x8] sm:$0xff]
        %v2968 = vld [vmem:[%s5 + $0x10] sm:$0xff]
        %v2969 = vld [vmem:[%s5 + $0x18] sm:$0xff]
        %v2970 = vld [vmem:[%s5 + $0x20] sm:$0xff]
        %v2971 = vld [vmem:[%s5 + $0x28] sm:$0xff]
        %v2972 = vld [vmem:[%s5 + $0x30] sm:$0xff]
        %v2973 = vld [vmem:[%s5 + $0x38] sm:$0xff]
        %v2974 = vld [vmem:[%s5 + $0x40] sm:$0xff]
        %v2975 = vld [vmem:[%s5 + $0x48] sm:$0xff]
        %v2976 = vld [vmem:[%s5 + $0x50] sm:$0xff]
        %v2977 = vld [vmem:[%s5 + $0x58] sm:$0xff]
        %v2978 = vld [vmem:[%s5 + $0x60] sm:$0xff]
        %v2979 = vld [vmem:[%s5 + $0x68] sm:$0xff]
        %v2980 = vld [vmem:[%s5 + $0x70] sm:$0xff]
        %v2981 = vld [vmem:[%s5 + $0x78] sm:$0xff]
        %v2982 = vld [vmem:[%s6] sm:$0xff]
        %v2983 = vld [vmem:[%s6 + $0x8] sm:$0xff]
        %v2984 = vld [vmem:[%s6 + $0x10] sm:$0xff]
        %v2985 = vld [vmem:[%s6 + $0x18] sm:$0xff]
        %v2986 = vld [vmem:[%s6 + $0x20] sm:$0xff]
        %v2987 = vld [vmem:[%s6 + $0x28] sm:$0xff]
        %v2988 = vld [vmem:[%s6 + $0x30] sm:$0xff]
        %v2989 = vld [vmem:[%s6 + $0x38] sm:$0xff]
        %v2990 = vld [vmem:[%s6 + $0x40] sm:$0xff]
        %v2991 = vld [vmem:[%s6 + $0x48] sm:$0xff]
        %v2992 = vld [vmem:[%s6 + $0x50] sm:$0xff]
        %v2993 = vld [vmem:[%s6 + $0x58] sm:$0xff]
        %v2994 = vld [vmem:[%s6 + $0x60] sm:$0xff]
        %v2995 = vld [vmem:[%s6 + $0x68] sm:$0xff]
        %v2996 = vld [vmem:[%s6 + $0x70] sm:$0xff]
        %v2997 = vld [vmem:[%s6 + $0x78] sm:$0xff]
        %2999 = vset.pattern.permute.xlu0 0
        %3000 = vperm.xlu0 %2999, %v2982
        %v3001 = vpop.permute.xlu0 %3000
        %3004 = vset.pattern.permute.xlu0 0
        %3005 = vperm.xlu0 %3004, %v2983
        %v3006 = vpop.permute.xlu0 %3005
        %3009 = vset.pattern.permute.xlu0 0
        %3010 = vperm.xlu0 %3009, %v2984
        %v3011 = vpop.permute.xlu0 %3010
        %3014 = vset.pattern.permute.xlu0 0
        %3015 = vperm.xlu0 %3014, %v2985
        %v3016 = vpop.permute.xlu0 %3015
        %3019 = vset.pattern.permute.xlu0 0
        %3020 = vperm.xlu0 %3019, %v2986
        %v3021 = vpop.permute.xlu0 %3020
        %3024 = vset.pattern.permute.xlu0 0
        %3025 = vperm.xlu0 %3024, %v2987
        %v3026 = vpop.permute.xlu0 %3025
        %3029 = vset.pattern.permute.xlu0 0
        %3030 = vperm.xlu0 %3029, %v2988
        %v3031 = vpop.permute.xlu0 %3030
        %3034 = vset.pattern.permute.xlu0 0
        %3035 = vperm.xlu0 %3034, %v2989
        %v3036 = vpop.permute.xlu0 %3035
        %3039 = vset.pattern.permute.xlu0 0
        %3040 = vperm.xlu0 %3039, %v2990
        %v3041 = vpop.permute.xlu0 %3040
        %3044 = vset.pattern.permute.xlu0 0
        %3045 = vperm.xlu0 %3044, %v2991
        %v3046 = vpop.permute.xlu0 %3045
        %3049 = vset.pattern.permute.xlu0 0
        %3050 = vperm.xlu0 %3049, %v2992
        %v3051 = vpop.permute.xlu0 %3050
        %3054 = vset.pattern.permute.xlu0 0
        %3055 = vperm.xlu0 %3054, %v2993
        %v3056 = vpop.permute.xlu0 %3055
        %3059 = vset.pattern.permute.xlu0 0
        %3060 = vperm.xlu0 %3059, %v2994
        %v3061 = vpop.permute.xlu0 %3060
        %3064 = vset.pattern.permute.xlu0 0
        %3065 = vperm.xlu0 %3064, %v2995
        %v3066 = vpop.permute.xlu0 %3065
        %3069 = vset.pattern.permute.xlu0 0
        %3070 = vperm.xlu0 %3069, %v2996
        %v3071 = vpop.permute.xlu0 %3070
        %3074 = vset.pattern.permute.xlu0 0
        %3075 = vperm.xlu0 %3074, %v2997
        %v3076 = vpop.permute.xlu0 %3075
        %v3094 = vunpack.c.l.b16 %v2966
        %v3095 = vunpack.c.h.b16 %v2966
        %v3096 = vunpack.c.l.b16 %v2967
        %v3097 = vunpack.c.h.b16 %v2967
        %v3098 = vunpack.c.l.b16 %v2968
        %v3099 = vunpack.c.h.b16 %v2968
        %v3100 = vunpack.c.l.b16 %v2969
        %v3101 = vunpack.c.h.b16 %v2969
        %v3102 = vunpack.c.l.b16 %v2970
        %v3103 = vunpack.c.h.b16 %v2970
        %v3104 = vunpack.c.l.b16 %v2971
        %v3105 = vunpack.c.h.b16 %v2971
        %v3106 = vunpack.c.l.b16 %v2972
        %v3107 = vunpack.c.h.b16 %v2972
        %v3108 = vunpack.c.l.b16 %v2973
        %v3109 = vunpack.c.h.b16 %v2973
        %v3110 = vunpack.c.l.b16 %v2974
        %v3111 = vunpack.c.h.b16 %v2974
        %v3112 = vunpack.c.l.b16 %v2975
        %v3113 = vunpack.c.h.b16 %v2975
        %v3114 = vunpack.c.l.b16 %v2976
        %v3115 = vunpack.c.h.b16 %v2976
        %v3116 = vunpack.c.l.b16 %v2977
        %v3117 = vunpack.c.h.b16 %v2977
        %v3118 = vunpack.c.l.b16 %v2978
        %v3119 = vunpack.c.h.b16 %v2978
        %v3120 = vunpack.c.l.b16 %v2979
        %v3121 = vunpack.c.h.b16 %v2979
        %v3122 = vunpack.c.l.b16 %v2980
        %v3123 = vunpack.c.h.b16 %v2980
        %v3124 = vunpack.c.l.b16 %v2981
        %v3125 = vunpack.c.h.b16 %v2981
        %v3126 = vpack.c.b16 %v3096, %v3094
        %v3127 = vpack.c.b16 %v3097, %v3095
        %v3128 = vpack.c.b16 %v3100, %v3098
        %v3129 = vpack.c.b16 %v3101, %v3099
        %v3130 = vpack.c.b16 %v3104, %v3102
        %v3131 = vpack.c.b16 %v3105, %v3103
        %v3132 = vpack.c.b16 %v3108, %v3106
        %v3133 = vpack.c.b16 %v3109, %v3107
        %v3134 = vpack.c.b16 %v3112, %v3110
        %v3135 = vpack.c.b16 %v3113, %v3111
        %v3136 = vpack.c.b16 %v3116, %v3114
        %v3137 = vpack.c.b16 %v3117, %v3115
        %v3138 = vpack.c.b16 %v3120, %v3118
        %v3139 = vpack.c.b16 %v3121, %v3119
        %v3140 = vpack.c.b16 %v3124, %v3122
        %v3141 = vpack.c.b16 %v3125, %v3123
        %3158 = vmatprep.subr.bf16.mxu0 %v2949
        %3159 = vmatpush1.bf16.msra.mxu0 %v2948
        %3160 = vmatprep.subr.bf16.mxu0 %v2947
        %3161 = vmatpush1.bf16.msra.mxu0 %v2946
        %3162 = vmatprep.subr.bf16.mxu0 %v2945
        %3163 = vmatpush1.bf16.msra.mxu0 %v2944
        %3164 = vmatprep.subr.bf16.mxu0 %v2943
        %3165 = vmatpush1.bf16.msra.mxu0 %v2942
        %3166 = vmatprep.subr.bf16.mxu0 %v2941
        %3167 = vmatpush1.bf16.msra.mxu0 %v2940
        %3168 = vmatprep.subr.bf16.mxu0 %v2939
        %3169 = vmatpush1.bf16.msra.mxu0 %v2938
        %3170 = vmatprep.subr.bf16.mxu0 %v2937
        %3171 = vmatpush1.bf16.msra.mxu0 %v2936
        %3172 = vmatprep.subr.bf16.mxu0 %v2935
        %3173 = vmatpush1.bf16.msra.mxu0 %v2934
        %3174 = vmatprep.subr.bf16.mxu0 %v2965
        %3175 = vmatpush2.bf16.msra.mxu0 %v2964
        %3176 = vmatprep.subr.bf16.mxu0 %v2963
        %3177 = vmatpush2.bf16.msra.mxu0 %v2962
        %3178 = vmatprep.subr.bf16.mxu0 %v2961
        %3179 = vmatpush2.bf16.msra.mxu0 %v2960
        %3180 = vmatprep.subr.bf16.mxu0 %v2959
        %3181 = vmatpush2.bf16.msra.mxu0 %v2958
        %3182 = vmatprep.subr.bf16.mxu0 %v2957
        %3183 = vmatpush2.bf16.msra.mxu0 %v2956
        %3184 = vmatprep.subr.bf16.mxu0 %v2955
        %3185 = vmatpush2.bf16.msra.mxu0 %v2954
        %3186 = vmatprep.subr.bf16.mxu0 %v2953
        %3187 = vmatpush2.bf16.msra.mxu0 %v2952
        %3188 = vmatprep.subr.bf16.mxu0 %v2951
        %3189 = vmatpush2.bf16.msra.mxu0 %v2950
        %3190 = vmatprep.mubr.bf16.mxu0 %v3127
        %3191 = vmatmul.mubr.bf16.gmra.mxu0 %v3126
        %v3192 = vpop.f32.mrf.mxu0
        %v3193 = vadd.f32 %v3001, %v3192
        %v3194 = vpop.f32.mrf.mxu0
        %v3195 = vadd.f32 %v3001, %v3194
        %v3196 = vpop.f32.mrf.mxu0
        %v3197 = vadd.f32 %v3006, %v3196
        %v3198 = vpop.f32.mrf.mxu0
        %v3199 = vadd.f32 %v3006, %v3198
        %3200 = vmatprep.mubr.bf16.mxu0 %v3129
        %3201 = vmatmul.mubr.bf16.gmra.mxu0 %v3128
        %v3202 = vpop.f32.mrf.mxu0
        %v3203 = vadd.f32 %v3011, %v3202
        %v3204 = vpop.f32.mrf.mxu0
        %v3205 = vadd.f32 %v3011, %v3204
        %v3206 = vpop.f32.mrf.mxu0
        %v3207 = vadd.f32 %v3016, %v3206
        %v3208 = vpop.f32.mrf.mxu0
        %v3209 = vadd.f32 %v3016, %v3208
        %3210 = vmatprep.mubr.bf16.mxu0 %v3131
        %3211 = vmatmul.mubr.bf16.gmra.mxu0 %v3130
        %v3212 = vpop.f32.mrf.mxu0
        %v3213 = vadd.f32 %v3021, %v3212
        %v3214 = vpop.f32.mrf.mxu0
        %v3215 = vadd.f32 %v3021, %v3214
        %v3216 = vpop.f32.mrf.mxu0
        %v3217 = vadd.f32 %v3026, %v3216
        %v3218 = vpop.f32.mrf.mxu0
        %v3219 = vadd.f32 %v3026, %v3218
        %3220 = vmatprep.mubr.bf16.mxu0 %v3133
        %3221 = vmatmul.mubr.bf16.gmra.mxu0 %v3132
        %v3222 = vpop.f32.mrf.mxu0
        %v3223 = vadd.f32 %v3031, %v3222
        %v3224 = vpop.f32.mrf.mxu0
        %v3225 = vadd.f32 %v3031, %v3224
        %v3226 = vpop.f32.mrf.mxu0
        %v3227 = vadd.f32 %v3036, %v3226
        %v3228 = vpop.f32.mrf.mxu0
        %v3229 = vadd.f32 %v3036, %v3228
        %3230 = vmatprep.mubr.bf16.mxu0 %v3135
        %3231 = vmatmul.mubr.bf16.gmra.mxu0 %v3134
        %v3232 = vpop.f32.mrf.mxu0
        %v3233 = vadd.f32 %v3041, %v3232
        %v3234 = vpop.f32.mrf.mxu0
        %v3235 = vadd.f32 %v3041, %v3234
        %v3236 = vpop.f32.mrf.mxu0
        %v3237 = vadd.f32 %v3046, %v3236
        %v3238 = vpop.f32.mrf.mxu0
        %v3239 = vadd.f32 %v3046, %v3238
        %3240 = vmatprep.mubr.bf16.mxu0 %v3137
        %3241 = vmatmul.mubr.bf16.gmra.mxu0 %v3136
        %v3242 = vpop.f32.mrf.mxu0
        %v3243 = vadd.f32 %v3051, %v3242
        %v3244 = vpop.f32.mrf.mxu0
        %v3245 = vadd.f32 %v3051, %v3244
        %v3246 = vpop.f32.mrf.mxu0
        %v3247 = vadd.f32 %v3056, %v3246
        %v3248 = vpop.f32.mrf.mxu0
        %v3249 = vadd.f32 %v3056, %v3248
        %3250 = vmatprep.mubr.bf16.mxu0 %v3139
        %3251 = vmatmul.mubr.bf16.gmra.mxu0 %v3138
        %v3252 = vpop.f32.mrf.mxu0
        %v3253 = vadd.f32 %v3061, %v3252
        %v3254 = vpop.f32.mrf.mxu0
        %v3255 = vadd.f32 %v3061, %v3254
        %v3256 = vpop.f32.mrf.mxu0
        %v3257 = vadd.f32 %v3066, %v3256
        %v3258 = vpop.f32.mrf.mxu0
        %v3259 = vadd.f32 %v3066, %v3258
        %3260 = vmatprep.mubr.bf16.mxu0 %v3141
        %3261 = vmatmul.mubr.bf16.gmra.mxu0 %v3140
        %v3262 = vpop.f32.mrf.mxu0
        %v3263 = vadd.f32 %v3071, %v3262
        %v3264 = vpop.f32.mrf.mxu0
        %v3265 = vadd.f32 %v3071, %v3264
        %v3266 = vpop.f32.mrf.mxu0
        %v3267 = vadd.f32 %v3076, %v3266
        %v3268 = vpop.f32.mrf.mxu0
        %v3269 = vadd.f32 %v3076, %v3268
        %3270 = vdwg.mxu0
        %v3271 = vmax.f32 %v3193, 0.0
        %v3272 = vmax.f32 %v3195, 0.0
        %v3273 = vmax.f32 %v3197, 0.0
        %v3274 = vmax.f32 %v3199, 0.0
        %v3275 = vmax.f32 %v3203, 0.0
        %v3276 = vmax.f32 %v3205, 0.0
        %v3277 = vmax.f32 %v3207, 0.0
        %v3278 = vmax.f32 %v3209, 0.0
        %v3279 = vmax.f32 %v3213, 0.0
        %v3280 = vmax.f32 %v3215, 0.0
        %v3281 = vmax.f32 %v3217, 0.0
        %v3282 = vmax.f32 %v3219, 0.0
        %v3283 = vmax.f32 %v3223, 0.0
        %v3284 = vmax.f32 %v3225, 0.0
        %v3285 = vmax.f32 %v3227, 0.0
        %v3286 = vmax.f32 %v3229, 0.0
        %v3287 = vmax.f32 %v3233, 0.0
        %v3288 = vmax.f32 %v3235, 0.0
        %v3289 = vmax.f32 %v3237, 0.0
        %v3290 = vmax.f32 %v3239, 0.0
        %v3291 = vmax.f32 %v3243, 0.0
        %v3292 = vmax.f32 %v3245, 0.0
        %v3293 = vmax.f32 %v3247, 0.0
        %v3294 = vmax.f32 %v3249, 0.0
        %v3295 = vmax.f32 %v3253, 0.0
        %v3296 = vmax.f32 %v3255, 0.0
        %v3297 = vmax.f32 %v3257, 0.0
        %v3298 = vmax.f32 %v3259, 0.0
        %v3299 = vmax.f32 %v3263, 0.0
        %v3300 = vmax.f32 %v3265, 0.0
        %v3301 = vmax.f32 %v3267, 0.0
        %v3302 = vmax.f32 %v3269, 0.0
        %v3303 = vpack.c.bf16 %v3273, %v3271
        %v3304 = vpack.c.bf16 %v3274, %v3272
        %v3305 = vpack.c.bf16 %v3277, %v3275
        %v3306 = vpack.c.bf16 %v3278, %v3276
        %v3307 = vpack.c.bf16 %v3281, %v3279
        %v3308 = vpack.c.bf16 %v3282, %v3280
        %v3309 = vpack.c.bf16 %v3285, %v3283
        %v3310 = vpack.c.bf16 %v3286, %v3284
        %v3311 = vpack.c.bf16 %v3289, %v3287
        %v3312 = vpack.c.bf16 %v3290, %v3288
        %v3313 = vpack.c.bf16 %v3293, %v3291
        %v3314 = vpack.c.bf16 %v3294, %v3292
        %v3315 = vpack.c.bf16 %v3297, %v3295
        %v3316 = vpack.c.bf16 %v3298, %v3296
        %v3317 = vpack.c.bf16 %v3301, %v3299
        %v3318 = vpack.c.bf16 %v3302, %v3300
        %v3319 = vld [vmem:[%s7] sm:$0xf]
        %v3320 = vld [vmem:[%s7 + $0x4] sm:$0xf]
        %v3321 = vld [vmem:[%s7 + $0x8] sm:$0xf]
        %v3322 = vld [vmem:[%s7 + $0xc] sm:$0xf]
        %v3323 = vld [vmem:[%s7 + $0x10] sm:$0xf]
        %v3324 = vld [vmem:[%s7 + $0x14] sm:$0xf]
        %v3325 = vld [vmem:[%s7 + $0x18] sm:$0xf]
        %v3326 = vld [vmem:[%s7 + $0x1c] sm:$0xf]
        %v3327 = vld [vmem:[%s8] sm:$0xff]
        %v3328 = vld [vmem:[%s8 + $0x8] sm:$0xff]
        %v3329 = vld [vmem:[%s8 + $0x10] sm:$0xff]
        %v3330 = vld [vmem:[%s8 + $0x18] sm:$0xff]
        %v3331 = vld [vmem:[%s8 + $0x20] sm:$0xff]
        %v3332 = vld [vmem:[%s8 + $0x28] sm:$0xff]
        %v3333 = vld [vmem:[%s8 + $0x30] sm:$0xff]
        %v3334 = vld [vmem:[%s8 + $0x38] sm:$0xff]
        %3336 = vset.pattern.permute.xlu0 0
        %3337 = vperm.xlu0 %3336, %v3327
        %v3338 = vpop.permute.xlu0 %3337
        %3341 = vset.pattern.permute.xlu0 0
        %3342 = vperm.xlu0 %3341, %v3328
        %v3343 = vpop.permute.xlu0 %3342
        %3346 = vset.pattern.permute.xlu0 0
        %3347 = vperm.xlu0 %3346, %v3329
        %v3348 = vpop.permute.xlu0 %3347
        %3351 = vset.pattern.permute.xlu0 0
        %3352 = vperm.xlu0 %3351, %v3330
        %v3353 = vpop.permute.xlu0 %3352
        %3356 = vset.pattern.permute.xlu0 0
        %3357 = vperm.xlu0 %3356, %v3331
        %v3358 = vpop.permute.xlu0 %3357
        %3361 = vset.pattern.permute.xlu0 0
        %3362 = vperm.xlu0 %3361, %v3332
        %v3363 = vpop.permute.xlu0 %3362
        %3366 = vset.pattern.permute.xlu0 0
        %3367 = vperm.xlu0 %3366, %v3333
        %v3368 = vpop.permute.xlu0 %3367
        %3371 = vset.pattern.permute.xlu0 0
        %3372 = vperm.xlu0 %3371, %v3334
        %v3373 = vpop.permute.xlu0 %3372
        %v3383 = vunpack.c.l.b16 %v3319
        %v3384 = vunpack.c.l.b16 %v3320
        %v3385 = vunpack.c.l.b16 %v3321
        %v3386 = vunpack.c.l.b16 %v3322
        %v3387 = vunpack.c.l.b16 %v3323
        %v3388 = vunpack.c.l.b16 %v3324
        %v3389 = vunpack.c.l.b16 %v3325
        %v3390 = vunpack.c.l.b16 %v3326
        %v3391 = vpack.c.b16 %v3384, %v3383
        %v3392 = vpack.c.b16 %v3386, %v3385
        %v3393 = vpack.c.b16 %v3388, %v3387
        %v3394 = vpack.c.b16 %v3390, %v3389
        %3399 = vmatprep.subr.bf16.mxu0 %v3318
        %3400 = vmatpush1.bf16.msra.mxu0 %v3317
        %3401 = vmatprep.subr.bf16.mxu0 %v3316
        %3402 = vmatpush1.bf16.msra.mxu0 %v3315
        %3403 = vmatprep.subr.bf16.mxu0 %v3314
        %3404 = vmatpush1.bf16.msra.mxu0 %v3313
        %3405 = vmatprep.subr.bf16.mxu0 %v3312
        %3406 = vmatpush1.bf16.msra.mxu0 %v3311
        %3407 = vmatprep.subr.bf16.mxu0 %v3310
        %3408 = vmatpush1.bf16.msra.mxu0 %v3309
        %3409 = vmatprep.subr.bf16.mxu0 %v3308
        %3410 = vmatpush1.bf16.msra.mxu0 %v3307
        %3411 = vmatprep.subr.bf16.mxu0 %v3306
        %3412 = vmatpush1.bf16.msra.mxu0 %v3305
        %3413 = vmatprep.subr.bf16.mxu0 %v3304
        %3414 = vmatpush1.bf16.msra.mxu0 %v3303
        %3415 = vmatprep.subr.bf16.mxu0 0
        %3416 = vmatpush2.bf16.msra.mxu0 0
        %3417 = vmatprep.subr.bf16.mxu0 0
        %3418 = vmatpush2.bf16.msra.mxu0 0
        %3419 = vmatprep.subr.bf16.mxu0 0
        %3420 = vmatpush2.bf16.msra.mxu0 0
        %3421 = vmatprep.subr.bf16.mxu0 0
        %3422 = vmatpush2.bf16.msra.mxu0 0
        %3423 = vmatprep.subr.bf16.mxu0 0
        %3424 = vmatpush2.bf16.msra.mxu0 0
        %3425 = vmatprep.subr.bf16.mxu0 0
        %3426 = vmatpush2.bf16.msra.mxu0 0
        %3427 = vmatprep.subr.bf16.mxu0 0
        %3428 = vmatpush2.bf16.msra.mxu0 0
        %3429 = vmatprep.subr.bf16.mxu0 0
        %3430 = vmatpush2.bf16.msra.mxu0 0
        %3431 = vmatprep.mubr.bf16.mxu0 0
        %3432 = vmatmul.mubr.bf16.gmra.mxu0 %v3391
        %v3433 = vpop.f32.mrf.mxu0
        %v3434 = vadd.f32 %v3338, %v3433
        %v3435 = vpop.f32.mrf.mxu0
        %v3436 = vadd.f32 %v3338, %v3435
        %v3437 = vpop.f32.mrf.mxu0
        %v3438 = vadd.f32 %v3343, %v3437
        %v3439 = vpop.f32.mrf.mxu0
        %v3440 = vadd.f32 %v3343, %v3439
        %3441 = vmatprep.mubr.bf16.mxu0 0
        %3442 = vmatmul.mubr.bf16.gmra.mxu0 %v3392
        %v3443 = vpop.f32.mrf.mxu0
        %v3444 = vadd.f32 %v3348, %v3443
        %v3445 = vpop.f32.mrf.mxu0
        %v3446 = vadd.f32 %v3348, %v3445
        %v3447 = vpop.f32.mrf.mxu0
        %v3448 = vadd.f32 %v3353, %v3447
        %v3449 = vpop.f32.mrf.mxu0
        %v3450 = vadd.f32 %v3353, %v3449
        %3451 = vmatprep.mubr.bf16.mxu0 0
        %3452 = vmatmul.mubr.bf16.gmra.mxu0 %v3393
        %v3453 = vpop.f32.mrf.mxu0
        %v3454 = vadd.f32 %v3358, %v3453
        %v3455 = vpop.f32.mrf.mxu0
        %v3456 = vadd.f32 %v3358, %v3455
        %v3457 = vpop.f32.mrf.mxu0
        %v3458 = vadd.f32 %v3363, %v3457
        %v3459 = vpop.f32.mrf.mxu0
        %v3460 = vadd.f32 %v3363, %v3459
        %3461 = vmatprep.mubr.bf16.mxu0 0
        %3462 = vmatmul.mubr.bf16.gmra.mxu0 %v3394
        %v3463 = vpop.f32.mrf.mxu0
        %v3464 = vadd.f32 %v3368, %v3463
        %v3465 = vpop.f32.mrf.mxu0
        %v3466 = vadd.f32 %v3368, %v3465
        %v3467 = vpop.f32.mrf.mxu0
        %v3468 = vadd.f32 %v3373, %v3467
        %v3469 = vpop.f32.mrf.mxu0
        %v3470 = vadd.f32 %v3373, %v3469
        %3471 = vdwg.mxu0
        %v3472 = vmax.f32 %v3434, 0.0
        %v3473 = vmax.f32 %v3436, 0.0
        %v3474 = vmax.f32 %v3438, 0.0
        %v3475 = vmax.f32 %v3440, 0.0
        %v3476 = vmax.f32 %v3444, 0.0
        %v3477 = vmax.f32 %v3446, 0.0
        %v3478 = vmax.f32 %v3448, 0.0
        %v3479 = vmax.f32 %v3450, 0.0
        %v3480 = vmax.f32 %v3454, 0.0
        %v3481 = vmax.f32 %v3456, 0.0
        %v3482 = vmax.f32 %v3458, 0.0
        %v3483 = vmax.f32 %v3460, 0.0
        %v3484 = vmax.f32 %v3464, 0.0
        %v3485 = vmax.f32 %v3466, 0.0
        %v3486 = vmax.f32 %v3468, 0.0
        %v3487 = vmax.f32 %v3470, 0.0
        %v3488 = vpack.c.bf16 %v3474, %v3472
        %v3489 = vpack.c.bf16 %v3475, %v3473
        %v3490 = vpack.c.bf16 %v3478, %v3476
        %v3491 = vpack.c.bf16 %v3479, %v3477
        %v3492 = vpack.c.bf16 %v3482, %v3480
        %v3493 = vpack.c.bf16 %v3483, %v3481
        %v3494 = vpack.c.bf16 %v3486, %v3484
        %v3495 = vpack.c.bf16 %v3487, %v3485
        %v3496 = vld [vmem:[%s9] sm:$0xf]
        %v3497 = vld [vmem:[%s9 + $0x4] sm:$0xf]
        %v3498 = vld [vmem:[%s9 + $0x8] sm:$0xf]
        %v3499 = vld [vmem:[%s9 + $0xc] sm:$0xf]
        %v3500 = vld [vmem:[%s10] sm:$0xff]
        %v3501 = vld [vmem:[%s10 + $0x8] sm:$0xff]
        %v3502 = vld [vmem:[%s10 + $0x10] sm:$0xff]
        %v3503 = vld [vmem:[%s10 + $0x18] sm:$0xff]
        %3505 = vset.pattern.permute.xlu0 0
        %3506 = vperm.xlu0 %3505, %v3500
        %v3507 = vpop.permute.xlu0 %3506
        %3510 = vset.pattern.permute.xlu0 0
        %3511 = vperm.xlu0 %3510, %v3501
        %v3512 = vpop.permute.xlu0 %3511
        %3515 = vset.pattern.permute.xlu0 0
        %3516 = vperm.xlu0 %3515, %v3502
        %v3517 = vpop.permute.xlu0 %3516
        %3520 = vset.pattern.permute.xlu0 0
        %3521 = vperm.xlu0 %3520, %v3503
        %v3522 = vpop.permute.xlu0 %3521
        %v3528 = vunpack.c.l.b16 %v3496
        %v3529 = vunpack.c.l.b16 %v3497
        %v3530 = vunpack.c.l.b16 %v3498
        %v3531 = vunpack.c.l.b16 %v3499
        %v3532 = vpack.c.b16 %v3529, %v3528
        %v3533 = vpack.c.b16 %v3531, %v3530
        %vm3534 = vcmask 523264
        %v3536 = vsel %vm3534, %v3532, 0
        %v3539 = vsel %vm3534, %v3533, 0
        %3541 = vmatprep.subr.bf16.mxu0 0
        %3542 = vmatpush1.bf16.msra.mxu0 0
        %3543 = vmatprep.subr.bf16.mxu0 0
        %3544 = vmatpush1.bf16.msra.mxu0 0
        %3545 = vmatprep.subr.bf16.mxu0 0
        %3546 = vmatpush1.bf16.msra.mxu0 0
        %3547 = vmatprep.subr.bf16.mxu0 0
        %3548 = vmatpush1.bf16.msra.mxu0 0
        %3549 = vmatprep.subr.bf16.mxu0 %v3495
        %3550 = vmatpush1.bf16.msra.mxu0 %v3494
        %3551 = vmatprep.subr.bf16.mxu0 %v3493
        %3552 = vmatpush1.bf16.msra.mxu0 %v3492
        %3553 = vmatprep.subr.bf16.mxu0 %v3491
        %3554 = vmatpush1.bf16.msra.mxu0 %v3490
        %3555 = vmatprep.subr.bf16.mxu0 %v3489
        %3556 = vmatpush1.bf16.msra.mxu0 %v3488
        %3557 = vmatprep.subr.bf16.mxu0 0
        %3558 = vmatpush2.bf16.msra.mxu0 0
        %3559 = vmatprep.subr.bf16.mxu0 0
        %3560 = vmatpush2.bf16.msra.mxu0 0
        %3561 = vmatprep.subr.bf16.mxu0 0
        %3562 = vmatpush2.bf16.msra.mxu0 0
        %3563 = vmatprep.subr.bf16.mxu0 0
        %3564 = vmatpush2.bf16.msra.mxu0 0
        %3565 = vmatprep.subr.bf16.mxu0 0
        %3566 = vmatpush2.bf16.msra.mxu0 0
        %3567 = vmatprep.subr.bf16.mxu0 0
        %3568 = vmatpush2.bf16.msra.mxu0 0
        %3569 = vmatprep.subr.bf16.mxu0 0
        %3570 = vmatpush2.bf16.msra.mxu0 0
        %3571 = vmatprep.subr.bf16.mxu0 0
        %3572 = vmatpush2.bf16.msra.mxu0 0
        %3573 = vmatprep.mubr.bf16.mxu0 0
        %3574 = vmatmul.mubr.bf16.gmra.mxu0 %v3536
        %v3575 = vpop.f32.mrf.mxu0
        %v3576 = vadd.f32 %v3507, %v3575
        %v3577 = vpop.f32.mrf.mxu0
        %v3578 = vadd.f32 %v3507, %v3577
        %v3579 = vpop.f32.mrf.mxu0
        %v3580 = vadd.f32 %v3512, %v3579
        %v3581 = vpop.f32.mrf.mxu0
        %v3582 = vadd.f32 %v3512, %v3581
        %3583 = vmatprep.mubr.bf16.mxu0 0
        %3584 = vmatmul.mubr.bf16.gmra.mxu0 %v3539
        %v3585 = vpop.f32.mrf.mxu0
        %v3586 = vadd.f32 %v3517, %v3585
        %v3587 = vpop.f32.mrf.mxu0
        %v3588 = vadd.f32 %v3517, %v3587
        %v3589 = vpop.f32.mrf.mxu0
        %v3590 = vadd.f32 %v3522, %v3589
        %v3591 = vpop.f32.mrf.mxu0
        %v3592 = vadd.f32 %v3522, %v3591
        %3593 = vdwg.mxu0
        %v3594 = vmax.f32 %v3576, 0.0
        %v3595 = vmax.f32 %v3578, 0.0
        %v3596 = vmax.f32 %v3580, 0.0
        %v3597 = vmax.f32 %v3582, 0.0
        %v3598 = vmax.f32 %v3586, 0.0
        %v3599 = vmax.f32 %v3588, 0.0
        %v3600 = vmax.f32 %v3590, 0.0
        %v3601 = vmax.f32 %v3592, 0.0
        %v3602 = vpack.c.bf16 %v3596, %v3594
        %v3603 = vpack.c.bf16 %v3597, %v3595
        %v3604 = vpack.c.bf16 %v3600, %v3598
        %v3605 = vpack.c.bf16 %v3601, %v3599
        %v3606 = vld [vmem:[%s11] sm:$0xf]
        %v3607 = vld [vmem:[%s11 + $0x4] sm:$0xf]
        %v3608 = vld [vmem:[%s11 + $0x8] sm:$0xf]
        %v3609 = vld [vmem:[%s11 + $0xc] sm:$0xf]
        %v3610 = vld [vmem:[%s12] sm:$0xff]
        %v3611 = vld [vmem:[%s12 + $0x8] sm:$0xff]
        %v3612 = vld [vmem:[%s12 + $0x10] sm:$0xff]
        %v3613 = vld [vmem:[%s12 + $0x18] sm:$0xff]
        %3615 = vset.pattern.permute.xlu0 0
        %3616 = vperm.xlu0 %3615, %v3610
        %v3617 = vpop.permute.xlu0 %3616
        %3620 = vset.pattern.permute.xlu0 0
        %3621 = vperm.xlu0 %3620, %v3611
        %v3622 = vpop.permute.xlu0 %3621
        %3625 = vset.pattern.permute.xlu0 0
        %3626 = vperm.xlu0 %3625, %v3612
        %v3627 = vpop.permute.xlu0 %3626
        %3630 = vset.pattern.permute.xlu0 0
        %3631 = vperm.xlu0 %3630, %v3613
        %v3632 = vpop.permute.xlu0 %3631
        %v3638 = vunpack.c.l.b16 %v3606
        %v3639 = vunpack.c.l.b16 %v3607
        %v3640 = vunpack.c.l.b16 %v3608
        %v3641 = vunpack.c.l.b16 %v3609
        %v3642 = vpack.c.b16 %v3639, %v3638
        %v3643 = vpack.c.b16 %v3641, %v3640
        %vm3644 = vcmask 261120
        %v3646 = vsel %vm3644, %v3642, 0
        %v3649 = vsel %vm3644, %v3643, 0
        %3651 = vmatprep.subr.bf16.mxu0 0
        %3652 = vmatpush1.bf16.msra.mxu0 0
        %3653 = vmatprep.subr.bf16.mxu0 0
        %3654 = vmatpush1.bf16.msra.mxu0 0
        %3655 = vmatprep.subr.bf16.mxu0 0
        %3656 = vmatpush1.bf16.msra.mxu0 0
        %3657 = vmatprep.subr.bf16.mxu0 0
        %3658 = vmatpush1.bf16.msra.mxu0 0
        %3659 = vmatprep.subr.bf16.mxu0 0
        %3660 = vmatpush1.bf16.msra.mxu0 0
        %3661 = vmatprep.subr.bf16.mxu0 0
        %3662 = vmatpush1.bf16.msra.mxu0 0
        %3663 = vmatprep.subr.bf16.mxu0 %v3605
        %3664 = vmatpush1.bf16.msra.mxu0 %v3604
        %3665 = vmatprep.subr.bf16.mxu0 %v3603
        %3666 = vmatpush1.bf16.msra.mxu0 %v3602
        %3667 = vmatprep.subr.bf16.mxu0 0
        %3668 = vmatpush2.bf16.msra.mxu0 0
        %3669 = vmatprep.subr.bf16.mxu0 0
        %3670 = vmatpush2.bf16.msra.mxu0 0
        %3671 = vmatprep.subr.bf16.mxu0 0
        %3672 = vmatpush2.bf16.msra.mxu0 0
        %3673 = vmatprep.subr.bf16.mxu0 0
        %3674 = vmatpush2.bf16.msra.mxu0 0
        %3675 = vmatprep.subr.bf16.mxu0 0
        %3676 = vmatpush2.bf16.msra.mxu0 0
        %3677 = vmatprep.subr.bf16.mxu0 0
        %3678 = vmatpush2.bf16.msra.mxu0 0
        %3679 = vmatprep.subr.bf16.mxu0 0
        %3680 = vmatpush2.bf16.msra.mxu0 0
        %3681 = vmatprep.subr.bf16.mxu0 0
        %3682 = vmatpush2.bf16.msra.mxu0 0
        %3683 = vmatprep.mubr.bf16.mxu0 0
        %3684 = vmatmul.mubr.bf16.gmra.mxu0 %v3646
        %v3685 = vpop.f32.mrf.mxu0
        %v3686 = vadd.f32 %v3617, %v3685
        %v3687 = vpop.f32.mrf.mxu0
        %v3688 = vadd.f32 %v3617, %v3687
        %v3689 = vpop.f32.mrf.mxu0
        %v3690 = vadd.f32 %v3622, %v3689
        %v3691 = vpop.f32.mrf.mxu0
        %v3692 = vadd.f32 %v3622, %v3691
        %3693 = vmatprep.mubr.bf16.mxu0 0
        %3694 = vmatmul.mubr.bf16.gmra.mxu0 %v3649
        %v3695 = vpop.f32.mrf.mxu0
        %v3696 = vadd.f32 %v3627, %v3695
        %v3697 = vpop.f32.mrf.mxu0
        %v3698 = vadd.f32 %v3627, %v3697
        %v3699 = vpop.f32.mrf.mxu0
        %v3700 = vadd.f32 %v3632, %v3699
        %v3701 = vpop.f32.mrf.mxu0
        %v3702 = vadd.f32 %v3632, %v3701
        %3703 = vdwg.mxu0
        %v3704 = vmax.f32 %v3686, 0.0
        %v3705 = vmax.f32 %v3688, 0.0
        %v3706 = vmax.f32 %v3690, 0.0
        %v3707 = vmax.f32 %v3692, 0.0
        %v3708 = vmax.f32 %v3696, 0.0
        %v3709 = vmax.f32 %v3698, 0.0
        %v3710 = vmax.f32 %v3700, 0.0
        %v3711 = vmax.f32 %v3702, 0.0
        %v3712 = vpack.c.bf16 %v3706, %v3704
        %v3713 = vpack.c.bf16 %v3707, %v3705
        %v3714 = vpack.c.bf16 %v3710, %v3708
        %v3715 = vpack.c.bf16 %v3711, %v3709
        %v3716 = vld [vmem:[%s13] sm:$0xf]
        %v3717 = vld [vmem:[%s13 + $0x4] sm:$0xf]
        %v3718 = vld [vmem:[%s13 + $0x8] sm:$0xf]
        %v3719 = vld [vmem:[%s13 + $0xc] sm:$0xf]
        %v3720 = vld [vmem:[%s14] sm:$0xff]
        %v3721 = vld [vmem:[%s14 + $0x8] sm:$0xff]
        %v3722 = vld [vmem:[%s14 + $0x10] sm:$0xff]
        %v3723 = vld [vmem:[%s14 + $0x18] sm:$0xff]
        %3725 = vset.pattern.permute.xlu0 0
        %3726 = vperm.xlu0 %3725, %v3720
        %v3727 = vpop.permute.xlu0 %3726
        %3730 = vset.pattern.permute.xlu0 0
        %3731 = vperm.xlu0 %3730, %v3721
        %v3732 = vpop.permute.xlu0 %3731
        %3735 = vset.pattern.permute.xlu0 0
        %3736 = vperm.xlu0 %3735, %v3722
        %v3737 = vpop.permute.xlu0 %3736
        %3740 = vset.pattern.permute.xlu0 0
        %3741 = vperm.xlu0 %3740, %v3723
        %v3742 = vpop.permute.xlu0 %3741
        %v3748 = vunpack.c.l.b16 %v3716
        %v3749 = vunpack.c.l.b16 %v3717
        %v3750 = vunpack.c.l.b16 %v3718
        %v3751 = vunpack.c.l.b16 %v3719
        %v3752 = vpack.c.b16 %v3749, %v3748
        %v3753 = vpack.c.b16 %v3751, %v3750
        %v3755 = vsel %vm3644, %v3752, 0
        %v3758 = vsel %vm3644, %v3753, 0
        %3760 = vmatprep.subr.bf16.mxu0 0
        %3761 = vmatpush1.bf16.msra.mxu0 0
        %3762 = vmatprep.subr.bf16.mxu0 0
        %3763 = vmatpush1.bf16.msra.mxu0 0
        %3764 = vmatprep.subr.bf16.mxu0 0
        %3765 = vmatpush1.bf16.msra.mxu0 0
        %3766 = vmatprep.subr.bf16.mxu0 0
        %3767 = vmatpush1.bf16.msra.mxu0 0
        %3768 = vmatprep.subr.bf16.mxu0 0
        %3769 = vmatpush1.bf16.msra.mxu0 0
        %3770 = vmatprep.subr.bf16.mxu0 0
        %3771 = vmatpush1.bf16.msra.mxu0 0
        %3772 = vmatprep.subr.bf16.mxu0 %v3715
        %3773 = vmatpush1.bf16.msra.mxu0 %v3714
        %3774 = vmatprep.subr.bf16.mxu0 %v3713
        %3775 = vmatpush1.bf16.msra.mxu0 %v3712
        %3776 = vmatprep.subr.bf16.mxu0 0
        %3777 = vmatpush2.bf16.msra.mxu0 0
        %3778 = vmatprep.subr.bf16.mxu0 0
        %3779 = vmatpush2.bf16.msra.mxu0 0
        %3780 = vmatprep.subr.bf16.mxu0 0
        %3781 = vmatpush2.bf16.msra.mxu0 0
        %3782 = vmatprep.subr.bf16.mxu0 0
        %3783 = vmatpush2.bf16.msra.mxu0 0
        %3784 = vmatprep.subr.bf16.mxu0 0
        %3785 = vmatpush2.bf16.msra.mxu0 0
        %3786 = vmatprep.subr.bf16.mxu0 0
        %3787 = vmatpush2.bf16.msra.mxu0 0
        %3788 = vmatprep.subr.bf16.mxu0 0
        %3789 = vmatpush2.bf16.msra.mxu0 0
        %3790 = vmatprep.subr.bf16.mxu0 0
        %3791 = vmatpush2.bf16.msra.mxu0 0
        %3792 = vmatprep.mubr.bf16.mxu0 0
        %3793 = vmatmul.mubr.bf16.gmra.mxu0 %v3755
        %v3794 = vpop.f32.mrf.mxu0
        %v3795 = vadd.f32 %v3727, %v3794
        %v3796 = vpop.f32.mrf.mxu0
        %v3797 = vadd.f32 %v3727, %v3796
        %v3798 = vpop.f32.mrf.mxu0
        %v3799 = vadd.f32 %v3732, %v3798
        %v3800 = vpop.f32.mrf.mxu0
        %v3801 = vadd.f32 %v3732, %v3800
        %3802 = vmatprep.mubr.bf16.mxu0 0
        %3803 = vmatmul.mubr.bf16.gmra.mxu0 %v3758
        %v3804 = vpop.f32.mrf.mxu0
        %v3805 = vadd.f32 %v3737, %v3804
        %v3806 = vpop.f32.mrf.mxu0
        %v3807 = vadd.f32 %v3737, %v3806
        %v3808 = vpop.f32.mrf.mxu0
        %v3809 = vadd.f32 %v3742, %v3808
        %v3810 = vpop.f32.mrf.mxu0
        %v3811 = vadd.f32 %v3742, %v3810
        %3812 = vdwg.mxu0
        %v3813 = vmax.f32 %v3795, 0.0
        %v3814 = vmax.f32 %v3797, 0.0
        %v3815 = vmax.f32 %v3799, 0.0
        %v3816 = vmax.f32 %v3801, 0.0
        %v3817 = vmax.f32 %v3805, 0.0
        %v3818 = vmax.f32 %v3807, 0.0
        %v3819 = vmax.f32 %v3809, 0.0
        %v3820 = vmax.f32 %v3811, 0.0
        %v3821 = vpack.c.bf16 %v3815, %v3813
        %v3822 = vpack.c.bf16 %v3816, %v3814
        %v3823 = vpack.c.bf16 %v3819, %v3817
        %v3824 = vpack.c.bf16 %v3820, %v3818
        %v3825 = vld [vmem:[%s15] sm:$0xf]
        %v3826 = vld [vmem:[%s15 + $0x4] sm:$0xf]
        %v3827 = vld [vmem:[%s15 + $0x8] sm:$0xf]
        %v3828 = vld [vmem:[%s15 + $0xc] sm:$0xf]
        %v3829 = vld [vmem:[%s16] sm:$0xff]
        %v3830 = vld [vmem:[%s16 + $0x8] sm:$0xff]
        %v3831 = vld [vmem:[%s16 + $0x10] sm:$0xff]
        %v3832 = vld [vmem:[%s16 + $0x18] sm:$0xff]
        %3834 = vset.pattern.permute.xlu0 0
        %3835 = vperm.xlu0 %3834, %v3829
        %v3836 = vpop.permute.xlu0 %3835
        %3839 = vset.pattern.permute.xlu0 0
        %3840 = vperm.xlu0 %3839, %v3830
        %v3841 = vpop.permute.xlu0 %3840
        %3844 = vset.pattern.permute.xlu0 0
        %3845 = vperm.xlu0 %3844, %v3831
        %v3846 = vpop.permute.xlu0 %3845
        %3849 = vset.pattern.permute.xlu0 0
        %3850 = vperm.xlu0 %3849, %v3832
        %v3851 = vpop.permute.xlu0 %3850
        %v3857 = vunpack.c.l.b16 %v3825
        %v3858 = vunpack.c.l.b16 %v3826
        %v3859 = vunpack.c.l.b16 %v3827
        %v3860 = vunpack.c.l.b16 %v3828
        %v3861 = vpack.c.b16 %v3858, %v3857
        %v3862 = vpack.c.b16 %v3860, %v3859
        %v3864 = vsel %vm3644, %v3861, 0
        %v3867 = vsel %vm3644, %v3862, 0
        %3869 = vmatprep.subr.bf16.mxu0 0
        %3870 = vmatpush1.bf16.msra.mxu0 0
        %3871 = vmatprep.subr.bf16.mxu0 0
        %3872 = vmatpush1.bf16.msra.mxu0 0
        %3873 = vmatprep.subr.bf16.mxu0 0
        %3874 = vmatpush1.bf16.msra.mxu0 0
        %3875 = vmatprep.subr.bf16.mxu0 0
        %3876 = vmatpush1.bf16.msra.mxu0 0
        %3877 = vmatprep.subr.bf16.mxu0 0
        %3878 = vmatpush1.bf16.msra.mxu0 0
        %3879 = vmatprep.subr.bf16.mxu0 0
        %3880 = vmatpush1.bf16.msra.mxu0 0
        %3881 = vmatprep.subr.bf16.mxu0 %v3824
        %3882 = vmatpush1.bf16.msra.mxu0 %v3823
        %3883 = vmatprep.subr.bf16.mxu0 %v3822
        %3884 = vmatpush1.bf16.msra.mxu0 %v3821
        %3885 = vmatprep.subr.bf16.mxu0 0
        %3886 = vmatpush2.bf16.msra.mxu0 0
        %3887 = vmatprep.subr.bf16.mxu0 0
        %3888 = vmatpush2.bf16.msra.mxu0 0
        %3889 = vmatprep.subr.bf16.mxu0 0
        %3890 = vmatpush2.bf16.msra.mxu0 0
        %3891 = vmatprep.subr.bf16.mxu0 0
        %3892 = vmatpush2.bf16.msra.mxu0 0
        %3893 = vmatprep.subr.bf16.mxu0 0
        %3894 = vmatpush2.bf16.msra.mxu0 0
        %3895 = vmatprep.subr.bf16.mxu0 0
        %3896 = vmatpush2.bf16.msra.mxu0 0
        %3897 = vmatprep.subr.bf16.mxu0 0
        %3898 = vmatpush2.bf16.msra.mxu0 0
        %3899 = vmatprep.subr.bf16.mxu0 0
        %3900 = vmatpush2.bf16.msra.mxu0 0
        %3901 = vmatprep.mubr.bf16.mxu0 0
        %3902 = vmatmul.mubr.bf16.gmra.mxu0 %v3864
        %v3903 = vpop.f32.mrf.mxu0
        %v3904 = vadd.f32 %v3836, %v3903
        %v3905 = vpop.f32.mrf.mxu0
        %v3906 = vadd.f32 %v3836, %v3905
        %v3907 = vpop.f32.mrf.mxu0
        %v3908 = vadd.f32 %v3841, %v3907
        %v3909 = vpop.f32.mrf.mxu0
        %v3910 = vadd.f32 %v3841, %v3909
        %3911 = vmatprep.mubr.bf16.mxu0 0
        %3912 = vmatmul.mubr.bf16.gmra.mxu0 %v3867
        %v3913 = vpop.f32.mrf.mxu0
        %v3914 = vadd.f32 %v3846, %v3913
        %v3915 = vpop.f32.mrf.mxu0
        %v3916 = vadd.f32 %v3846, %v3915
        %v3917 = vpop.f32.mrf.mxu0
        %v3918 = vadd.f32 %v3851, %v3917
        %v3919 = vpop.f32.mrf.mxu0
        %v3920 = vadd.f32 %v3851, %v3919
        %3921 = vdwg.mxu0
        %v3922 = vmax.f32 %v3904, 0.0
        %v3923 = vmax.f32 %v3906, 0.0
        %v3924 = vmax.f32 %v3908, 0.0
        %v3925 = vmax.f32 %v3910, 0.0
        %v3926 = vmax.f32 %v3914, 0.0
        %v3927 = vmax.f32 %v3916, 0.0
        %v3928 = vmax.f32 %v3918, 0.0
        %v3929 = vmax.f32 %v3920, 0.0
        %v3930 = vpack.c.bf16 %v3924, %v3922
        %v3931 = vpack.c.bf16 %v3925, %v3923
        %v3932 = vpack.c.bf16 %v3928, %v3926
        %v3933 = vpack.c.bf16 %v3929, %v3927
        %v3934 = vld [vmem:[%s17] sm:$0xf]
        %v3935 = vld [vmem:[%s18] sm:$0xff]
        %3937 = vset.pattern.permute.xlu0 0
        %3938 = vperm.xlu0 %3937, %v3935
        %v3939 = vpop.permute.xlu0 %3938
        %v3942 = vsel %vm3644, %v3934, 0
        %3944 = vmatprep.subr.bf16.mxu0 0
        %3945 = vmatpush1.bf16.msra.mxu0 0
        %3946 = vmatprep.subr.bf16.mxu0 0
        %3947 = vmatpush1.bf16.msra.mxu0 0
        %3948 = vmatprep.subr.bf16.mxu0 0
        %3949 = vmatpush1.bf16.msra.mxu0 0
        %3950 = vmatprep.subr.bf16.mxu0 0
        %3951 = vmatpush1.bf16.msra.mxu0 0
        %3952 = vmatprep.subr.bf16.mxu0 0
        %3953 = vmatpush1.bf16.msra.mxu0 0
        %3954 = vmatprep.subr.bf16.mxu0 0
        %3955 = vmatpush1.bf16.msra.mxu0 0
        %3956 = vmatprep.subr.bf16.mxu0 %v3933
        %3957 = vmatpush1.bf16.msra.mxu0 %v3932
        %3958 = vmatprep.subr.bf16.mxu0 %v3931
        %3959 = vmatpush1.bf16.msra.mxu0 %v3930
        %3960 = vmatprep.subr.bf16.mxu0 0
        %3961 = vmatpush2.bf16.msra.mxu0 0
        %3962 = vmatprep.subr.bf16.mxu0 0
        %3963 = vmatpush2.bf16.msra.mxu0 0
        %3964 = vmatprep.subr.bf16.mxu0 0
        %3965 = vmatpush2.bf16.msra.mxu0 0
        %3966 = vmatprep.subr.bf16.mxu0 0
        %3967 = vmatpush2.bf16.msra.mxu0 0
        %3968 = vmatprep.subr.bf16.mxu0 0
        %3969 = vmatpush2.bf16.msra.mxu0 0
        %3970 = vmatprep.subr.bf16.mxu0 0
        %3971 = vmatpush2.bf16.msra.mxu0 0
        %3972 = vmatprep.subr.bf16.mxu0 0
        %3973 = vmatpush2.bf16.msra.mxu0 0
        %3974 = vmatprep.subr.bf16.mxu0 0
        %3975 = vmatpush2.bf16.msra.mxu0 0
        %3976 = vmatprep.mubr.bf16.mxu0 0
        %3977 = vmatmul.mubr.bf16.gmra.mxu0 %v3942
        %v3978 = vpop.f32.mrf.mxu0
        %v3979 = vadd.f32 %v3939, %v3978
        %v3980 = vpop.f32.mrf.mxu0
        %v3981 = vadd.f32 %v3939, %v3980
        %v3982 = vpop.f32.mrf.mxu0
        %v3983 = vpop.f32.mrf.mxu0
        %3984 = vdwg.mxu0
        %3985 = vst [vmem:[%s643] sm:$0xff] %v3979
        %3986 = vst [vmem:[%s643 + $0x8] sm:$0xff] %v3981
        %s3987 = smul.u32 2, %s30
        %p3988 = scmp.lt.s32.totalorder %s3987, 3
        %s3989 = scalar_select %p3988, %s3987, 3
        %s3990 = smul.addr %s3989, 8
        %s3991 = scalar_lea.vmem %s19, %s3990
        // Predicated region
        $region135: #{softmax_classifier_forward.1} parent=129 // pred_check
          %p3992 = pneg %p452
        $region136: #{softmax_classifier_forward.1} parent=129 // pred_check_branch
          %3994 = sbr.rel (%p3992) target = $region138
        $region137: #{softmax_classifier_forward.1} parent=129 // pred_region
          %s3995 = smul.u32 2, %s30
        $region138: #{softmax_classifier_forward.1} parent=129 // pred_fallthru
          _
      $region130: #{softmax_classifier_forward.1} parent=5 // pred_fallthru
        _
      %p3996 = scmp.le.s32.totalorder 2, %s25
      // Predicated region
      $region139: #{softmax_classifier_forward.1} parent=5 // pred_check
        %p3997 = pneg %p3996
      $region140: #{softmax_classifier_forward.1} parent=5 // pred_check_branch
        %3999 = sbr.rel (%p3997) target = $region142
      $region141: #{softmax_classifier_forward.1} parent=5 // pred_region
        %s4000 = ssub.s32 %s25, 2
        // Predicated region
        $region143: #{softmax_classifier_forward.1} parent=141 // pred_check
          %p4001 = pneg %p458
        $region144: #{softmax_classifier_forward.1} parent=141 // pred_check_branch
          %4003 = sbr.rel (%p4001) target = $region146
        $region145: #{softmax_classifier_forward.1} parent=141 // pred_region
          %s4004 = smul.u32 2, %s31
          %p4005 = scmp.lt.s32.totalorder %s4004, 3
          %s4006 = scalar_select %p4005, %s4004, 3
          %s4007 = smul.addr %s4006, 8
          %s4008 = scalar_lea.vmem %s19, %s4007
        $region146: #{softmax_classifier_forward.1} parent=141 // pred_fallthru
          _
      $region142: #{softmax_classifier_forward.1} parent=5 // pred_fallthru
        _
    $region6: #{softmax_classifier_forward.1} parent=1 // loop_footer
      %s29 = sadd.s32 1, %s25
    $region7: #{softmax_classifier_forward.1} parent=1 // loop_footer_branch
      %24 = sbr.rel target = $region3
    $region8: #{softmax_classifier_forward.1} parent=1 // loop_exit
      _

</llo_original>
